<compile_context>
chip_gen: v6e
topology: v6e:2x2x1
jax: 0.10.0
libtpu: 0.0.40
codegen_flags: <defaults>
</compile_context>

<pallas_src>
import math
import functools

import jax
import jax.numpy as jnp
from jax.experimental import pallas as pl
from jax.experimental.pallas import tpu as pltpu

# ----------------- synthetic BERT config (small) -----------------
VOCAB = 100
TYPE_VOCAB = 2
MAX_POS = 16
HIDDEN = 32            # args.bert_hidden
N_HEADS = 4
HEAD_DIM = HIDDEN // N_HEADS
INTERMEDIATE = 128
N_LAYERS = 4
LN_EPS = 1e-12


# ----------------- in-kernel helpers -----------------
def _layer_norm(x, g, b):
    mu = jnp.mean(x, axis=-1, keepdims=True)
    var = jnp.mean(jnp.square(x - mu), axis=-1, keepdims=True)
    return (x - mu) * jax.lax.rsqrt(var + LN_EPS) * g + b


def _gelu(x):
    # TODO(synk): HF BERT uses exact erf-GELU; tanh approximation (EUP-friendly)
    # differs at the ~1e-3 level.
    c = math.sqrt(2.0 / math.pi)
    return 0.5 * x * (1.0 + jnp.tanh(c * (x + 0.044715 * x * x * x)))


# ----------------- fused kernel -----------------
def fused_bert_kernel(emb_ref, neg_ref, embln_ref, hw_ref, hb_ref,
                      wqkvo_ref, w1_ref, b1_ref, w2_ref, vecs_ref,
                      o_ref,
                      x_sc, cls_sc,
                      *, B, S):
    l = pl.program_id(0)

    # --- first grid step: embedding LayerNorm into the resident hidden state ---
    @pl.when(l == 0)
    def _():
        x_sc[...] = _layer_norm(emb_ref[...], embln_ref[0:1, :], embln_ref[1:2, :])

    x = x_sc[...]                                   # (B*S, H), VMEM-resident

    # --- this layer's weights (leading layer axis already selected by BlockSpec) ---
    wq = wqkvo_ref[0, 0]
    wk = wqkvo_ref[0, 1]
    wv = wqkvo_ref[0, 2]
    wo = wqkvo_ref[0, 3]
    vecs = vecs_ref[0]                              # (9, H): bq bk bv bo g1 be1 b2 g2 be2
    bq, bk, bv, bo = vecs[0:1], vecs[1:2], vecs[2:3], vecs[3:4]
    g1, be1 = vecs[4:5], vecs[5:6]
    b2 = vecs[6:7]
    g2, be2 = vecs[7:8], vecs[8:9]
    w1 = w1_ref[0]                                  # (H, I)
    b1 = b1_ref[0]                                  # (1, I)
    w2 = w2_ref[0]                                  # (I, H)

    scale = 1.0 / math.sqrt(HEAD_DIM)

    # --- projections over all B*S rows at once (one MXU pass each) ---
    q = (jnp.dot(x, wq, preferred_element_type=jnp.float32) + bq) * scale
    k = jnp.dot(x, wk, preferred_element_type=jnp.float32) + bk
    v = jnp.dot(x, wv, preferred_element_type=jnp.float32) + bv

    q3 = q.reshape(B, S, HIDDEN)
    k3 = k.reshape(B, S, HIDDEN)
    v3 = v.reshape(B, S, HIDDEN)
    neg = neg_ref[...]                              # (B, 1, S) additive mask

    # --- attention: batched over batch, static unrolled over heads ---
    ctx_heads = []
    for h in range(N_HEADS):
        lo = h * HEAD_DIM
        hi = lo + HEAD_DIM
        qh = q3[:, :, lo:hi]                        # (B, S, dH)
        kh = k3[:, :, lo:hi]
        vh = v3[:, :, lo:hi]
        s = jnp.einsum('bqd,bkd->bqk', qh, kh,
                       preferred_element_type=jnp.float32) + neg
        s = s - jnp.max(s, axis=-1, keepdims=True)
        p = jnp.exp(s)
        p = p * pl.reciprocal(jnp.sum(p, axis=-1, keepdims=True), approx=True)
        ctx_heads.append(jnp.einsum('bqk,bkd->bqd', p, vh,
                                    preferred_element_type=jnp.float32))
    ctx = jnp.concatenate(ctx_heads, axis=-1).reshape(B * S, HIDDEN)

    attn_out = jnp.dot(ctx, wo, preferred_element_type=jnp.float32) + bo
    x1 = _layer_norm(x + attn_out, g1, be1)

    # --- feed-forward ---
    ff = jnp.dot(x1, w1, preferred_element_type=jnp.float32) + b1
    ff = _gelu(ff)
    ff = jnp.dot(ff, w2, preferred_element_type=jnp.float32) + b2
    x_new = _layer_norm(x1 + ff, g2, be2)

    x_sc[...] = x_new                               # carry to next layer
    cls_cur = x_new.reshape(B, S, HIDDEN)[:, 0, :]  # (B, H) CLS rows of this layer
    cls_sc[l] = cls_cur                             # stash for the head

    # --- final grid step: CLS head Linear(4H -> 1) ---
    @pl.when(l == N_LAYERS - 1)
    def _():
        # torch: cat([cls(h[-1]), cls(h[-2]), cls(h[-3]), cls(h[-4])], dim=1)
        cat = jnp.concatenate([cls_cur,
                               cls_sc[N_LAYERS - 2],
                               cls_sc[N_LAYERS - 3],
                               cls_sc[N_LAYERS - 4]], axis=1)     # (B, 4H)
        o_ref[...] = jnp.dot(cat, hw_ref[...],
                             preferred_element_type=jnp.float32) + hb_ref[...]


# ----------------- parameters (deterministic synthetic init) -----------------
def init_params(key):
    ks = iter(jax.random.split(key, 16))

    def n(shape):
        return (0.02 * jax.random.normal(next(ks), shape)).astype(jnp.float32)

    zeros = lambda s: jnp.zeros(s, jnp.float32)
    ones = lambda s: jnp.ones(s, jnp.float32)

    # rows of `vecs` per layer: bq, bk, bv, bo, g1, be1, b2, g2, be2
    vec_template = jnp.concatenate([
        zeros((4, HIDDEN)),   # bq, bk, bv, bo
        ones((1, HIDDEN)),    # ln1 gamma
        zeros((1, HIDDEN)),   # ln1 beta
        zeros((1, HIDDEN)),   # ffn output bias (b2)
        ones((1, HIDDEN)),    # ln2 gamma
        zeros((1, HIDDEN)),   # ln2 beta
    ], axis=0)

    return {
        'word_emb': n((VOCAB, HIDDEN)),
        'pos_emb': n((MAX_POS, HIDDEN)),
        'type_emb': n((TYPE_VOCAB, HIDDEN)),
        'emb_ln': jnp.concatenate([ones((1, HIDDEN)), zeros((1, HIDDEN))], axis=0),
        # stacked per-layer weights (leading layer axis)
        'wqkvo': n((N_LAYERS, 4, HIDDEN, HIDDEN)),          # q, k, v, o
        'w1': n((N_LAYERS, HIDDEN, INTERMEDIATE)),
        'b1': zeros((N_LAYERS, 1, INTERMEDIATE)),
        'w2': n((N_LAYERS, INTERMEDIATE, HIDDEN)),
        'vecs': jnp.tile(vec_template[None], (N_LAYERS, 1, 1)),
        # head: torch Linear(4*H, 1), weight std=0.02
        'head_w': n((4 * HIDDEN, 1)),
        'head_b': zeros((1, 1)),
    }


# ----------------- forward -----------------
@jax.jit
def forward(params, ids, attention_mask, token_type_ids):
    B, S = ids.shape
    # Embedding gathers are glue (data-dependent gather; plain JAX).
    we = jnp.take(params['word_emb'], ids, axis=0)              # (B, S, H)
    te = jnp.take(params['type_emb'], token_type_ids, axis=0)   # (B, S, H)
    pe = params['pos_emb'][:S][None, :, :]                      # (1, S, H)
    emb = (we + te + pe).reshape(B * S, HIDDEN)                 # (B*S, H)

    mask_f = attention_mask.astype(jnp.float32)
    neg = ((1.0 - mask_f) * -10000.0)[:, None, :]               # (B, 1, S) additive

    kernel = functools.partial(fused_bert_kernel, B=B, S=S)

    const2 = lambda l: (0, 0)
    const3 = lambda l: (0, 0, 0)

    logits = pl.pallas_call(
        kernel,
        out_shape=jax.ShapeDtypeStruct((B, 1), jnp.float32),
        grid_spec=pltpu.PrefetchScalarGridSpec(
            num_scalar_prefetch=0,
            grid=(N_LAYERS,),
            in_specs=[
                pl.BlockSpec((B * S, HIDDEN), const2),                       # emb
                pl.BlockSpec((B, 1, S), const3),                             # additive mask
                pl.BlockSpec((2, HIDDEN), const2),                           # emb LN g/b
                pl.BlockSpec((4 * HIDDEN, 1), const2),                       # head w
                pl.BlockSpec((1, 1), const2),                                # head b
                pl.BlockSpec((1, 4, HIDDEN, HIDDEN), lambda l: (l, 0, 0, 0)),  # wq/wk/wv/wo
                pl.BlockSpec((1, HIDDEN, INTERMEDIATE), lambda l: (l, 0, 0)),  # w1
                pl.BlockSpec((1, 1, INTERMEDIATE), lambda l: (l, 0, 0)),       # b1
                pl.BlockSpec((1, INTERMEDIATE, HIDDEN), lambda l: (l, 0, 0)),  # w2
                pl.BlockSpec((1, 9, HIDDEN), lambda l: (l, 0, 0)),             # biases/LN
            ],
            out_specs=pl.BlockSpec((B, 1), const2),
            scratch_shapes=[
                pltpu.VMEM((B * S, HIDDEN), jnp.float32),        # resident hidden state
                pltpu.VMEM((N_LAYERS, B, HIDDEN), jnp.float32),  # per-layer CLS rows
            ],
        ),
        compiler_params=pltpu.CompilerParams(
            dimension_semantics=("arbitrary",)),
    )(emb, neg, params['emb_ln'], params['head_w'], params['head_b'],
      params['wqkvo'], params['w1'], params['b1'], params['w2'], params['vecs'])
    return logits


# ----------------- main -----------------
if __name__ == "__main__":
    key = jax.random.PRNGKey(0)
    pkey, ikey = jax.random.split(key)
    params = init_params(pkey)

    B, S = 2, 8
    ids = jax.random.randint(ikey, (B, S), 0, VOCAB, dtype=jnp.int32)
    attention_mask = jnp.array([[1] * S,
                                [1] * (S - 2) + [0, 0]], dtype=jnp.int32)
    token_type_ids = jnp.concatenate(
        [jnp.zeros((B, S // 2), jnp.int32), jnp.ones((B, S // 2), jnp.int32)],
        axis=1)

    logits = forward(params, ids, attention_mask, token_type_ids)
    jax.block_until_ready(logits)
    assert logits.shape == (B, 1) and logits.dtype == jnp.float32
    print("KERNEL_OK")
</pallas_src>

<mosaic_0001>
module attributes {stable_mosaic.version = 11 : i64} {
  func.func @fused_bert_kernel(%arg0: i32, %arg1: memref<16x32xf32, #tpu.memory_space<vmem>>, %arg2: memref<2x1x8xf32, #tpu.memory_space<vmem>>, %arg3: memref<2x32xf32, #tpu.memory_space<vmem>>, %arg4: memref<128x1xf32, #tpu.memory_space<vmem>>, %arg5: memref<1x1xf32, #tpu.memory_space<vmem>>, %arg6: memref<1x4x32x32xf32, #tpu.memory_space<vmem>>, %arg7: memref<1x32x128xf32, #tpu.memory_space<vmem>>, %arg8: memref<1x1x128xf32, #tpu.memory_space<vmem>>, %arg9: memref<1x128x32xf32, #tpu.memory_space<vmem>>, %arg10: memref<1x9x32xf32, #tpu.memory_space<vmem>>, %arg11: memref<2x1xf32, #tpu.memory_space<vmem>>, %arg12: memref<16x32xf32, #tpu.memory_space<vmem>>, %arg13: memref<4x2x32xf32, #tpu.memory_space<vmem>>) attributes {dimension_semantics = [#tpu.dimension_semantics<arbitrary>], iteration_bounds = array<i64: 4>, scalar_prefetch = 0 : i64, scratch_operands = 2 : i64, tpu.core_type = #tpu.core_type<tc>, window_params = [{pipeline_mode = #tpu.pipeline_mode<synchronous>, transform_indices = @transform_0, window_bounds = array<i64: 16, 32>}, {pipeline_mode = #tpu.pipeline_mode<synchronous>, transform_indices = @transform_1, window_bounds = array<i64: 2, 1, 8>}, {pipeline_mode = #tpu.pipeline_mode<synchronous>, transform_indices = @transform_2, window_bounds = array<i64: 2, 32>}, {pipeline_mode = #tpu.pipeline_mode<synchronous>, transform_indices = @transform_3, window_bounds = array<i64: 128, 1>}, {pipeline_mode = #tpu.pipeline_mode<synchronous>, transform_indices = @transform_4, window_bounds = array<i64: 1, 1>}, {transform_indices = @transform_5, window_bounds = array<i64: 1, 4, 32, 32>}, {transform_indices = @transform_6, window_bounds = array<i64: 1, 32, 128>}, {transform_indices = @transform_7, window_bounds = array<i64: 1, 1, 128>}, {transform_indices = @transform_8, window_bounds = array<i64: 1, 128, 32>}, {transform_indices = @transform_9, window_bounds = array<i64: 1, 9, 32>}, {pipeline_mode = #tpu.pipeline_mode<synchronous>, transform_indices = @transform_10, window_bounds = array<i64: 2, 1>}]} {
    %c0_i32 = arith.constant 0 : i32
    %0 = arith.cmpi eq, %arg0, %c0_i32 : i32
    %1 = arith.extui %0 : i1 to i32
    %c0_i32_0 = arith.constant 0 : i32
    %2 = arith.cmpi ne, %1, %c0_i32_0 : i32
    scf.if %2 {
      %c0_71 = arith.constant 0 : index
      %c0_72 = arith.constant 0 : index
      %193 = vector.load %arg1[%c0_71, %c0_72] : memref<16x32xf32, #tpu.memory_space<vmem>>, vector<16x32xf32>
      %c0_73 = arith.constant 0 : index
      %c0_74 = arith.constant 0 : index
      %194 = vector.load %arg3[%c0_73, %c0_74] : memref<2x32xf32, #tpu.memory_space<vmem>>, vector<1x32xf32>
      %c1_75 = arith.constant 1 : index
      %c0_76 = arith.constant 0 : index
      %195 = vector.load %arg3[%c1_75, %c0_76] : memref<2x32xf32, #tpu.memory_space<vmem>>, vector<1x32xf32>
      %cst_77 = arith.constant dense<0.000000e+00> : vector<16xf32>
      %196 = vector.multi_reduction <add>, %193, %cst_77 [1] : vector<16x32xf32> to vector<16xf32>
      %197 = vector.shape_cast %196 : vector<16xf32> to vector<16x1xf32>
      %cst_78 = arith.constant 3.200000e+01 : f32
      %198 = vector.broadcast %cst_78 : f32 to vector<16x1xf32>
      %199 = arith.divf %197, %198 : vector<16x1xf32>
      %200 = vector.broadcast %199 : vector<16x1xf32> to vector<16x32xf32>
      %201 = arith.subf %193, %200 : vector<16x32xf32>
      %202 = arith.mulf %201, %201 : vector<16x32xf32>
      %cst_79 = arith.constant dense<0.000000e+00> : vector<16xf32>
      %203 = vector.multi_reduction <add>, %202, %cst_79 [1] : vector<16x32xf32> to vector<16xf32>
      %204 = vector.shape_cast %203 : vector<16xf32> to vector<16x1xf32>
      %cst_80 = arith.constant 3.200000e+01 : f32
      %205 = vector.broadcast %cst_80 : f32 to vector<16x1xf32>
      %206 = arith.divf %204, %205 : vector<16x1xf32>
      %207 = vector.broadcast %199 : vector<16x1xf32> to vector<16x32xf32>
      %208 = arith.subf %193, %207 : vector<16x32xf32>
      %cst_81 = arith.constant 9.99999996E-13 : f32
      %209 = vector.broadcast %cst_81 : f32 to vector<16x1xf32>
      %210 = arith.addf %206, %209 : vector<16x1xf32>
      %211 = math.rsqrt %210 : vector<16x1xf32>
      %212 = vector.broadcast %211 : vector<16x1xf32> to vector<16x32xf32>
      %213 = arith.mulf %208, %212 : vector<16x32xf32>
      %214 = vector.broadcast %194 : vector<1x32xf32> to vector<16x32xf32>
      %215 = arith.mulf %213, %214 : vector<16x32xf32>
      %216 = vector.broadcast %195 : vector<1x32xf32> to vector<16x32xf32>
      %217 = arith.addf %215, %216 : vector<16x32xf32>
      %c0_82 = arith.constant 0 : index
      %c0_83 = arith.constant 0 : index
      %218 = vector.load %arg12[%c0_82, %c0_83] : memref<16x32xf32, #tpu.memory_space<vmem>>, vector<16x32xf32>
      tpu.vector_store %arg12[%c0_82, %c0_83], %217 {strides = array<i32>} : memref<16x32xf32, #tpu.memory_space<vmem>>, vector<16x32xf32>,
    } else {
    }
    %c0 = arith.constant 0 : index
    %c0_1 = arith.constant 0 : index
    %3 = vector.load %arg12[%c0, %c0_1] : memref<16x32xf32, #tpu.memory_space<vmem>>, vector<16x32xf32>
    %c0_2 = arith.constant 0 : index
    %c0_3 = arith.constant 0 : index
    %c0_4 = arith.constant 0 : index
    %c0_5 = arith.constant 0 : index
    %4 = vector.load %arg6[%c0_2, %c0_3, %c0_4, %c0_5] : memref<1x4x32x32xf32, #tpu.memory_space<vmem>>, vector<1x1x32x32xf32>
    %5 = vector.shape_cast %4 : vector<1x1x32x32xf32> to vector<32x32xf32>
    %c0_6 = arith.constant 0 : index
    %c1 = arith.constant 1 : index
    %c0_7 = arith.constant 0 : index
    %c0_8 = arith.constant 0 : index
    %6 = vector.load %arg6[%c0_6, %c1, %c0_7, %c0_8] : memref<1x4x32x32xf32, #tpu.memory_space<vmem>>, vector<1x1x32x32xf32>
    %7 = vector.shape_cast %6 : vector<1x1x32x32xf32> to vector<32x32xf32>
    %c0_9 = arith.constant 0 : index
    %c2 = arith.constant 2 : index
    %c0_10 = arith.constant 0 : index
    %c0_11 = arith.constant 0 : index
    %8 = vector.load %arg6[%c0_9, %c2, %c0_10, %c0_11] : memref<1x4x32x32xf32, #tpu.memory_space<vmem>>, vector<1x1x32x32xf32>
    %9 = vector.shape_cast %8 : vector<1x1x32x32xf32> to vector<32x32xf32>
    %c0_12 = arith.constant 0 : index
    %c3 = arith.constant 3 : index
    %c0_13 = arith.constant 0 : index
    %c0_14 = arith.constant 0 : index
    %10 = vector.load %arg6[%c0_12, %c3, %c0_13, %c0_14] : memref<1x4x32x32xf32, #tpu.memory_space<vmem>>, vector<1x1x32x32xf32>
    %11 = vector.shape_cast %10 : vector<1x1x32x32xf32> to vector<32x32xf32>
    %c0_15 = arith.constant 0 : index
    %c0_16 = arith.constant 0 : index
    %c0_17 = arith.constant 0 : index
    %12 = vector.load %arg10[%c0_15, %c0_16, %c0_17] : memref<1x9x32xf32, #tpu.memory_space<vmem>>, vector<1x9x32xf32>
    %13 = vector.shape_cast %12 : vector<1x9x32xf32> to vector<9x32xf32>
    %14 = vector.extract_strided_slice %13 {offsets = [0, 0], sizes = [1, 32], strides = [1, 1]} : vector<9x32xf32> to vector<1x32xf32>
    %15 = vector.extract_strided_slice %13 {offsets = [1, 0], sizes = [1, 32], strides = [1, 1]} : vector<9x32xf32> to vector<1x32xf32>
    %16 = vector.extract_strided_slice %13 {offsets = [2, 0], sizes = [1, 32], strides = [1, 1]} : vector<9x32xf32> to vector<1x32xf32>
    %17 = vector.extract_strided_slice %13 {offsets = [3, 0], sizes = [1, 32], strides = [1, 1]} : vector<9x32xf32> to vector<1x32xf32>
    %18 = vector.extract_strided_slice %13 {offsets = [4, 0], sizes = [1, 32], strides = [1, 1]} : vector<9x32xf32> to vector<1x32xf32>
    %19 = vector.extract_strided_slice %13 {offsets = [5, 0], sizes = [1, 32], strides = [1, 1]} : vector<9x32xf32> to vector<1x32xf32>
    %20 = vector.extract_strided_slice %13 {offsets = [6, 0], sizes = [1, 32], strides = [1, 1]} : vector<9x32xf32> to vector<1x32xf32>
    %21 = vector.extract_strided_slice %13 {offsets = [7, 0], sizes = [1, 32], strides = [1, 1]} : vector<9x32xf32> to vector<1x32xf32>
    %22 = vector.extract_strided_slice %13 {offsets = [8, 0], sizes = [1, 32], strides = [1, 1]} : vector<9x32xf32> to vector<1x32xf32>
    %c0_18 = arith.constant 0 : index
    %c0_19 = arith.constant 0 : index
    %c0_20 = arith.constant 0 : index
    %23 = vector.load %arg7[%c0_18, %c0_19, %c0_20] : memref<1x32x128xf32, #tpu.memory_space<vmem>>, vector<1x32x128xf32>
    %24 = vector.shape_cast %23 : vector<1x32x128xf32> to vector<32x128xf32>
    %c0_21 = arith.constant 0 : index
    %c0_22 = arith.constant 0 : index
    %c0_23 = arith.constant 0 : index
    %25 = vector.load %arg8[%c0_21, %c0_22, %c0_23] : memref<1x1x128xf32, #tpu.memory_space<vmem>>, vector<1x1x128xf32>
    %26 = vector.shape_cast %25 : vector<1x1x128xf32> to vector<1x128xf32>
    %c0_24 = arith.constant 0 : index
    %c0_25 = arith.constant 0 : index
    %c0_26 = arith.constant 0 : index
    %27 = vector.load %arg9[%c0_24, %c0_25, %c0_26] : memref<1x128x32xf32, #tpu.memory_space<vmem>>, vector<1x128x32xf32>
    %28 = vector.shape_cast %27 : vector<1x128x32xf32> to vector<128x32xf32>
    %cst = arith.constant dense<0.000000e+00> : vector<16x32xf32>
    %29 = tpu.matmul %3, %5, %cst {dimension_numbers = #tpu.dot_dimension_numbers<[1], [0], [0], [1], [0, 0, 1, 1], [], []>} : vector<16x32xf32>, vector<32x32xf32>, vector<16x32xf32> -> vector<16x32xf32>
    %30 = vector.broadcast %14 : vector<1x32xf32> to vector<16x32xf32>
    %31 = arith.addf %29, %30 : vector<16x32xf32>
    %cst_27 = arith.constant 0.353553385 : f32
    %32 = vector.broadcast %cst_27 : f32 to vector<16x32xf32>
    %33 = arith.mulf %31, %32 : vector<16x32xf32>
    %cst_28 = arith.constant dense<0.000000e+00> : vector<16x32xf32>
    %34 = tpu.matmul %3, %7, %cst_28 {dimension_numbers = #tpu.dot_dimension_numbers<[1], [0], [0], [1], [0, 0, 1, 1], [], []>} : vector<16x32xf32>, vector<32x32xf32>, vector<16x32xf32> -> vector<16x32xf32>
    %35 = vector.broadcast %15 : vector<1x32xf32> to vector<16x32xf32>
    %36 = arith.addf %34, %35 : vector<16x32xf32>
    %cst_29 = arith.constant dense<0.000000e+00> : vector<16x32xf32>
    %37 = tpu.matmul %3, %9, %cst_29 {dimension_numbers = #tpu.dot_dimension_numbers<[1], [0], [0], [1], [0, 0, 1, 1], [], []>} : vector<16x32xf32>, vector<32x32xf32>, vector<16x32xf32> -> vector<16x32xf32>
    %38 = vector.broadcast %16 : vector<1x32xf32> to vector<16x32xf32>
    %39 = arith.addf %37, %38 : vector<16x32xf32>
    %40 = vector.shape_cast %33 : vector<16x32xf32> to vector<2x8x32xf32>
    %41 = vector.shape_cast %36 : vector<16x32xf32> to vector<2x8x32xf32>
    %42 = vector.shape_cast %39 : vector<16x32xf32> to vector<2x8x32xf32>
    %c0_30 = arith.constant 0 : index
    %c0_31 = arith.constant 0 : index
    %c0_32 = arith.constant 0 : index
    %43 = vector.load %arg2[%c0_30, %c0_31, %c0_32] : memref<2x1x8xf32, #tpu.memory_space<vmem>>, vector<2x1x8xf32>
    %44 = vector.extract_strided_slice %40 {offsets = [0, 0, 0], sizes = [2, 8, 8], strides = [1, 1, 1]} : vector<2x8x32xf32> to vector<2x8x8xf32>
    %45 = vector.extract_strided_slice %41 {offsets = [0, 0, 0], sizes = [2, 8, 8], strides = [1, 1, 1]} : vector<2x8x32xf32> to vector<2x8x8xf32>
    %46 = vector.extract_strided_slice %42 {offsets = [0, 0, 0], sizes = [2, 8, 8], strides = [1, 1, 1]} : vector<2x8x32xf32> to vector<2x8x8xf32>
    "tpu.trace_start"() <{level = 10 : i32, message = "bqd,bkd->bqk"}> : () -> ()
    %cst_33 = arith.constant dense<0.000000e+00> : vector<2x8x8xf32>
    %47 = tpu.matmul %44, %45, %cst_33 {dimension_numbers = #tpu.dot_dimension_numbers<[2], [2], [1], [1], [0, 0, 0, 1, 1, 1], [0], [0]>} : vector<2x8x8xf32>, vector<2x8x8xf32>, vector<2x8x8xf32> -> vector<2x8x8xf32>
    "tpu.trace_stop"() : () -> ()
    %48 = vector.broadcast %43 : vector<2x1x8xf32> to vector<2x8x8xf32>
    %49 = arith.addf %47, %48 : vector<2x8x8xf32>
    %cst_34 = arith.constant dense<0xFF800000> : vector<2x8xf32>
    %50 = vector.multi_reduction <maximumf>, %49, %cst_34 [2] : vector<2x8x8xf32> to vector<2x8xf32>
    %51 = vector.shape_cast %50 : vector<2x8xf32> to vector<2x8x1xf32>
    %52 = vector.broadcast %51 : vector<2x8x1xf32> to vector<2x8x8xf32>
    %53 = arith.subf %49, %52 : vector<2x8x8xf32>
    %54 = math.exp %53 : vector<2x8x8xf32>
    %cst_35 = arith.constant dense<0.000000e+00> : vector<2x8xf32>
    %55 = vector.multi_reduction <add>, %54, %cst_35 [2] : vector<2x8x8xf32> to vector<2x8xf32>
    %56 = vector.shape_cast %55 : vector<2x8xf32> to vector<2x8x1xf32>
    %57 = tpu.reciprocal %56 {approx = true} : vector<2x8x1xf32> -> vector<2x8x1xf32>
    %58 = vector.broadcast %57 : vector<2x8x1xf32> to vector<2x8x8xf32>
    %59 = arith.mulf %54, %58 : vector<2x8x8xf32>
    "tpu.trace_start"() <{level = 10 : i32, message = "bqk,bkd->bqd"}> : () -> ()
    %cst_36 = arith.constant dense<0.000000e+00> : vector<2x8x8xf32>
    %60 = tpu.matmul %59, %46, %cst_36 {dimension_numbers = #tpu.dot_dimension_numbers<[2], [1], [1], [2], [0, 0, 0, 1, 1, 2], [0], [0]>} : vector<2x8x8xf32>, vector<2x8x8xf32>, vector<2x8x8xf32> -> vector<2x8x8xf32>
    "tpu.trace_stop"() : () -> ()
    %61 = vector.extract_strided_slice %40 {offsets = [0, 0, 8], sizes = [2, 8, 8], strides = [1, 1, 1]} : vector<2x8x32xf32> to vector<2x8x8xf32>
    %62 = vector.extract_strided_slice %41 {offsets = [0, 0, 8], sizes = [2, 8, 8], strides = [1, 1, 1]} : vector<2x8x32xf32> to vector<2x8x8xf32>
    %63 = vector.extract_strided_slice %42 {offsets = [0, 0, 8], sizes = [2, 8, 8], strides = [1, 1, 1]} : vector<2x8x32xf32> to vector<2x8x8xf32>
    "tpu.trace_start"() <{level = 10 : i32, message = "bqd,bkd->bqk"}> : () -> ()
    %cst_37 = arith.constant dense<0.000000e+00> : vector<2x8x8xf32>
    %64 = tpu.matmul %61, %62, %cst_37 {dimension_numbers = #tpu.dot_dimension_numbers<[2], [2], [1], [1], [0, 0, 0, 1, 1, 1], [0], [0]>} : vector<2x8x8xf32>, vector<2x8x8xf32>, vector<2x8x8xf32> -> vector<2x8x8xf32>
    "tpu.trace_stop"() : () -> ()
    %65 = vector.broadcast %43 : vector<2x1x8xf32> to vector<2x8x8xf32>
    %66 = arith.addf %64, %65 : vector<2x8x8xf32>
    %cst_38 = arith.constant dense<0xFF800000> : vector<2x8xf32>
    %67 = vector.multi_reduction <maximumf>, %66, %cst_38 [2] : vector<2x8x8xf32> to vector<2x8xf32>
    %68 = vector.shape_cast %67 : vector<2x8xf32> to vector<2x8x1xf32>
    %69 = vector.broadcast %68 : vector<2x8x1xf32> to vector<2x8x8xf32>
    %70 = arith.subf %66, %69 : vector<2x8x8xf32>
    %71 = math.exp %70 : vector<2x8x8xf32>
    %cst_39 = arith.constant dense<0.000000e+00> : vector<2x8xf32>
    %72 = vector.multi_reduction <add>, %71, %cst_39 [2] : vector<2x8x8xf32> to vector<2x8xf32>
    %73 = vector.shape_cast %72 : vector<2x8xf32> to vector<2x8x1xf32>
    %74 = tpu.reciprocal %73 {approx = true} : vector<2x8x1xf32> -> vector<2x8x1xf32>
    %75 = vector.broadcast %74 : vector<2x8x1xf32> to vector<2x8x8xf32>
    %76 = arith.mulf %71, %75 : vector<2x8x8xf32>
    "tpu.trace_start"() <{level = 10 : i32, message = "bqk,bkd->bqd"}> : () -> ()
    %cst_40 = arith.constant dense<0.000000e+00> : vector<2x8x8xf32>
    %77 = tpu.matmul %76, %63, %cst_40 {dimension_numbers = #tpu.dot_dimension_numbers<[2], [1], [1], [2], [0, 0, 0, 1, 1, 2], [0], [0]>} : vector<2x8x8xf32>, vector<2x8x8xf32>, vector<2x8x8xf32> -> vector<2x8x8xf32>
    "tpu.trace_stop"() : () -> ()
    %78 = vector.extract_strided_slice %40 {offsets = [0, 0, 16], sizes = [2, 8, 8], strides = [1, 1, 1]} : vector<2x8x32xf32> to vector<2x8x8xf32>
    %79 = vector.extract_strided_slice %41 {offsets = [0, 0, 16], sizes = [2, 8, 8], strides = [1, 1, 1]} : vector<2x8x32xf32> to vector<2x8x8xf32>
    %80 = vector.extract_strided_slice %42 {offsets = [0, 0, 16], sizes = [2, 8, 8], strides = [1, 1, 1]} : vector<2x8x32xf32> to vector<2x8x8xf32>
    "tpu.trace_start"() <{level = 10 : i32, message = "bqd,bkd->bqk"}> : () -> ()
    %cst_41 = arith.constant dense<0.000000e+00> : vector<2x8x8xf32>
    %81 = tpu.matmul %78, %79, %cst_41 {dimension_numbers = #tpu.dot_dimension_numbers<[2], [2], [1], [1], [0, 0, 0, 1, 1, 1], [0], [0]>} : vector<2x8x8xf32>, vector<2x8x8xf32>, vector<2x8x8xf32> -> vector<2x8x8xf32>
    "tpu.trace_stop"() : () -> ()
    %82 = vector.broadcast %43 : vector<2x1x8xf32> to vector<2x8x8xf32>
    %83 = arith.addf %81, %82 : vector<2x8x8xf32>
    %cst_42 = arith.constant dense<0xFF800000> : vector<2x8xf32>
    %84 = vector.multi_reduction <maximumf>, %83, %cst_42 [2] : vector<2x8x8xf32> to vector<2x8xf32>
    %85 = vector.shape_cast %84 : vector<2x8xf32> to vector<2x8x1xf32>
    %86 = vector.broadcast %85 : vector<2x8x1xf32> to vector<2x8x8xf32>
    %87 = arith.subf %83, %86 : vector<2x8x8xf32>
    %88 = math.exp %87 : vector<2x8x8xf32>
    %cst_43 = arith.constant dense<0.000000e+00> : vector<2x8xf32>
    %89 = vector.multi_reduction <add>, %88, %cst_43 [2] : vector<2x8x8xf32> to vector<2x8xf32>
    %90 = vector.shape_cast %89 : vector<2x8xf32> to vector<2x8x1xf32>
    %91 = tpu.reciprocal %90 {approx = true} : vector<2x8x1xf32> -> vector<2x8x1xf32>
    %92 = vector.broadcast %91 : vector<2x8x1xf32> to vector<2x8x8xf32>
    %93 = arith.mulf %88, %92 : vector<2x8x8xf32>
    "tpu.trace_start"() <{level = 10 : i32, message = "bqk,bkd->bqd"}> : () -> ()
    %cst_44 = arith.constant dense<0.000000e+00> : vector<2x8x8xf32>
    %94 = tpu.matmul %93, %80, %cst_44 {dimension_numbers = #tpu.dot_dimension_numbers<[2], [1], [1], [2], [0, 0, 0, 1, 1, 2], [0], [0]>} : vector<2x8x8xf32>, vector<2x8x8xf32>, vector<2x8x8xf32> -> vector<2x8x8xf32>
    "tpu.trace_stop"() : () -> ()
    %95 = vector.extract_strided_slice %40 {offsets = [0, 0, 24], sizes = [2, 8, 8], strides = [1, 1, 1]} : vector<2x8x32xf32> to vector<2x8x8xf32>
    %96 = vector.extract_strided_slice %41 {offsets = [0, 0, 24], sizes = [2, 8, 8], strides = [1, 1, 1]} : vector<2x8x32xf32> to vector<2x8x8xf32>
    %97 = vector.extract_strided_slice %42 {offsets = [0, 0, 24], sizes = [2, 8, 8], strides = [1, 1, 1]} : vector<2x8x32xf32> to vector<2x8x8xf32>
    "tpu.trace_start"() <{level = 10 : i32, message = "bqd,bkd->bqk"}> : () -> ()
    %cst_45 = arith.constant dense<0.000000e+00> : vector<2x8x8xf32>
    %98 = tpu.matmul %95, %96, %cst_45 {dimension_numbers = #tpu.dot_dimension_numbers<[2], [2], [1], [1], [0, 0, 0, 1, 1, 1], [0], [0]>} : vector<2x8x8xf32>, vector<2x8x8xf32>, vector<2x8x8xf32> -> vector<2x8x8xf32>
    "tpu.trace_stop"() : () -> ()
    %99 = vector.broadcast %43 : vector<2x1x8xf32> to vector<2x8x8xf32>
    %100 = arith.addf %98, %99 : vector<2x8x8xf32>
    %cst_46 = arith.constant dense<0xFF800000> : vector<2x8xf32>
    %101 = vector.multi_reduction <maximumf>, %100, %cst_46 [2] : vector<2x8x8xf32> to vector<2x8xf32>
    %102 = vector.shape_cast %101 : vector<2x8xf32> to vector<2x8x1xf32>
    %103 = vector.broadcast %102 : vector<2x8x1xf32> to vector<2x8x8xf32>
    %104 = arith.subf %100, %103 : vector<2x8x8xf32>
    %105 = math.exp %104 : vector<2x8x8xf32>
    %cst_47 = arith.constant dense<0.000000e+00> : vector<2x8xf32>
    %106 = vector.multi_reduction <add>, %105, %cst_47 [2] : vector<2x8x8xf32> to vector<2x8xf32>
    %107 = vector.shape_cast %106 : vector<2x8xf32> to vector<2x8x1xf32>
    %108 = tpu.reciprocal %107 {approx = true} : vector<2x8x1xf32> -> vector<2x8x1xf32>
    %109 = vector.broadcast %108 : vector<2x8x1xf32> to vector<2x8x8xf32>
    %110 = arith.mulf %105, %109 : vector<2x8x8xf32>
    "tpu.trace_start"() <{level = 10 : i32, message = "bqk,bkd->bqd"}> : () -> ()
    %cst_48 = arith.constant dense<0.000000e+00> : vector<2x8x8xf32>
    %111 = tpu.matmul %110, %97, %cst_48 {dimension_numbers = #tpu.dot_dimension_numbers<[2], [1], [1], [2], [0, 0, 0, 1, 1, 2], [0], [0]>} : vector<2x8x8xf32>, vector<2x8x8xf32>, vector<2x8x8xf32> -> vector<2x8x8xf32>
    "tpu.trace_stop"() : () -> ()
    %112 = tpu.concatenate %60, %77, %94, %111 in 2 : vector<2x8x8xf32>, vector<2x8x8xf32>, vector<2x8x8xf32>, vector<2x8x8xf32> -> vector<2x8x32xf32>
    %113 = vector.shape_cast %112 : vector<2x8x32xf32> to vector<16x32xf32>
    %cst_49 = arith.constant dense<0.000000e+00> : vector<16x32xf32>
    %114 = tpu.matmul %113, %11, %cst_49 {dimension_numbers = #tpu.dot_dimension_numbers<[1], [0], [0], [1], [0, 0, 1, 1], [], []>} : vector<16x32xf32>, vector<32x32xf32>, vector<16x32xf32> -> vector<16x32xf32>
    %115 = vector.broadcast %17 : vector<1x32xf32> to vector<16x32xf32>
    %116 = arith.addf %114, %115 : vector<16x32xf32>
    %117 = arith.addf %3, %116 : vector<16x32xf32>
    %cst_50 = arith.constant dense<0.000000e+00> : vector<16xf32>
    %118 = vector.multi_reduction <add>, %117, %cst_50 [1] : vector<16x32xf32> to vector<16xf32>
    %119 = vector.shape_cast %118 : vector<16xf32> to vector<16x1xf32>
    %cst_51 = arith.constant 3.200000e+01 : f32
    %120 = vector.broadcast %cst_51 : f32 to vector<16x1xf32>
    %121 = arith.divf %119, %120 : vector<16x1xf32>
    %122 = vector.broadcast %121 : vector<16x1xf32> to vector<16x32xf32>
    %123 = arith.subf %117, %122 : vector<16x32xf32>
    %124 = arith.mulf %123, %123 : vector<16x32xf32>
    %cst_52 = arith.constant dense<0.000000e+00> : vector<16xf32>
    %125 = vector.multi_reduction <add>, %124, %cst_52 [1] : vector<16x32xf32> to vector<16xf32>
    %126 = vector.shape_cast %125 : vector<16xf32> to vector<16x1xf32>
    %cst_53 = arith.constant 3.200000e+01 : f32
    %127 = vector.broadcast %cst_53 : f32 to vector<16x1xf32>
    %128 = arith.divf %126, %127 : vector<16x1xf32>
    %129 = vector.broadcast %121 : vector<16x1xf32> to vector<16x32xf32>
    %130 = arith.subf %117, %129 : vector<16x32xf32>
    %cst_54 = arith.constant 9.99999996E-13 : f32
    %131 = vector.broadcast %cst_54 : f32 to vector<16x1xf32>
    %132 = arith.addf %128, %131 : vector<16x1xf32>
    %133 = math.rsqrt %132 : vector<16x1xf32>
    %134 = vector.broadcast %133 : vector<16x1xf32> to vector<16x32xf32>
    %135 = arith.mulf %130, %134 : vector<16x32xf32>
    %136 = vector.broadcast %18 : vector<1x32xf32> to vector<16x32xf32>
    %137 = arith.mulf %135, %136 : vector<16x32xf32>
    %138 = vector.broadcast %19 : vector<1x32xf32> to vector<16x32xf32>
    %139 = arith.addf %137, %138 : vector<16x32xf32>
    %cst_55 = arith.constant dense<0.000000e+00> : vector<16x128xf32>
    %140 = tpu.matmul %139, %24, %cst_55 {dimension_numbers = #tpu.dot_dimension_numbers<[1], [0], [0], [1], [0, 0, 1, 1], [], []>} : vector<16x32xf32>, vector<32x128xf32>, vector<16x128xf32> -> vector<16x128xf32>
    %141 = vector.broadcast %26 : vector<1x128xf32> to vector<16x128xf32>
    %142 = arith.addf %140, %141 : vector<16x128xf32>
    %cst_56 = arith.constant 5.000000e-01 : f32
    %143 = vector.broadcast %cst_56 : f32 to vector<16x128xf32>
    %144 = arith.mulf %143, %142 : vector<16x128xf32>
    %cst_57 = arith.constant 4.471500e-02 : f32
    %145 = vector.broadcast %cst_57 : f32 to vector<16x128xf32>
    %146 = arith.mulf %145, %142 : vector<16x128xf32>
    %147 = arith.mulf %146, %142 : vector<16x128xf32>
    %148 = arith.mulf %147, %142 : vector<16x128xf32>
    %149 = arith.addf %142, %148 : vector<16x128xf32>
    %cst_58 = arith.constant 0.797884583 : f32
    %150 = vector.broadcast %cst_58 : f32 to vector<16x128xf32>
    %151 = arith.mulf %150, %149 : vector<16x128xf32>
    %152 = math.tanh %151 : vector<16x128xf32>
    %cst_59 = arith.constant 1.000000e+00 : f32
    %153 = vector.broadcast %cst_59 : f32 to vector<16x128xf32>
    %154 = arith.addf %153, %152 : vector<16x128xf32>
    %155 = arith.mulf %144, %154 : vector<16x128xf32>
    %cst_60 = arith.constant dense<0.000000e+00> : vector<16x32xf32>
    %156 = tpu.matmul %155, %28, %cst_60 {dimension_numbers = #tpu.dot_dimension_numbers<[1], [0], [0], [1], [0, 0, 1, 1], [], []>} : vector<16x128xf32>, vector<128x32xf32>, vector<16x32xf32> -> vector<16x32xf32>
    %157 = vector.broadcast %20 : vector<1x32xf32> to vector<16x32xf32>
    %158 = arith.addf %156, %157 : vector<16x32xf32>
    %159 = arith.addf %139, %158 : vector<16x32xf32>
    %cst_61 = arith.constant dense<0.000000e+00> : vector<16xf32>
    %160 = vector.multi_reduction <add>, %159, %cst_61 [1] : vector<16x32xf32> to vector<16xf32>
    %161 = vector.shape_cast %160 : vector<16xf32> to vector<16x1xf32>
    %cst_62 = arith.constant 3.200000e+01 : f32
    %162 = vector.broadcast %cst_62 : f32 to vector<16x1xf32>
    %163 = arith.divf %161, %162 : vector<16x1xf32>
    %164 = vector.broadcast %163 : vector<16x1xf32> to vector<16x32xf32>
    %165 = arith.subf %159, %164 : vector<16x32xf32>
    %166 = arith.mulf %165, %165 : vector<16x32xf32>
    %cst_63 = arith.constant dense<0.000000e+00> : vector<16xf32>
    %167 = vector.multi_reduction <add>, %166, %cst_63 [1] : vector<16x32xf32> to vector<16xf32>
    %168 = vector.shape_cast %167 : vector<16xf32> to vector<16x1xf32>
    %cst_64 = arith.constant 3.200000e+01 : f32
    %169 = vector.broadcast %cst_64 : f32 to vector<16x1xf32>
    %170 = arith.divf %168, %169 : vector<16x1xf32>
    %171 = vector.broadcast %163 : vector<16x1xf32> to vector<16x32xf32>
    %172 = arith.subf %159, %171 : vector<16x32xf32>
    %cst_65 = arith.constant 9.99999996E-13 : f32
    %173 = vector.broadcast %cst_65 : f32 to vector<16x1xf32>
    %174 = arith.addf %170, %173 : vector<16x1xf32>
    %175 = math.rsqrt %174 : vector<16x1xf32>
    %176 = vector.broadcast %175 : vector<16x1xf32> to vector<16x32xf32>
    %177 = arith.mulf %172, %176 : vector<16x32xf32>
    %178 = vector.broadcast %21 : vector<1x32xf32> to vector<16x32xf32>
    %179 = arith.mulf %177, %178 : vector<16x32xf32>
    %180 = vector.broadcast %22 : vector<1x32xf32> to vector<16x32xf32>
    %181 = arith.addf %179, %180 : vector<16x32xf32>
    %c0_66 = arith.constant 0 : index
    %c0_67 = arith.constant 0 : index
    %182 = vector.load %arg12[%c0_66, %c0_67] : memref<16x32xf32, #tpu.memory_space<vmem>>, vector<16x32xf32>
    tpu.vector_store %arg12[%c0_66, %c0_67], %181 {strides = array<i32>} : memref<16x32xf32, #tpu.memory_space<vmem>>, vector<16x32xf32>,
    %183 = vector.shape_cast %181 : vector<16x32xf32> to vector<2x8x32xf32>
    %184 = vector.extract_strided_slice %183 {offsets = [0, 0, 0], sizes = [2, 1, 32], strides = [1, 1, 1]} : vector<2x8x32xf32> to vector<2x1x32xf32>
    %185 = vector.shape_cast %184 : vector<2x1x32xf32> to vector<2x32xf32>
    %186 = arith.index_cast %arg0 : i32 to index
    %c0_68 = arith.constant 0 : index
    %c0_69 = arith.constant 0 : index
    %187 = vector.load %arg13[%186, %c0_68, %c0_69] : memref<4x2x32xf32, #tpu.memory_space<vmem>>, vector<1x2x32xf32>
    %188 = vector.shape_cast %187 : vector<1x2x32xf32> to vector<2x32xf32>
    %189 = vector.shape_cast %185 : vector<2x32xf32> to vector<1x2x32xf32>
    tpu.vector_store %arg13[%186, %c0_68, %c0_69], %189 {strides = array<i32>} : memref<4x2x32xf32, #tpu.memory_space<vmem>>, vector<1x2x32xf32>,
    %c3_i32 = arith.constant 3 : i32
    %190 = arith.cmpi eq, %arg0, %c3_i32 : i32
    %191 = arith.extui %190 : i1 to i32
    %c0_i32_70 = arith.constant 0 : i32
    %192 = arith.cmpi ne, %191, %c0_i32_70 : i32
    scf.if %192 {
      %c2_71 = arith.constant 2 : index
      %c0_72 = arith.constant 0 : index
      %c0_73 = arith.constant 0 : index
      %193 = vector.load %arg13[%c2_71, %c0_72, %c0_73] : memref<4x2x32xf32, #tpu.memory_space<vmem>>, vector<1x2x32xf32>
      %194 = vector.shape_cast %193 : vector<1x2x32xf32> to vector<2x32xf32>
      %c1_74 = arith.constant 1 : index
      %c0_75 = arith.constant 0 : index
      %c0_76 = arith.constant 0 : index
      %195 = vector.load %arg13[%c1_74, %c0_75, %c0_76] : memref<4x2x32xf32, #tpu.memory_space<vmem>>, vector<1x2x32xf32>
      %196 = vector.shape_cast %195 : vector<1x2x32xf32> to vector<2x32xf32>
      %c0_77 = arith.constant 0 : index
      %c0_78 = arith.constant 0 : index
      %c0_79 = arith.constant 0 : index
      %197 = vector.load %arg13[%c0_77, %c0_78, %c0_79] : memref<4x2x32xf32, #tpu.memory_space<vmem>>, vector<1x2x32xf32>
      %198 = vector.shape_cast %197 : vector<1x2x32xf32> to vector<2x32xf32>
      %199 = tpu.concatenate %185, %194, %196, %198 in 1 : vector<2x32xf32>, vector<2x32xf32>, vector<2x32xf32>, vector<2x32xf32> -> vector<2x128xf32>
      %c0_80 = arith.constant 0 : index
      %c0_81 = arith.constant 0 : index
      %200 = vector.load %arg4[%c0_80, %c0_81] : memref<128x1xf32, #tpu.memory_space<vmem>>, vector<128x1xf32>
      %cst_82 = arith.constant dense<0.000000e+00> : vector<2x1xf32>
      %201 = tpu.matmul %199, %200, %cst_82 {dimension_numbers = #tpu.dot_dimension_numbers<[1], [0], [0], [1], [0, 0, 1, 1], [], []>} : vector<2x128xf32>, vector<128x1xf32>, vector<2x1xf32> -> vector<2x1xf32>
      %c0_83 = arith.constant 0 : index
      %c0_84 = arith.constant 0 : index
      %202 = vector.load %arg5[%c0_83, %c0_84] : memref<1x1xf32, #tpu.memory_space<vmem>>, vector<1x1xf32>
      %203 = vector.broadcast %202 : vector<1x1xf32> to vector<2x1xf32>
      %204 = arith.addf %201, %203 : vector<2x1xf32>
      %c0_85 = arith.constant 0 : index
      %c0_86 = arith.constant 0 : index
      %205 = vector.load %arg11[%c0_85, %c0_86] : memref<2x1xf32, #tpu.memory_space<vmem>>, vector<2x1xf32>
      tpu.vector_store %arg11[%c0_85, %c0_86], %204 {strides = array<i32>} : memref<2x1xf32, #tpu.memory_space<vmem>>, vector<2x1xf32>,
    } else {
    }
    return
  }
  func.func @transform_0(%arg0: i32) -> (i32, i32) {
    %c0_i32 = arith.constant 0 : i32
    %c0_i32_0 = arith.constant 0 : i32
    %c0_i32_1 = arith.constant 0 : i32
    return %c0_i32, %c0_i32_0 : i32, i32
  }
  func.func @transform_1(%arg0: i32) -> (i32, i32, i32) {
    %c0_i32 = arith.constant 0 : i32
    %c0_i32_0 = arith.constant 0 : i32
    %c0_i32_1 = arith.constant 0 : i32
    %c0_i32_2 = arith.constant 0 : i32
    return %c0_i32, %c0_i32_0, %c0_i32_1 : i32, i32, i32
  }
  func.func @transform_2(%arg0: i32) -> (i32, i32) {
    %c0_i32 = arith.constant 0 : i32
    %c0_i32_0 = arith.constant 0 : i32
    %c0_i32_1 = arith.constant 0 : i32
    return %c0_i32, %c0_i32_0 : i32, i32
  }
  func.func @transform_3(%arg0: i32) -> (i32, i32) {
    %c0_i32 = arith.constant 0 : i32
    %c0_i32_0 = arith.constant 0 : i32
    %c0_i32_1 = arith.constant 0 : i32
    return %c0_i32, %c0_i32_0 : i32, i32
  }
  func.func @transform_4(%arg0: i32) -> (i32, i32) {
    %c0_i32 = arith.constant 0 : i32
    %c0_i32_0 = arith.constant 0 : i32
    %c0_i32_1 = arith.constant 0 : i32
    return %c0_i32, %c0_i32_0 : i32, i32
  }
  func.func @transform_5(%arg0: i32) -> (i32, i32, i32, i32) {
    %c0_i32 = arith.constant 0 : i32
    %c0_i32_0 = arith.constant 0 : i32
    %c0_i32_1 = arith.constant 0 : i32
    %c0_i32_2 = arith.constant 0 : i32
    return %arg0, %c0_i32, %c0_i32_0, %c0_i32_1 : i32, i32, i32, i32
  }
  func.func @transform_6(%arg0: i32) -> (i32, i32, i32) {
    %c0_i32 = arith.constant 0 : i32
    %c0_i32_0 = arith.constant 0 : i32
    %c0_i32_1 = arith.constant 0 : i32
    return %arg0, %c0_i32, %c0_i32_0 : i32, i32, i32
  }
  func.func @transform_7(%arg0: i32) -> (i32, i32, i32) {
    %c0_i32 = arith.constant 0 : i32
    %c0_i32_0 = arith.constant 0 : i32
    %c0_i32_1 = arith.constant 0 : i32
    return %arg0, %c0_i32, %c0_i32_0 : i32, i32, i32
  }
  func.func @transform_8(%arg0: i32) -> (i32, i32, i32) {
    %c0_i32 = arith.constant 0 : i32
    %c0_i32_0 = arith.constant 0 : i32
    %c0_i32_1 = arith.constant 0 : i32
    return %arg0, %c0_i32, %c0_i32_0 : i32, i32, i32
  }
  func.func @transform_9(%arg0: i32) -> (i32, i32, i32) {
    %c0_i32 = arith.constant 0 : i32
    %c0_i32_0 = arith.constant 0 : i32
    %c0_i32_1 = arith.constant 0 : i32
    return %arg0, %c0_i32, %c0_i32_0 : i32, i32, i32
  }
  func.func @transform_10(%arg0: i32) -> (i32, i32) {
    %c0_i32 = arith.constant 0 : i32
    %c0_i32_0 = arith.constant 0 : i32
    %c0_i32_1 = arith.constant 0 : i32
    return %c0_i32, %c0_i32_0 : i32, i32
  }
}

</mosaic_0001>

<llo_original>
// kernel: forward.1
$region0: #{forward.1}
  #allocation0 [shape = 'u32[]', space=smem, size = 0x4, offset = 0x4, fixed_abs, tag = 'smem constant byte address 0x4 - core index']
  #allocation1 [shape = 'u32[144,128]{1,0:T(1,128)}', space=vmem, size = 0x12000, scoped, tag = 'internal scratch']
  #allocation2 [shape = 'f32[16,32]{1,0:T(8,128)}', space=vmem, size = 0x2000, scoped, tag = 'scratch operand']
  #allocation3 [shape = 'f32[4,2,32]{2,1,0:T(2,128)}', space=vmem, size = 0x1000, scoped, tag = 'scratch operand']
  #allocation4 [shape = 'f32[1,1]{1,0:T(1,128)S(1)}', space=vmem, size = 0x200, scoped, tag = 'scoped memory for forward.1']
  %s0 = inlined_call_operand.vmem [shape: f32[16,32], index: 0, kind: input, shape index: {}]
  %s1 = inlined_call_operand.vmem [shape: f32[2,1,8], index: 1, kind: input, shape index: {}]
  %s2 = inlined_call_operand.vmem [shape: f32[2,32], index: 2, kind: input, shape index: {}]
  %s3 = inlined_call_operand.vmem [shape: f32[128,1], index: 3, kind: input, shape index: {}]
  %s4 = inlined_call_operand.<no memory space> [shape: f32[1,1], index: 4, kind: input, shape index: {}]
  %s5 = inlined_call_operand.vmem [shape: f32[4,4,32,32], index: 5, kind: input, shape index: {}]
  %s6 = inlined_call_operand.vmem [shape: f32[4,32,128], index: 6, kind: input, shape index: {}]
  %s7 = inlined_call_operand.vmem [shape: f32[4,1,128], index: 7, kind: input, shape index: {}]
  %s8 = inlined_call_operand.vmem [shape: f32[4,128,32], index: 8, kind: input, shape index: {}]
  %s9 = inlined_call_operand.vmem [shape: f32[4,9,32], index: 9, kind: input, shape index: {}]
  %s10 = inlined_call_operand.vmem [shape: f32[2,1], index: 10, kind: output, shape index: {}]
  %s11 = sld [smem:[#allocation0]]
  $region81: #{forward.1} parent=0
    _
  %s13 = ssub.s32 1, %s11
  %s14 = scalar_select 0, %s13, %s11
  %v15 = vstv %s4
  %16 = vst [vmem:[#allocation4] sm:$0x1] %v15
  loop: start=0, step=1, limit=6
  $region2: #{forward.1} parent=0 // loop_pre_header
    _
  $region3: #{forward.1} parent=0 // loop_header
    %s18 = sphi 0, %s22
    %p19 = scmp.ge.s32.totalorder %s18, 6
    %s26 = sphi 0, %s26
    %s28 = sphi 0, %s26
    %s29 = sphi 0, %s28
    %s43 = sphi 0, %s29
    %s47 = sphi 0, %s47
    %s49 = sphi 0, %s47
    %s50 = sphi 0, %s49
    %s64 = sphi 0, %s50
    %s68 = sphi 0, %s68
    %s70 = sphi 0, %s68
    %s71 = sphi 0, %s70
    %s85 = sphi 0, %s71
    %s89 = sphi 0, %s89
    %s91 = sphi 0, %s89
    %s92 = sphi 0, %s91
    %s106 = sphi 0, %s92
    %s110 = sphi 0, %s110
    %s112 = sphi 0, %s110
    %s113 = sphi 0, %s112
    %s127 = sphi 0, %s113
    %s133 = sphi 0, %s135
    %s136 = sphi 0, %s133
    %s137 = sphi 0, %s136
    %s153 = sphi 0, %s137
    %s159 = sphi 0, %s161
    %s162 = sphi 0, %s159
    %s163 = sphi 0, %s162
    %s179 = sphi 0, %s163
    %s185 = sphi 0, %s187
    %s188 = sphi 0, %s185
    %s189 = sphi 0, %s188
    %s205 = sphi 0, %s189
    %s211 = sphi 0, %s213
    %s214 = sphi 0, %s211
    %s215 = sphi 0, %s214
    %s231 = sphi 0, %s215
    %s237 = sphi 0, %s239
    %s240 = sphi 0, %s237
    %s241 = sphi 0, %s240
    %s257 = sphi 0, %s241
    %s261 = sphi 0, %s261
    %s263 = sphi 0, %s261
    %s264 = sphi 0, %s263
    %s278 = sphi 0, %s264
  $region4: #{forward.1} parent=0 // loop_header_branch
    %21 = sbr.rel (%p19) target = $region8
  $region5: #{forward.1} parent=0 // loop_body
    %s23 = ssub.s32 %s18, 1
    %s24 = ssub.s32 %s18, 2
    %s25 = sadd.s32 %s18, 1
    %s27 = sadd.s32 %s26, 1
    %p30 = scmp.eq.s32.totalorder %s18, 3
    %p31 = scmp.ne.s32.totalorder %s26, %s28
    %p32 = scmp.eq.s32.totalorder %s18, 0
    %p33 = por %p31, %p32
    %p34 = scmp.ne.s32.totalorder %s26, %s28
    %p35 = scmp.eq.s32.totalorder %s23, 3
    %p36 = por %p34, %p35
    %p37 = scmp.ne.s32.totalorder %s28, %s29
    %p38 = scmp.eq.s32.totalorder %s23, 0
    %p39 = por %p37, %p38
    %p40 = scmp.ne.s32.totalorder %s28, %s29
    %p41 = scmp.eq.s32.totalorder %s24, 3
    %p42 = por %p40, %p41
    %p44 = scmp.ne.s32.totalorder %s29, %s43
    %p45 = scmp.eq.s32.totalorder %s24, 0
    %p46 = por %p44, %p45
    %s48 = sadd.s32 %s47, 1
    %p51 = scmp.eq.s32.totalorder %s18, 3
    %p52 = scmp.ne.s32.totalorder %s47, %s49
    %p53 = scmp.eq.s32.totalorder %s18, 0
    %p54 = por %p52, %p53
    %p55 = scmp.ne.s32.totalorder %s47, %s49
    %p56 = scmp.eq.s32.totalorder %s23, 3
    %p57 = por %p55, %p56
    %p58 = scmp.ne.s32.totalorder %s49, %s50
    %p59 = scmp.eq.s32.totalorder %s23, 0
    %p60 = por %p58, %p59
    %p61 = scmp.ne.s32.totalorder %s49, %s50
    %p62 = scmp.eq.s32.totalorder %s24, 3
    %p63 = por %p61, %p62
    %p65 = scmp.ne.s32.totalorder %s50, %s64
    %p66 = scmp.eq.s32.totalorder %s24, 0
    %p67 = por %p65, %p66
    %s69 = sadd.s32 %s68, 1
    %p72 = scmp.eq.s32.totalorder %s18, 3
    %p73 = scmp.ne.s32.totalorder %s68, %s70
    %p74 = scmp.eq.s32.totalorder %s18, 0
    %p75 = por %p73, %p74
    %p76 = scmp.ne.s32.totalorder %s68, %s70
    %p77 = scmp.eq.s32.totalorder %s23, 3
    %p78 = por %p76, %p77
    %p79 = scmp.ne.s32.totalorder %s70, %s71
    %p80 = scmp.eq.s32.totalorder %s23, 0
    %p81 = por %p79, %p80
    %p82 = scmp.ne.s32.totalorder %s70, %s71
    %p83 = scmp.eq.s32.totalorder %s24, 3
    %p84 = por %p82, %p83
    %p86 = scmp.ne.s32.totalorder %s71, %s85
    %p87 = scmp.eq.s32.totalorder %s24, 0
    %p88 = por %p86, %p87
    %s90 = sadd.s32 %s89, 1
    %p93 = scmp.eq.s32.totalorder %s18, 3
    %p94 = scmp.ne.s32.totalorder %s89, %s91
    %p95 = scmp.eq.s32.totalorder %s18, 0
    %p96 = por %p94, %p95
    %p97 = scmp.ne.s32.totalorder %s89, %s91
    %p98 = scmp.eq.s32.totalorder %s23, 3
    %p99 = por %p97, %p98
    %p100 = scmp.ne.s32.totalorder %s91, %s92
    %p101 = scmp.eq.s32.totalorder %s23, 0
    %p102 = por %p100, %p101
    %p103 = scmp.ne.s32.totalorder %s91, %s92
    %p104 = scmp.eq.s32.totalorder %s24, 3
    %p105 = por %p103, %p104
    %p107 = scmp.ne.s32.totalorder %s92, %s106
    %p108 = scmp.eq.s32.totalorder %s24, 0
    %p109 = por %p107, %p108
    %s111 = sadd.s32 %s110, 1
    %p114 = scmp.eq.s32.totalorder %s18, 3
    %p115 = scmp.ne.s32.totalorder %s110, %s112
    %p116 = scmp.eq.s32.totalorder %s18, 0
    %p117 = por %p115, %p116
    %p118 = scmp.ne.s32.totalorder %s110, %s112
    %p119 = scmp.eq.s32.totalorder %s23, 3
    %p120 = por %p118, %p119
    %p121 = scmp.ne.s32.totalorder %s112, %s113
    %p122 = scmp.eq.s32.totalorder %s23, 0
    %p123 = por %p121, %p122
    %p124 = scmp.ne.s32.totalorder %s112, %s113
    %p125 = scmp.eq.s32.totalorder %s24, 3
    %p126 = por %p124, %p125
    %p128 = scmp.ne.s32.totalorder %s113, %s127
    %p129 = scmp.eq.s32.totalorder %s24, 0
    %p130 = por %p128, %p129
    %s131 = ssub.s32 %s18, %s25
    %p132 = scmp.eq.s32.totalorder %s131, 0
    %s134 = sadd.s32 %s133, 1
    %s135 = scalar_select %p132, %s133, %s134
    %p138 = pneg %p132
    %p139 = scmp.eq.s32.totalorder %s18, 3
    %p140 = por %p138, %p139
    %p141 = scmp.ne.s32.totalorder %s133, %s136
    %p142 = scmp.eq.s32.totalorder %s18, 0
    %p143 = por %p141, %p142
    %p144 = scmp.ne.s32.totalorder %s133, %s136
    %p145 = scmp.eq.s32.totalorder %s23, 3
    %p146 = por %p144, %p145
    %p147 = scmp.ne.s32.totalorder %s136, %s137
    %p148 = scmp.eq.s32.totalorder %s23, 0
    %p149 = por %p147, %p148
    %p150 = scmp.ne.s32.totalorder %s136, %s137
    %p151 = scmp.eq.s32.totalorder %s24, 3
    %p152 = por %p150, %p151
    %p154 = scmp.ne.s32.totalorder %s137, %s153
    %p155 = scmp.eq.s32.totalorder %s24, 0
    %p156 = por %p154, %p155
    %s157 = ssub.s32 %s18, %s25
    %p158 = scmp.eq.s32.totalorder %s157, 0
    %s160 = sadd.s32 %s159, 1
    %s161 = scalar_select %p158, %s159, %s160
    %p164 = pneg %p158
    %p165 = scmp.eq.s32.totalorder %s18, 3
    %p166 = por %p164, %p165
    %p167 = scmp.ne.s32.totalorder %s159, %s162
    %p168 = scmp.eq.s32.totalorder %s18, 0
    %p169 = por %p167, %p168
    %p170 = scmp.ne.s32.totalorder %s159, %s162
    %p171 = scmp.eq.s32.totalorder %s23, 3
    %p172 = por %p170, %p171
    %p173 = scmp.ne.s32.totalorder %s162, %s163
    %p174 = scmp.eq.s32.totalorder %s23, 0
    %p175 = por %p173, %p174
    %p176 = scmp.ne.s32.totalorder %s162, %s163
    %p177 = scmp.eq.s32.totalorder %s24, 3
    %p178 = por %p176, %p177
    %p180 = scmp.ne.s32.totalorder %s163, %s179
    %p181 = scmp.eq.s32.totalorder %s24, 0
    %p182 = por %p180, %p181
    %s183 = ssub.s32 %s18, %s25
    %p184 = scmp.eq.s32.totalorder %s183, 0
    %s186 = sadd.s32 %s185, 1
    %s187 = scalar_select %p184, %s185, %s186
    %p190 = pneg %p184
    %p191 = scmp.eq.s32.totalorder %s18, 3
    %p192 = por %p190, %p191
    %p193 = scmp.ne.s32.totalorder %s185, %s188
    %p194 = scmp.eq.s32.totalorder %s18, 0
    %p195 = por %p193, %p194
    %p196 = scmp.ne.s32.totalorder %s185, %s188
    %p197 = scmp.eq.s32.totalorder %s23, 3
    %p198 = por %p196, %p197
    %p199 = scmp.ne.s32.totalorder %s188, %s189
    %p200 = scmp.eq.s32.totalorder %s23, 0
    %p201 = por %p199, %p200
    %p202 = scmp.ne.s32.totalorder %s188, %s189
    %p203 = scmp.eq.s32.totalorder %s24, 3
    %p204 = por %p202, %p203
    %p206 = scmp.ne.s32.totalorder %s189, %s205
    %p207 = scmp.eq.s32.totalorder %s24, 0
    %p208 = por %p206, %p207
    %s209 = ssub.s32 %s18, %s25
    %p210 = scmp.eq.s32.totalorder %s209, 0
    %s212 = sadd.s32 %s211, 1
    %s213 = scalar_select %p210, %s211, %s212
    %p216 = pneg %p210
    %p217 = scmp.eq.s32.totalorder %s18, 3
    %p218 = por %p216, %p217
    %p219 = scmp.ne.s32.totalorder %s211, %s214
    %p220 = scmp.eq.s32.totalorder %s18, 0
    %p221 = por %p219, %p220
    %p222 = scmp.ne.s32.totalorder %s211, %s214
    %p223 = scmp.eq.s32.totalorder %s23, 3
    %p224 = por %p222, %p223
    %p225 = scmp.ne.s32.totalorder %s214, %s215
    %p226 = scmp.eq.s32.totalorder %s23, 0
    %p227 = por %p225, %p226
    %p228 = scmp.ne.s32.totalorder %s214, %s215
    %p229 = scmp.eq.s32.totalorder %s24, 3
    %p230 = por %p228, %p229
    %p232 = scmp.ne.s32.totalorder %s215, %s231
    %p233 = scmp.eq.s32.totalorder %s24, 0
    %p234 = por %p232, %p233
    %s235 = ssub.s32 %s18, %s25
    %p236 = scmp.eq.s32.totalorder %s235, 0
    %s238 = sadd.s32 %s237, 1
    %s239 = scalar_select %p236, %s237, %s238
    %p242 = pneg %p236
    %p243 = scmp.eq.s32.totalorder %s18, 3
    %p244 = por %p242, %p243
    %p245 = scmp.ne.s32.totalorder %s237, %s240
    %p246 = scmp.eq.s32.totalorder %s18, 0
    %p247 = por %p245, %p246
    %p248 = scmp.ne.s32.totalorder %s237, %s240
    %p249 = scmp.eq.s32.totalorder %s23, 3
    %p250 = por %p248, %p249
    %p251 = scmp.ne.s32.totalorder %s240, %s241
    %p252 = scmp.eq.s32.totalorder %s23, 0
    %p253 = por %p251, %p252
    %p254 = scmp.ne.s32.totalorder %s240, %s241
    %p255 = scmp.eq.s32.totalorder %s24, 3
    %p256 = por %p254, %p255
    %p258 = scmp.ne.s32.totalorder %s241, %s257
    %p259 = scmp.eq.s32.totalorder %s24, 0
    %p260 = por %p258, %p259
    %s262 = sadd.s32 %s261, 1
    %p265 = scmp.eq.s32.totalorder %s18, 3
    %p266 = scmp.ne.s32.totalorder %s261, %s263
    %p267 = scmp.eq.s32.totalorder %s18, 0
    %p268 = por %p266, %p267
    %p269 = scmp.ne.s32.totalorder %s261, %s263
    %p270 = scmp.eq.s32.totalorder %s23, 3
    %p271 = por %p269, %p270
    %p272 = scmp.ne.s32.totalorder %s263, %s264
    %p273 = scmp.eq.s32.totalorder %s23, 0
    %p274 = por %p272, %p273
    %p275 = scmp.ne.s32.totalorder %s263, %s264
    %p276 = scmp.eq.s32.totalorder %s24, 3
    %p277 = por %p275, %p276
    %p279 = scmp.ne.s32.totalorder %s264, %s278
    %p280 = scmp.eq.s32.totalorder %s24, 0
    %p281 = por %p279, %p280
    %p282 = scmp.le.s32.totalorder 1, %s18
    %p283 = scmp.lt.s32.totalorder %s18, 5
    %p284 = pnand %p282, %p283
    %p285 = pneg %p284
    // Predicated region
    $region9: #{forward.1} parent=5 // pred_check
      _
    $region10: #{forward.1} parent=5 // pred_check_branch
      %287 = sbr.rel (%p284) target = $region12
    $region11: #{forward.1} parent=5 // pred_region
      %s288 = ssub.s32 %s18, 1
      // Predicated region
      $region13: #{forward.1} parent=11 // pred_check
        %p289 = pneg %p39
      $region14: #{forward.1} parent=11 // pred_check_branch
        %291 = sbr.rel (%p289) target = $region16
      $region15: #{forward.1} parent=11 // pred_region
        _
      $region16: #{forward.1} parent=11 // pred_fallthru
        _
      // Predicated region
      $region17: #{forward.1} parent=11 // pred_check
        %p292 = pneg %p60
      $region18: #{forward.1} parent=11 // pred_check_branch
        %294 = sbr.rel (%p292) target = $region20
      $region19: #{forward.1} parent=11 // pred_region
        _
      $region20: #{forward.1} parent=11 // pred_fallthru
        _
      // Predicated region
      $region21: #{forward.1} parent=11 // pred_check
        %p295 = pneg %p81
      $region22: #{forward.1} parent=11 // pred_check_branch
        %297 = sbr.rel (%p295) target = $region24
      $region23: #{forward.1} parent=11 // pred_region
        _
      $region24: #{forward.1} parent=11 // pred_fallthru
        _
      // Predicated region
      $region25: #{forward.1} parent=11 // pred_check
        %p298 = pneg %p102
      $region26: #{forward.1} parent=11 // pred_check_branch
        %300 = sbr.rel (%p298) target = $region28
      $region27: #{forward.1} parent=11 // pred_region
        _
      $region28: #{forward.1} parent=11 // pred_fallthru
        _
      // Predicated region
      $region29: #{forward.1} parent=11 // pred_check
        %p301 = pneg %p123
      $region30: #{forward.1} parent=11 // pred_check_branch
        %303 = sbr.rel (%p301) target = $region32
      $region31: #{forward.1} parent=11 // pred_region
        _
      $region32: #{forward.1} parent=11 // pred_fallthru
        _
    $region12: #{forward.1} parent=5 // pred_fallthru
      _
    %p304 = scmp.lt.s32.totalorder %s18, 4
    // Predicated region
    $region33: #{forward.1} parent=5 // pred_check
      %p305 = pneg %p304
    $region34: #{forward.1} parent=5 // pred_check_branch
      %307 = sbr.rel (%p305) target = $region36
    $region35: #{forward.1} parent=5 // pred_region
      // Predicated region
      $region37: #{forward.1} parent=35 // pred_check
        %p308 = pneg %p143
      $region38: #{forward.1} parent=35 // pred_check_branch
        %310 = sbr.rel (%p308) target = $region40
      $region39: #{forward.1} parent=35 // pred_region
        %p311 = scmp.lt.s32.totalorder %s18, 3
        %s312 = scalar_select %p311, %s18, 3
        %s313 = smul.addr %s312, 16
        %s314 = smul.addr %s313, 8
        %s315 = scalar_lea.vmem %s5, %s314
      $region40: #{forward.1} parent=35 // pred_fallthru
        _
      // Predicated region
      $region41: #{forward.1} parent=35 // pred_check
        %p316 = pneg %p169
      $region42: #{forward.1} parent=35 // pred_check_branch
        %318 = sbr.rel (%p316) target = $region44
      $region43: #{forward.1} parent=35 // pred_region
        %p319 = scmp.lt.s32.totalorder %s18, 3
        %s320 = scalar_select %p319, %s18, 3
        %s321 = smul.addr %s320, 4
        %s322 = smul.addr %s321, 8
        %s323 = scalar_lea.vmem %s6, %s322
      $region44: #{forward.1} parent=35 // pred_fallthru
        _
      // Predicated region
      $region45: #{forward.1} parent=35 // pred_check
        %p324 = pneg %p195
      $region46: #{forward.1} parent=35 // pred_check_branch
        %326 = sbr.rel (%p324) target = $region48
      $region47: #{forward.1} parent=35 // pred_region
        %p327 = scmp.lt.s32.totalorder %s18, 3
        %s328 = scalar_select %p327, %s18, 3
        %s329 = scalar_lea.vmem %s7, %s328
      $region48: #{forward.1} parent=35 // pred_fallthru
        _
      // Predicated region
      $region49: #{forward.1} parent=35 // pred_check
        %p330 = pneg %p221
      $region50: #{forward.1} parent=35 // pred_check_branch
        %332 = sbr.rel (%p330) target = $region52
      $region51: #{forward.1} parent=35 // pred_region
        %p333 = scmp.lt.s32.totalorder %s18, 3
        %s334 = scalar_select %p333, %s18, 3
        %s335 = smul.addr %s334, 16
        %s336 = smul.addr %s335, 8
        %s337 = scalar_lea.vmem %s8, %s336
      $region52: #{forward.1} parent=35 // pred_fallthru
        _
      // Predicated region
      $region53: #{forward.1} parent=35 // pred_check
        %p338 = pneg %p247
      $region54: #{forward.1} parent=35 // pred_check_branch
        %340 = sbr.rel (%p338) target = $region56
      $region55: #{forward.1} parent=35 // pred_region
        %p341 = scmp.lt.s32.totalorder %s18, 3
        %s342 = scalar_select %p341, %s18, 3
        %s343 = smul.addr %s342, 2
        %s344 = smul.addr %s343, 8
        %s345 = scalar_lea.vmem %s9, %s344
      $region56: #{forward.1} parent=35 // pred_fallthru
        _
    $region36: #{forward.1} parent=5 // pred_fallthru
      _
    %p346 = scmp.le.s32.totalorder 1, %s18
    %p347 = scmp.lt.s32.totalorder %s18, 5
    %p348 = pnand %p346, %p347
    %p349 = pneg %p348
    // Predicated region
    $region57: #{forward.1} parent=5 // pred_check
      _
    $region58: #{forward.1} parent=5 // pred_check_branch
      %351 = sbr.rel (%p348) target = $region60
    $region59: #{forward.1} parent=5 // pred_region
      %s352 = ssub.s32 %s18, 1
      %p353 = pneg %p39
      %p354 = pneg %p36
      %p355 = pneg %p60
      %p356 = pneg %p57
      %p357 = pneg %p81
      %p358 = pneg %p78
      %p359 = pneg %p102
      %p360 = pneg %p99
      %p361 = pneg %p123
      %p362 = pneg %p120
      %p363 = scmp.lt.s32.totalorder %s23, 3
      %s364 = scalar_select %p363, %s23, 3
      %s365 = smul.addr %s364, 16
      %s366 = smul.addr %s365, 8
      %s367 = scalar_lea.vmem %s5, %s366
      %p368 = pneg %p149
      %p369 = pneg %p146
      %p370 = scmp.lt.s32.totalorder %s23, 3
      %s371 = scalar_select %p370, %s23, 3
      %s372 = smul.addr %s371, 4
      %s373 = smul.addr %s372, 8
      %s374 = scalar_lea.vmem %s6, %s373
      %p375 = pneg %p175
      %p376 = pneg %p172
      %p377 = scmp.lt.s32.totalorder %s23, 3
      %s378 = scalar_select %p377, %s23, 3
      %s379 = scalar_lea.vmem %s7, %s378
      %p380 = pneg %p201
      %p381 = pneg %p198
      %p382 = scmp.lt.s32.totalorder %s23, 3
      %s383 = scalar_select %p382, %s23, 3
      %s384 = smul.addr %s383, 16
      %s385 = smul.addr %s384, 8
      %s386 = scalar_lea.vmem %s8, %s385
      %p387 = pneg %p227
      %p388 = pneg %p224
      %p389 = scmp.lt.s32.totalorder %s23, 3
      %s390 = scalar_select %p389, %s23, 3
      %s391 = smul.addr %s390, 2
      %s392 = smul.addr %s391, 8
      %s393 = scalar_lea.vmem %s9, %s392
      %p394 = pneg %p253
      %p395 = pneg %p250
      %p396 = pneg %p274
      %p397 = pneg %p271
      %p398 = scmp.lt.s32.totalorder %s23, 3
      %s399 = scalar_select %p398, %s23, 3
      %s400 = smul.addr %s399, 16
      %s401 = smul.addr %s400, 8
      %s402 = scalar_lea.vmem %s5, %s401
      %p403 = scmp.lt.s32.totalorder %s23, 3
      %s404 = scalar_select %p403, %s23, 3
      %s405 = smul.addr %s404, 4
      %s406 = smul.addr %s405, 8
      %s407 = scalar_lea.vmem %s6, %s406
      %p408 = scmp.lt.s32.totalorder %s23, 3
      %s409 = scalar_select %p408, %s23, 3
      %s410 = scalar_lea.vmem %s7, %s409
      %p411 = scmp.lt.s32.totalorder %s23, 3
      %s412 = scalar_select %p411, %s23, 3
      %s413 = smul.addr %s412, 16
      %s414 = smul.addr %s413, 8
      %s415 = scalar_lea.vmem %s8, %s414
      %p416 = scmp.lt.s32.totalorder %s23, 3
      %s417 = scalar_select %p416, %s23, 3
      %s418 = smul.addr %s417, 2
      %s419 = smul.addr %s418, 8
      %s420 = scalar_lea.vmem %s9, %s419
      %p421 = scmp.eq.s32.totalorder %s23, 0
      // Predicated region
      $region61: #{forward.1} parent=59 // pred_check
        %p422 = pneg %p421
      $region62: #{forward.1} parent=59 // pred_check_branch
        %424 = sbr.rel (%p422) target = $region64
      $region63: #{forward.1} parent=59 // pred_region
        %v425 = vld [vmem:[%s0] sm:$0xff]
        %v426 = vld [vmem:[%s0 + $0x8] sm:$0xff]
        %v427 = vld [vmem:[%s2] sm:$0x1]
        %v428 = vld [vmem:[%s2 + $0x1] sm:$0x1]
        %vm429 = vcmask 261120
        %v430 = vsel %vm429, %v425, 0.0
        %431 = vadd.xlane.f32.xlu0 %v430
        %v432 = vpop.xlane.xlu0 %431
        %v433 = vsel %vm429, %v426, 0.0
        %434 = vadd.xlane.f32.xlu0 %v433
        %v435 = vpop.xlane.xlu0 %434
        %v436 = vrcp.pop 32.0
        %v437 = vmul.f32 %v432, %v436
        %v438 = vmul.f32 %v435, %v436
        %v439 = vsub.f32 %v425, %v437
        %v440 = vsub.f32 %v426, %v438
        %v441 = vmul.f32 %v439, %v439
        %v442 = vmul.f32 %v440, %v440
        %v443 = vsel %vm429, %v441, 0.0
        %444 = vadd.xlane.f32.xlu0 %v443
        %v445 = vpop.xlane.xlu0 %444
        %v446 = vsel %vm429, %v442, 0.0
        %447 = vadd.xlane.f32.xlu0 %v446
        %v448 = vpop.xlane.xlu0 %447
        %v449 = vmul.f32 %v445, %v436
        %v450 = vmul.f32 %v448, %v436
        %v451 = vadd.f32 %v449, 1e-12
        %v452 = vadd.f32 %v450, 1e-12
        %v453 = vrsqrt.pop %v451
        %v454 = vrsqrt.pop %v452
        %v455 = vmul.f32 %v439, %v453
        %v456 = vmul.f32 %v440, %v454
        %v457 = vlaneseq
        %v458 = vshrl.u32 %v457, 7
        %v459 = vsub.s32 0, %v458
        %v460 = vrot.slane %v427, %v459
        %v461 = vmul.f32 %v455, %v460
        %v462 = vmul.f32 %v456, %v460
        %v463 = vlaneseq
        %v464 = vshrl.u32 %v463, 7
        %v465 = vsub.s32 0, %v464
        %v466 = vrot.slane %v428, %v465
        %v467 = vadd.f32 %v461, %v466
        %v468 = vadd.f32 %v462, %v466
        %469 = vst.msk [vmem:[#allocation2] sm:$0xff] %vm429, %v467
        %470 = vst.msk [vmem:[#allocation2 + $0x8] sm:$0xff] %vm429, %v468
      $region64: #{forward.1} parent=59 // pred_fallthru
        _
      %v471 = vld [vmem:[#allocation2] sm:$0xff]
      %v472 = vld [vmem:[#allocation2 + $0x8] sm:$0xff]
      %v473 = vld [vmem:[%s402] sm:$0xff]
      %v474 = vld [vmem:[%s402 + $0x8] sm:$0xff]
      %v475 = vld [vmem:[%s402 + $0x10] sm:$0xff]
      %v476 = vld [vmem:[%s402 + $0x18] sm:$0xff]
      %s477 = scalar_lea.vmem %s402, 32
      %v478 = vld [vmem:[%s477] sm:$0xff]
      %v479 = vld [vmem:[%s477 + $0x8] sm:$0xff]
      %v480 = vld [vmem:[%s477 + $0x10] sm:$0xff]
      %v481 = vld [vmem:[%s477 + $0x18] sm:$0xff]
      %s482 = scalar_lea.vmem %s402, 64
      %v483 = vld [vmem:[%s482] sm:$0xff]
      %v484 = vld [vmem:[%s482 + $0x8] sm:$0xff]
      %v485 = vld [vmem:[%s482 + $0x10] sm:$0xff]
      %v486 = vld [vmem:[%s482 + $0x18] sm:$0xff]
      %s487 = scalar_lea.vmem %s402, 96
      %v488 = vld [vmem:[%s487] sm:$0xff]
      %v489 = vld [vmem:[%s487 + $0x8] sm:$0xff]
      %v490 = vld [vmem:[%s487 + $0x10] sm:$0xff]
      %v491 = vld [vmem:[%s487 + $0x18] sm:$0xff]
      %v492 = vld [vmem:[%s420] sm:$0xff]
      %v493 = vld [vmem:[%s420 + $0x8] sm:$0x1]
      %v494 = vld [vmem:[%s407] sm:$0xff]
      %v495 = vld [vmem:[%s407 + $0x8] sm:$0xff]
      %v496 = vld [vmem:[%s407 + $0x10] sm:$0xff]
      %v497 = vld [vmem:[%s407 + $0x18] sm:$0xff]
      %v498 = vld [vmem:[%s410] sm:$0x1]
      %v499 = vld [vmem:[%s415] sm:$0xff]
      %v500 = vld [vmem:[%s415 + $0x8] sm:$0xff]
      %v501 = vld [vmem:[%s415 + $0x10] sm:$0xff]
      %v502 = vld [vmem:[%s415 + $0x18] sm:$0xff]
      %v503 = vld [vmem:[%s415 + $0x20] sm:$0xff]
      %v504 = vld [vmem:[%s415 + $0x28] sm:$0xff]
      %v505 = vld [vmem:[%s415 + $0x30] sm:$0xff]
      %v506 = vld [vmem:[%s415 + $0x38] sm:$0xff]
      %v507 = vld [vmem:[%s415 + $0x40] sm:$0xff]
      %v508 = vld [vmem:[%s415 + $0x48] sm:$0xff]
      %v509 = vld [vmem:[%s415 + $0x50] sm:$0xff]
      %v510 = vld [vmem:[%s415 + $0x58] sm:$0xff]
      %v511 = vld [vmem:[%s415 + $0x60] sm:$0xff]
      %v512 = vld [vmem:[%s415 + $0x68] sm:$0xff]
      %v513 = vld [vmem:[%s415 + $0x70] sm:$0xff]
      %v514 = vld [vmem:[%s415 + $0x78] sm:$0xff]
      %v515 = vlaneseq
      %v516 = vshrl.u32 %v515, 7
      %v517 = vsub.s32 0, %v516
      %v518 = vrot.slane %v492, %v517
      %vm519 = vcmask 261120
      %v521 = vsel %vm519, %v471, 0
      %v524 = vsel %vm519, %v472, 0
      %526 = vmatprep.subr.mxu0 0.0
      %527 = vmatpush1.msra.mxu0 0.0
      %528 = vmatprep.subr.mxu0 0.0
      %529 = vmatpush1.msra.mxu0 0.0
      %530 = vmatprep.subr.mxu0 0.0
      %531 = vmatpush1.msra.mxu0 0.0
      %532 = vmatprep.subr.mxu0 0.0
      %533 = vmatpush1.msra.mxu0 0.0
      %534 = vmatprep.subr.mxu0 0.0
      %535 = vmatpush1.msra.mxu0 0.0
      %536 = vmatprep.subr.mxu0 0.0
      %537 = vmatpush1.msra.mxu0 0.0
      %538 = vmatprep.subr.mxu0 0.0
      %539 = vmatpush1.msra.mxu0 0.0
      %540 = vmatprep.subr.mxu0 0.0
      %541 = vmatpush1.msra.mxu0 0.0
      %542 = vmatprep.subr.mxu0 0.0
      %543 = vmatpush1.msra.mxu0 0.0
      %544 = vmatprep.subr.mxu0 0.0
      %545 = vmatpush1.msra.mxu0 0.0
      %546 = vmatprep.subr.mxu0 0.0
      %547 = vmatpush1.msra.mxu0 0.0
      %548 = vmatprep.subr.mxu0 0.0
      %549 = vmatpush1.msra.mxu0 0.0
      %550 = vmatprep.subr.mxu0 0.0
      %551 = vmatpush1.msra.mxu0 %v476
      %552 = vmatprep.subr.mxu0 0.0
      %553 = vmatpush1.msra.mxu0 %v475
      %554 = vmatprep.subr.mxu0 0.0
      %555 = vmatpush1.msra.mxu0 %v474
      %556 = vmatprep.subr.mxu0 0.0
      %557 = vmatpush1.msra.mxu0 %v473
      %558 = vmatprep.subr.mxu0 0.0
      %559 = vmatpush2.msra.mxu0 0.0
      %560 = vmatprep.subr.mxu0 0.0
      %561 = vmatpush2.msra.mxu0 0.0
      %562 = vmatprep.subr.mxu0 0.0
      %563 = vmatpush2.msra.mxu0 0.0
      %564 = vmatprep.subr.mxu0 0.0
      %565 = vmatpush2.msra.mxu0 0.0
      %566 = vmatprep.subr.mxu0 0.0
      %567 = vmatpush2.msra.mxu0 0.0
      %568 = vmatprep.subr.mxu0 0.0
      %569 = vmatpush2.msra.mxu0 0.0
      %570 = vmatprep.subr.mxu0 0.0
      %571 = vmatpush2.msra.mxu0 0.0
      %572 = vmatprep.subr.mxu0 0.0
      %573 = vmatpush2.msra.mxu0 0.0
      %574 = vmatprep.subr.mxu0 0.0
      %575 = vmatpush2.msra.mxu0 0.0
      %576 = vmatprep.subr.mxu0 0.0
      %577 = vmatpush2.msra.mxu0 0.0
      %578 = vmatprep.subr.mxu0 0.0
      %579 = vmatpush2.msra.mxu0 0.0
      %580 = vmatprep.subr.mxu0 0.0
      %581 = vmatpush2.msra.mxu0 0.0
      %582 = vmatprep.subr.mxu0 0.0
      %583 = vmatpush2.msra.mxu0 0.0
      %584 = vmatprep.subr.mxu0 0.0
      %585 = vmatpush2.msra.mxu0 0.0
      %586 = vmatprep.subr.mxu0 0.0
      %587 = vmatpush2.msra.mxu0 0.0
      %588 = vmatprep.subr.mxu0 0.0
      %589 = vmatpush2.msra.mxu0 0.0
      %590 = vmatprep.mubr.f32.mxu0 0.0
      %591 = vmatmul.mubr.f32.gmra.mxu0 %v521
      %v592 = vpop.f32.mrf.mxu0
      %v593 = vadd.f32 %v518, %v592
      %v594 = vpop.f32.mrf.mxu0
      %595 = vmatprep.mubr.f32.mxu0 0.0
      %596 = vmatmul.mubr.f32.gmra.mxu0 %v524
      %v597 = vpop.f32.mrf.mxu0
      %v598 = vadd.f32 %v518, %v597
      %v599 = vpop.f32.mrf.mxu0
      %600 = vdwg.mxu0
      %v601 = vmul.f32 %v593, 0.35355338
      %v602 = vmul.f32 %v598, 0.35355338
      %v603 = vlaneseq
      %v604 = vshrl.u32 %v603, 7
      %v605 = vsub.s32 1, %v604
      %v606 = vrot.slane %v492, %v605
      %607 = vmatprep.subr.mxu0 0.0
      %608 = vmatpush1.msra.mxu0 0.0
      %609 = vmatprep.subr.mxu0 0.0
      %610 = vmatpush1.msra.mxu0 0.0
      %611 = vmatprep.subr.mxu0 0.0
      %612 = vmatpush1.msra.mxu0 0.0
      %613 = vmatprep.subr.mxu0 0.0
      %614 = vmatpush1.msra.mxu0 0.0
      %615 = vmatprep.subr.mxu0 0.0
      %616 = vmatpush1.msra.mxu0 0.0
      %617 = vmatprep.subr.mxu0 0.0
      %618 = vmatpush1.msra.mxu0 0.0
      %619 = vmatprep.subr.mxu0 0.0
      %620 = vmatpush1.msra.mxu0 0.0
      %621 = vmatprep.subr.mxu0 0.0
      %622 = vmatpush1.msra.mxu0 0.0
      %623 = vmatprep.subr.mxu0 0.0
      %624 = vmatpush1.msra.mxu0 0.0
      %625 = vmatprep.subr.mxu0 0.0
      %626 = vmatpush1.msra.mxu0 0.0
      %627 = vmatprep.subr.mxu0 0.0
      %628 = vmatpush1.msra.mxu0 0.0
      %629 = vmatprep.subr.mxu0 0.0
      %630 = vmatpush1.msra.mxu0 0.0
      %631 = vmatprep.subr.mxu0 0.0
      %632 = vmatpush1.msra.mxu0 %v481
      %633 = vmatprep.subr.mxu0 0.0
      %634 = vmatpush1.msra.mxu0 %v480
      %635 = vmatprep.subr.mxu0 0.0
      %636 = vmatpush1.msra.mxu0 %v479
      %637 = vmatprep.subr.mxu0 0.0
      %638 = vmatpush1.msra.mxu0 %v478
      %639 = vmatprep.subr.mxu0 0.0
      %640 = vmatpush2.msra.mxu0 0.0
      %641 = vmatprep.subr.mxu0 0.0
      %642 = vmatpush2.msra.mxu0 0.0
      %643 = vmatprep.subr.mxu0 0.0
      %644 = vmatpush2.msra.mxu0 0.0
      %645 = vmatprep.subr.mxu0 0.0
      %646 = vmatpush2.msra.mxu0 0.0
      %647 = vmatprep.subr.mxu0 0.0
      %648 = vmatpush2.msra.mxu0 0.0
      %649 = vmatprep.subr.mxu0 0.0
      %650 = vmatpush2.msra.mxu0 0.0
      %651 = vmatprep.subr.mxu0 0.0
      %652 = vmatpush2.msra.mxu0 0.0
      %653 = vmatprep.subr.mxu0 0.0
      %654 = vmatpush2.msra.mxu0 0.0
      %655 = vmatprep.subr.mxu0 0.0
      %656 = vmatpush2.msra.mxu0 0.0
      %657 = vmatprep.subr.mxu0 0.0
      %658 = vmatpush2.msra.mxu0 0.0
      %659 = vmatprep.subr.mxu0 0.0
      %660 = vmatpush2.msra.mxu0 0.0
      %661 = vmatprep.subr.mxu0 0.0
      %662 = vmatpush2.msra.mxu0 0.0
      %663 = vmatprep.subr.mxu0 0.0
      %664 = vmatpush2.msra.mxu0 0.0
      %665 = vmatprep.subr.mxu0 0.0
      %666 = vmatpush2.msra.mxu0 0.0
      %667 = vmatprep.subr.mxu0 0.0
      %668 = vmatpush2.msra.mxu0 0.0
      %669 = vmatprep.subr.mxu0 0.0
      %670 = vmatpush2.msra.mxu0 0.0
      %671 = vmatprep.mubr.f32.mxu0 0.0
      %672 = vmatmul.mubr.f32.gmra.mxu0 %v521
      %v673 = vpop.f32.mrf.mxu0
      %v674 = vadd.f32 %v606, %v673
      %v675 = vpop.f32.mrf.mxu0
      %676 = vmatprep.mubr.f32.mxu0 0.0
      %677 = vmatmul.mubr.f32.gmra.mxu0 %v524
      %v678 = vpop.f32.mrf.mxu0
      %v679 = vadd.f32 %v606, %v678
      %v680 = vpop.f32.mrf.mxu0
      %681 = vdwg.mxu0
      %v682 = vlaneseq
      %v683 = vshrl.u32 %v682, 7
      %v684 = vsub.s32 2, %v683
      %v685 = vrot.slane %v492, %v684
      %686 = vmatprep.subr.mxu0 0.0
      %687 = vmatpush1.msra.mxu0 0.0
      %688 = vmatprep.subr.mxu0 0.0
      %689 = vmatpush1.msra.mxu0 0.0
      %690 = vmatprep.subr.mxu0 0.0
      %691 = vmatpush1.msra.mxu0 0.0
      %692 = vmatprep.subr.mxu0 0.0
      %693 = vmatpush1.msra.mxu0 0.0
      %694 = vmatprep.subr.mxu0 0.0
      %695 = vmatpush1.msra.mxu0 0.0
      %696 = vmatprep.subr.mxu0 0.0
      %697 = vmatpush1.msra.mxu0 0.0
      %698 = vmatprep.subr.mxu0 0.0
      %699 = vmatpush1.msra.mxu0 0.0
      %700 = vmatprep.subr.mxu0 0.0
      %701 = vmatpush1.msra.mxu0 0.0
      %702 = vmatprep.subr.mxu0 0.0
      %703 = vmatpush1.msra.mxu0 0.0
      %704 = vmatprep.subr.mxu0 0.0
      %705 = vmatpush1.msra.mxu0 0.0
      %706 = vmatprep.subr.mxu0 0.0
      %707 = vmatpush1.msra.mxu0 0.0
      %708 = vmatprep.subr.mxu0 0.0
      %709 = vmatpush1.msra.mxu0 0.0
      %710 = vmatprep.subr.mxu0 0.0
      %711 = vmatpush1.msra.mxu0 %v486
      %712 = vmatprep.subr.mxu0 0.0
      %713 = vmatpush1.msra.mxu0 %v485
      %714 = vmatprep.subr.mxu0 0.0
      %715 = vmatpush1.msra.mxu0 %v484
      %716 = vmatprep.subr.mxu0 0.0
      %717 = vmatpush1.msra.mxu0 %v483
      %718 = vmatprep.subr.mxu0 0.0
      %719 = vmatpush2.msra.mxu0 0.0
      %720 = vmatprep.subr.mxu0 0.0
      %721 = vmatpush2.msra.mxu0 0.0
      %722 = vmatprep.subr.mxu0 0.0
      %723 = vmatpush2.msra.mxu0 0.0
      %724 = vmatprep.subr.mxu0 0.0
      %725 = vmatpush2.msra.mxu0 0.0
      %726 = vmatprep.subr.mxu0 0.0
      %727 = vmatpush2.msra.mxu0 0.0
      %728 = vmatprep.subr.mxu0 0.0
      %729 = vmatpush2.msra.mxu0 0.0
      %730 = vmatprep.subr.mxu0 0.0
      %731 = vmatpush2.msra.mxu0 0.0
      %732 = vmatprep.subr.mxu0 0.0
      %733 = vmatpush2.msra.mxu0 0.0
      %734 = vmatprep.subr.mxu0 0.0
      %735 = vmatpush2.msra.mxu0 0.0
      %736 = vmatprep.subr.mxu0 0.0
      %737 = vmatpush2.msra.mxu0 0.0
      %738 = vmatprep.subr.mxu0 0.0
      %739 = vmatpush2.msra.mxu0 0.0
      %740 = vmatprep.subr.mxu0 0.0
      %741 = vmatpush2.msra.mxu0 0.0
      %742 = vmatprep.subr.mxu0 0.0
      %743 = vmatpush2.msra.mxu0 0.0
      %744 = vmatprep.subr.mxu0 0.0
      %745 = vmatpush2.msra.mxu0 0.0
      %746 = vmatprep.subr.mxu0 0.0
      %747 = vmatpush2.msra.mxu0 0.0
      %748 = vmatprep.subr.mxu0 0.0
      %749 = vmatpush2.msra.mxu0 0.0
      %750 = vmatprep.mubr.f32.mxu0 0.0
      %751 = vmatmul.mubr.f32.gmra.mxu0 %v521
      %v752 = vpop.f32.mrf.mxu0
      %v753 = vadd.f32 %v685, %v752
      %v754 = vpop.f32.mrf.mxu0
      %755 = vmatprep.mubr.f32.mxu0 0.0
      %756 = vmatmul.mubr.f32.gmra.mxu0 %v524
      %v757 = vpop.f32.mrf.mxu0
      %v758 = vadd.f32 %v685, %v757
      %v759 = vpop.f32.mrf.mxu0
      %760 = vdwg.mxu0
      %v761 = vld [vmem:[%s1] sm:$0x1]
      %v762 = vld [vmem:[%s1 + $0x1] sm:$0x1]
      %v765 = vlaneseq
      %v766 = vshrl.u32 %v765, 7
      %v767 = vsub.s32 0, %v766
      %v768 = vrot.slane %v761, %v767
      %v769 = vlaneseq
      %v770 = vshrl.u32 %v769, 7
      %v771 = vsub.s32 0, %v770
      %v772 = vrot.slane %v762, %v771
      %vm775 = vcmask 64512
      %v777 = vsel %vm775, %v601, 0
      %v780 = vsel %vm775, %v674, 0
      %782 = vmatprep.subr.mxu0 0.0
      %783 = vmatpush1.xpose.msra.mxu0 0.0
      %784 = vmatprep.subr.mxu0 0.0
      %785 = vmatpush1.xpose.msra.mxu0 0.0
      %786 = vmatprep.subr.mxu0 0.0
      %787 = vmatpush1.xpose.msra.mxu0 0.0
      %788 = vmatprep.subr.mxu0 0.0
      %789 = vmatpush1.xpose.msra.mxu0 0.0
      %790 = vmatprep.subr.mxu0 0.0
      %791 = vmatpush1.xpose.msra.mxu0 0.0
      %792 = vmatprep.subr.mxu0 0.0
      %793 = vmatpush1.xpose.msra.mxu0 0.0
      %794 = vmatprep.subr.mxu0 0.0
      %795 = vmatpush1.xpose.msra.mxu0 0.0
      %796 = vmatprep.subr.mxu0 0.0
      %797 = vmatpush1.xpose.msra.mxu0 0.0
      %798 = vmatprep.subr.mxu0 0.0
      %799 = vmatpush1.xpose.msra.mxu0 0.0
      %800 = vmatprep.subr.mxu0 0.0
      %801 = vmatpush1.xpose.msra.mxu0 0.0
      %802 = vmatprep.subr.mxu0 0.0
      %803 = vmatpush1.xpose.msra.mxu0 0.0
      %804 = vmatprep.subr.mxu0 0.0
      %805 = vmatpush1.xpose.msra.mxu0 0.0
      %806 = vmatprep.subr.mxu0 0.0
      %807 = vmatpush1.xpose.msra.mxu0 0.0
      %808 = vmatprep.subr.mxu0 0.0
      %809 = vmatpush1.xpose.msra.mxu0 0.0
      %810 = vmatprep.subr.mxu0 0.0
      %811 = vmatpush1.xpose.msra.mxu0 0.0
      %812 = vmatprep.subr.mxu0 0.0
      %813 = vmatpush1.xpose.msra.mxu0 %v780
      %814 = vmatprep.subr.mxu0 0.0
      %815 = vmatpush2.xpose.msra.mxu0 0.0
      %816 = vmatprep.subr.mxu0 0.0
      %817 = vmatpush2.xpose.msra.mxu0 0.0
      %818 = vmatprep.subr.mxu0 0.0
      %819 = vmatpush2.xpose.msra.mxu0 0.0
      %820 = vmatprep.subr.mxu0 0.0
      %821 = vmatpush2.xpose.msra.mxu0 0.0
      %822 = vmatprep.subr.mxu0 0.0
      %823 = vmatpush2.xpose.msra.mxu0 0.0
      %824 = vmatprep.subr.mxu0 0.0
      %825 = vmatpush2.xpose.msra.mxu0 0.0
      %826 = vmatprep.subr.mxu0 0.0
      %827 = vmatpush2.xpose.msra.mxu0 0.0
      %828 = vmatprep.subr.mxu0 0.0
      %829 = vmatpush2.xpose.msra.mxu0 0.0
      %830 = vmatprep.subr.mxu0 0.0
      %831 = vmatpush2.xpose.msra.mxu0 0.0
      %832 = vmatprep.subr.mxu0 0.0
      %833 = vmatpush2.xpose.msra.mxu0 0.0
      %834 = vmatprep.subr.mxu0 0.0
      %835 = vmatpush2.xpose.msra.mxu0 0.0
      %836 = vmatprep.subr.mxu0 0.0
      %837 = vmatpush2.xpose.msra.mxu0 0.0
      %838 = vmatprep.subr.mxu0 0.0
      %839 = vmatpush2.xpose.msra.mxu0 0.0
      %840 = vmatprep.subr.mxu0 0.0
      %841 = vmatpush2.xpose.msra.mxu0 0.0
      %842 = vmatprep.subr.mxu0 0.0
      %843 = vmatpush2.xpose.msra.mxu0 0.0
      %844 = vmatprep.subr.mxu0 0.0
      %845 = vmatpush2.xpose.msra.mxu0 0.0
      %846 = vmatprep.mubr.f32.mxu0 0.0
      %847 = vmatmul.mubr.f32.gmra.mxu0 %v777
      %v848 = vpop.f32.mrf.mxu0
      %v849 = vadd.f32 %v768, %v848
      %v850 = vpop.f32.mrf.mxu0
      %851 = vdwg.mxu0
      %v853 = vsel %vm775, %v602, 0
      %v856 = vsel %vm775, %v679, 0
      %858 = vmatprep.subr.mxu0 0.0
      %859 = vmatpush1.xpose.msra.mxu0 0.0
      %860 = vmatprep.subr.mxu0 0.0
      %861 = vmatpush1.xpose.msra.mxu0 0.0
      %862 = vmatprep.subr.mxu0 0.0
      %863 = vmatpush1.xpose.msra.mxu0 0.0
      %864 = vmatprep.subr.mxu0 0.0
      %865 = vmatpush1.xpose.msra.mxu0 0.0
      %866 = vmatprep.subr.mxu0 0.0
      %867 = vmatpush1.xpose.msra.mxu0 0.0
      %868 = vmatprep.subr.mxu0 0.0
      %869 = vmatpush1.xpose.msra.mxu0 0.0
      %870 = vmatprep.subr.mxu0 0.0
      %871 = vmatpush1.xpose.msra.mxu0 0.0
      %872 = vmatprep.subr.mxu0 0.0
      %873 = vmatpush1.xpose.msra.mxu0 0.0
      %874 = vmatprep.subr.mxu0 0.0
      %875 = vmatpush1.xpose.msra.mxu0 0.0
      %876 = vmatprep.subr.mxu0 0.0
      %877 = vmatpush1.xpose.msra.mxu0 0.0
      %878 = vmatprep.subr.mxu0 0.0
      %879 = vmatpush1.xpose.msra.mxu0 0.0
      %880 = vmatprep.subr.mxu0 0.0
      %881 = vmatpush1.xpose.msra.mxu0 0.0
      %882 = vmatprep.subr.mxu0 0.0
      %883 = vmatpush1.xpose.msra.mxu0 0.0
      %884 = vmatprep.subr.mxu0 0.0
      %885 = vmatpush1.xpose.msra.mxu0 0.0
      %886 = vmatprep.subr.mxu0 0.0
      %887 = vmatpush1.xpose.msra.mxu0 0.0
      %888 = vmatprep.subr.mxu0 0.0
      %889 = vmatpush1.xpose.msra.mxu0 %v856
      %890 = vmatprep.subr.mxu0 0.0
      %891 = vmatpush2.xpose.msra.mxu0 0.0
      %892 = vmatprep.subr.mxu0 0.0
      %893 = vmatpush2.xpose.msra.mxu0 0.0
      %894 = vmatprep.subr.mxu0 0.0
      %895 = vmatpush2.xpose.msra.mxu0 0.0
      %896 = vmatprep.subr.mxu0 0.0
      %897 = vmatpush2.xpose.msra.mxu0 0.0
      %898 = vmatprep.subr.mxu0 0.0
      %899 = vmatpush2.xpose.msra.mxu0 0.0
      %900 = vmatprep.subr.mxu0 0.0
      %901 = vmatpush2.xpose.msra.mxu0 0.0
      %902 = vmatprep.subr.mxu0 0.0
      %903 = vmatpush2.xpose.msra.mxu0 0.0
      %904 = vmatprep.subr.mxu0 0.0
      %905 = vmatpush2.xpose.msra.mxu0 0.0
      %906 = vmatprep.subr.mxu0 0.0
      %907 = vmatpush2.xpose.msra.mxu0 0.0
      %908 = vmatprep.subr.mxu0 0.0
      %909 = vmatpush2.xpose.msra.mxu0 0.0
      %910 = vmatprep.subr.mxu0 0.0
      %911 = vmatpush2.xpose.msra.mxu0 0.0
      %912 = vmatprep.subr.mxu0 0.0
      %913 = vmatpush2.xpose.msra.mxu0 0.0
      %914 = vmatprep.subr.mxu0 0.0
      %915 = vmatpush2.xpose.msra.mxu0 0.0
      %916 = vmatprep.subr.mxu0 0.0
      %917 = vmatpush2.xpose.msra.mxu0 0.0
      %918 = vmatprep.subr.mxu0 0.0
      %919 = vmatpush2.xpose.msra.mxu0 0.0
      %920 = vmatprep.subr.mxu0 0.0
      %921 = vmatpush2.xpose.msra.mxu0 0.0
      %922 = vmatprep.mubr.f32.mxu0 0.0
      %923 = vmatmul.mubr.f32.gmra.mxu0 %v853
      %v924 = vpop.f32.mrf.mxu0
      %v925 = vadd.f32 %v772, %v924
      %v926 = vpop.f32.mrf.mxu0
      %927 = vdwg.mxu0
      %v928 = vsel %vm775, %v849, -inf
      %929 = vmax.xlane.f32.xlu0 %v928
      %v930 = vpop.xlane.xlu0 %929
      %v931 = vsel %vm775, %v925, -inf
      %932 = vmax.xlane.f32.xlu0 %v931
      %v933 = vpop.xlane.xlu0 %932
      %v934 = vsub.f32 %v849, %v930
      %v935 = vsub.f32 %v925, %v933
      %v936 = vmul.f32 %v934, 1.442695
      %v937 = vpow.pop %v936
      %v938 = vmul.f32 %v935, 1.442695
      %v939 = vpow.pop %v938
      %v940 = vsel %vm775, %v937, 0.0
      %941 = vadd.xlane.f32.xlu0 %v940
      %v942 = vpop.xlane.xlu0 %941
      %v943 = vsel %vm775, %v939, 0.0
      %944 = vadd.xlane.f32.xlu0 %v943
      %v945 = vpop.xlane.xlu0 %944
      %v946 = vrcp.pop %v942
      %v947 = vrcp.pop %v945
      %v948 = vmul.f32 %v937, %v946
      %v949 = vmul.f32 %v939, %v947
      %v951 = vsel %vm775, %v948, 0
      %953 = vmatprep.subr.mxu0 0.0
      %954 = vmatpush1.msra.mxu0 0.0
      %955 = vmatprep.subr.mxu0 0.0
      %956 = vmatpush1.msra.mxu0 0.0
      %957 = vmatprep.subr.mxu0 0.0
      %958 = vmatpush1.msra.mxu0 0.0
      %959 = vmatprep.subr.mxu0 0.0
      %960 = vmatpush1.msra.mxu0 0.0
      %961 = vmatprep.subr.mxu0 0.0
      %962 = vmatpush1.msra.mxu0 0.0
      %963 = vmatprep.subr.mxu0 0.0
      %964 = vmatpush1.msra.mxu0 0.0
      %965 = vmatprep.subr.mxu0 0.0
      %966 = vmatpush1.msra.mxu0 0.0
      %967 = vmatprep.subr.mxu0 0.0
      %968 = vmatpush1.msra.mxu0 0.0
      %969 = vmatprep.subr.mxu0 0.0
      %970 = vmatpush1.msra.mxu0 0.0
      %971 = vmatprep.subr.mxu0 0.0
      %972 = vmatpush1.msra.mxu0 0.0
      %973 = vmatprep.subr.mxu0 0.0
      %974 = vmatpush1.msra.mxu0 0.0
      %975 = vmatprep.subr.mxu0 0.0
      %976 = vmatpush1.msra.mxu0 0.0
      %977 = vmatprep.subr.mxu0 0.0
      %978 = vmatpush1.msra.mxu0 0.0
      %979 = vmatprep.subr.mxu0 0.0
      %980 = vmatpush1.msra.mxu0 0.0
      %981 = vmatprep.subr.mxu0 0.0
      %982 = vmatpush1.msra.mxu0 0.0
      %983 = vmatprep.subr.mxu0 0.0
      %984 = vmatpush1.msra.mxu0 %v753
      %985 = vmatprep.subr.mxu0 0.0
      %986 = vmatpush2.msra.mxu0 0.0
      %987 = vmatprep.subr.mxu0 0.0
      %988 = vmatpush2.msra.mxu0 0.0
      %989 = vmatprep.subr.mxu0 0.0
      %990 = vmatpush2.msra.mxu0 0.0
      %991 = vmatprep.subr.mxu0 0.0
      %992 = vmatpush2.msra.mxu0 0.0
      %993 = vmatprep.subr.mxu0 0.0
      %994 = vmatpush2.msra.mxu0 0.0
      %995 = vmatprep.subr.mxu0 0.0
      %996 = vmatpush2.msra.mxu0 0.0
      %997 = vmatprep.subr.mxu0 0.0
      %998 = vmatpush2.msra.mxu0 0.0
      %999 = vmatprep.subr.mxu0 0.0
      %1000 = vmatpush2.msra.mxu0 0.0
      %1001 = vmatprep.subr.mxu0 0.0
      %1002 = vmatpush2.msra.mxu0 0.0
      %1003 = vmatprep.subr.mxu0 0.0
      %1004 = vmatpush2.msra.mxu0 0.0
      %1005 = vmatprep.subr.mxu0 0.0
      %1006 = vmatpush2.msra.mxu0 0.0
      %1007 = vmatprep.subr.mxu0 0.0
      %1008 = vmatpush2.msra.mxu0 0.0
      %1009 = vmatprep.subr.mxu0 0.0
      %1010 = vmatpush2.msra.mxu0 0.0
      %1011 = vmatprep.subr.mxu0 0.0
      %1012 = vmatpush2.msra.mxu0 0.0
      %1013 = vmatprep.subr.mxu0 0.0
      %1014 = vmatpush2.msra.mxu0 0.0
      %1015 = vmatprep.subr.mxu0 0.0
      %1016 = vmatpush2.msra.mxu0 0.0
      %1017 = vmatprep.mubr.f32.mxu0 0.0
      %1018 = vmatmul.mubr.f32.gmra.mxu0 %v951
      %v1019 = vpop.f32.mrf.mxu0
      %v1020 = vadd.f32 0.0, %v1019
      %v1021 = vpop.f32.mrf.mxu0
      %1022 = vdwg.mxu0
      %v1024 = vsel %vm775, %v949, 0
      %1026 = vmatprep.subr.mxu0 0.0
      %1027 = vmatpush1.msra.mxu0 0.0
      %1028 = vmatprep.subr.mxu0 0.0
      %1029 = vmatpush1.msra.mxu0 0.0
      %1030 = vmatprep.subr.mxu0 0.0
      %1031 = vmatpush1.msra.mxu0 0.0
      %1032 = vmatprep.subr.mxu0 0.0
      %1033 = vmatpush1.msra.mxu0 0.0
      %1034 = vmatprep.subr.mxu0 0.0
      %1035 = vmatpush1.msra.mxu0 0.0
      %1036 = vmatprep.subr.mxu0 0.0
      %1037 = vmatpush1.msra.mxu0 0.0
      %1038 = vmatprep.subr.mxu0 0.0
      %1039 = vmatpush1.msra.mxu0 0.0
      %1040 = vmatprep.subr.mxu0 0.0
      %1041 = vmatpush1.msra.mxu0 0.0
      %1042 = vmatprep.subr.mxu0 0.0
      %1043 = vmatpush1.msra.mxu0 0.0
      %1044 = vmatprep.subr.mxu0 0.0
      %1045 = vmatpush1.msra.mxu0 0.0
      %1046 = vmatprep.subr.mxu0 0.0
      %1047 = vmatpush1.msra.mxu0 0.0
      %1048 = vmatprep.subr.mxu0 0.0
      %1049 = vmatpush1.msra.mxu0 0.0
      %1050 = vmatprep.subr.mxu0 0.0
      %1051 = vmatpush1.msra.mxu0 0.0
      %1052 = vmatprep.subr.mxu0 0.0
      %1053 = vmatpush1.msra.mxu0 0.0
      %1054 = vmatprep.subr.mxu0 0.0
      %1055 = vmatpush1.msra.mxu0 0.0
      %1056 = vmatprep.subr.mxu0 0.0
      %1057 = vmatpush1.msra.mxu0 %v758
      %1058 = vmatprep.subr.mxu0 0.0
      %1059 = vmatpush2.msra.mxu0 0.0
      %1060 = vmatprep.subr.mxu0 0.0
      %1061 = vmatpush2.msra.mxu0 0.0
      %1062 = vmatprep.subr.mxu0 0.0
      %1063 = vmatpush2.msra.mxu0 0.0
      %1064 = vmatprep.subr.mxu0 0.0
      %1065 = vmatpush2.msra.mxu0 0.0
      %1066 = vmatprep.subr.mxu0 0.0
      %1067 = vmatpush2.msra.mxu0 0.0
      %1068 = vmatprep.subr.mxu0 0.0
      %1069 = vmatpush2.msra.mxu0 0.0
      %1070 = vmatprep.subr.mxu0 0.0
      %1071 = vmatpush2.msra.mxu0 0.0
      %1072 = vmatprep.subr.mxu0 0.0
      %1073 = vmatpush2.msra.mxu0 0.0
      %1074 = vmatprep.subr.mxu0 0.0
      %1075 = vmatpush2.msra.mxu0 0.0
      %1076 = vmatprep.subr.mxu0 0.0
      %1077 = vmatpush2.msra.mxu0 0.0
      %1078 = vmatprep.subr.mxu0 0.0
      %1079 = vmatpush2.msra.mxu0 0.0
      %1080 = vmatprep.subr.mxu0 0.0
      %1081 = vmatpush2.msra.mxu0 0.0
      %1082 = vmatprep.subr.mxu0 0.0
      %1083 = vmatpush2.msra.mxu0 0.0
      %1084 = vmatprep.subr.mxu0 0.0
      %1085 = vmatpush2.msra.mxu0 0.0
      %1086 = vmatprep.subr.mxu0 0.0
      %1087 = vmatpush2.msra.mxu0 0.0
      %1088 = vmatprep.subr.mxu0 0.0
      %1089 = vmatpush2.msra.mxu0 0.0
      %1090 = vmatprep.mubr.f32.mxu0 0.0
      %1091 = vmatmul.mubr.f32.gmra.mxu0 %v1024
      %v1092 = vpop.f32.mrf.mxu0
      %v1093 = vadd.f32 0.0, %v1092
      %v1094 = vpop.f32.mrf.mxu0
      %1095 = vdwg.mxu0
      %1096 = vrot.lane.b32.xlu0 %v601, 120
      %v1097 = vpop.permute.xlu0 %1096
      %1098 = vrot.lane.b32.xlu0 %v674, 120
      %v1099 = vpop.permute.xlu0 %1098
      %v1100 = vsel %vm775, %v1097, 0
      %v1102 = vsel %vm775, %v1099, 0
      %1104 = vmatprep.subr.mxu0 0.0
      %1105 = vmatpush1.xpose.msra.mxu0 0.0
      %1106 = vmatprep.subr.mxu0 0.0
      %1107 = vmatpush1.xpose.msra.mxu0 0.0
      %1108 = vmatprep.subr.mxu0 0.0
      %1109 = vmatpush1.xpose.msra.mxu0 0.0
      %1110 = vmatprep.subr.mxu0 0.0
      %1111 = vmatpush1.xpose.msra.mxu0 0.0
      %1112 = vmatprep.subr.mxu0 0.0
      %1113 = vmatpush1.xpose.msra.mxu0 0.0
      %1114 = vmatprep.subr.mxu0 0.0
      %1115 = vmatpush1.xpose.msra.mxu0 0.0
      %1116 = vmatprep.subr.mxu0 0.0
      %1117 = vmatpush1.xpose.msra.mxu0 0.0
      %1118 = vmatprep.subr.mxu0 0.0
      %1119 = vmatpush1.xpose.msra.mxu0 0.0
      %1120 = vmatprep.subr.mxu0 0.0
      %1121 = vmatpush1.xpose.msra.mxu0 0.0
      %1122 = vmatprep.subr.mxu0 0.0
      %1123 = vmatpush1.xpose.msra.mxu0 0.0
      %1124 = vmatprep.subr.mxu0 0.0
      %1125 = vmatpush1.xpose.msra.mxu0 0.0
      %1126 = vmatprep.subr.mxu0 0.0
      %1127 = vmatpush1.xpose.msra.mxu0 0.0
      %1128 = vmatprep.subr.mxu0 0.0
      %1129 = vmatpush1.xpose.msra.mxu0 0.0
      %1130 = vmatprep.subr.mxu0 0.0
      %1131 = vmatpush1.xpose.msra.mxu0 0.0
      %1132 = vmatprep.subr.mxu0 0.0
      %1133 = vmatpush1.xpose.msra.mxu0 0.0
      %1134 = vmatprep.subr.mxu0 0.0
      %1135 = vmatpush1.xpose.msra.mxu0 %v1102
      %1136 = vmatprep.subr.mxu0 0.0
      %1137 = vmatpush2.xpose.msra.mxu0 0.0
      %1138 = vmatprep.subr.mxu0 0.0
      %1139 = vmatpush2.xpose.msra.mxu0 0.0
      %1140 = vmatprep.subr.mxu0 0.0
      %1141 = vmatpush2.xpose.msra.mxu0 0.0
      %1142 = vmatprep.subr.mxu0 0.0
      %1143 = vmatpush2.xpose.msra.mxu0 0.0
      %1144 = vmatprep.subr.mxu0 0.0
      %1145 = vmatpush2.xpose.msra.mxu0 0.0
      %1146 = vmatprep.subr.mxu0 0.0
      %1147 = vmatpush2.xpose.msra.mxu0 0.0
      %1148 = vmatprep.subr.mxu0 0.0
      %1149 = vmatpush2.xpose.msra.mxu0 0.0
      %1150 = vmatprep.subr.mxu0 0.0
      %1151 = vmatpush2.xpose.msra.mxu0 0.0
      %1152 = vmatprep.subr.mxu0 0.0
      %1153 = vmatpush2.xpose.msra.mxu0 0.0
      %1154 = vmatprep.subr.mxu0 0.0
      %1155 = vmatpush2.xpose.msra.mxu0 0.0
      %1156 = vmatprep.subr.mxu0 0.0
      %1157 = vmatpush2.xpose.msra.mxu0 0.0
      %1158 = vmatprep.subr.mxu0 0.0
      %1159 = vmatpush2.xpose.msra.mxu0 0.0
      %1160 = vmatprep.subr.mxu0 0.0
      %1161 = vmatpush2.xpose.msra.mxu0 0.0
      %1162 = vmatprep.subr.mxu0 0.0
      %1163 = vmatpush2.xpose.msra.mxu0 0.0
      %1164 = vmatprep.subr.mxu0 0.0
      %1165 = vmatpush2.xpose.msra.mxu0 0.0
      %1166 = vmatprep.subr.mxu0 0.0
      %1167 = vmatpush2.xpose.msra.mxu0 0.0
      %1168 = vmatprep.mubr.f32.mxu0 0.0
      %1169 = vmatmul.mubr.f32.gmra.mxu0 %v1100
      %v1170 = vpop.f32.mrf.mxu0
      %v1171 = vadd.f32 %v768, %v1170
      %v1172 = vpop.f32.mrf.mxu0
      %1173 = vdwg.mxu0
      %1174 = vrot.lane.b32.xlu0 %v602, 120
      %v1175 = vpop.permute.xlu0 %1174
      %1176 = vrot.lane.b32.xlu0 %v679, 120
      %v1177 = vpop.permute.xlu0 %1176
      %v1178 = vsel %vm775, %v1175, 0
      %v1180 = vsel %vm775, %v1177, 0
      %1182 = vmatprep.subr.mxu0 0.0
      %1183 = vmatpush1.xpose.msra.mxu0 0.0
      %1184 = vmatprep.subr.mxu0 0.0
      %1185 = vmatpush1.xpose.msra.mxu0 0.0
      %1186 = vmatprep.subr.mxu0 0.0
      %1187 = vmatpush1.xpose.msra.mxu0 0.0
      %1188 = vmatprep.subr.mxu0 0.0
      %1189 = vmatpush1.xpose.msra.mxu0 0.0
      %1190 = vmatprep.subr.mxu0 0.0
      %1191 = vmatpush1.xpose.msra.mxu0 0.0
      %1192 = vmatprep.subr.mxu0 0.0
      %1193 = vmatpush1.xpose.msra.mxu0 0.0
      %1194 = vmatprep.subr.mxu0 0.0
      %1195 = vmatpush1.xpose.msra.mxu0 0.0
      %1196 = vmatprep.subr.mxu0 0.0
      %1197 = vmatpush1.xpose.msra.mxu0 0.0
      %1198 = vmatprep.subr.mxu0 0.0
      %1199 = vmatpush1.xpose.msra.mxu0 0.0
      %1200 = vmatprep.subr.mxu0 0.0
      %1201 = vmatpush1.xpose.msra.mxu0 0.0
      %1202 = vmatprep.subr.mxu0 0.0
      %1203 = vmatpush1.xpose.msra.mxu0 0.0
      %1204 = vmatprep.subr.mxu0 0.0
      %1205 = vmatpush1.xpose.msra.mxu0 0.0
      %1206 = vmatprep.subr.mxu0 0.0
      %1207 = vmatpush1.xpose.msra.mxu0 0.0
      %1208 = vmatprep.subr.mxu0 0.0
      %1209 = vmatpush1.xpose.msra.mxu0 0.0
      %1210 = vmatprep.subr.mxu0 0.0
      %1211 = vmatpush1.xpose.msra.mxu0 0.0
      %1212 = vmatprep.subr.mxu0 0.0
      %1213 = vmatpush1.xpose.msra.mxu0 %v1180
      %1214 = vmatprep.subr.mxu0 0.0
      %1215 = vmatpush2.xpose.msra.mxu0 0.0
      %1216 = vmatprep.subr.mxu0 0.0
      %1217 = vmatpush2.xpose.msra.mxu0 0.0
      %1218 = vmatprep.subr.mxu0 0.0
      %1219 = vmatpush2.xpose.msra.mxu0 0.0
      %1220 = vmatprep.subr.mxu0 0.0
      %1221 = vmatpush2.xpose.msra.mxu0 0.0
      %1222 = vmatprep.subr.mxu0 0.0
      %1223 = vmatpush2.xpose.msra.mxu0 0.0
      %1224 = vmatprep.subr.mxu0 0.0
      %1225 = vmatpush2.xpose.msra.mxu0 0.0
      %1226 = vmatprep.subr.mxu0 0.0
      %1227 = vmatpush2.xpose.msra.mxu0 0.0
      %1228 = vmatprep.subr.mxu0 0.0
      %1229 = vmatpush2.xpose.msra.mxu0 0.0
      %1230 = vmatprep.subr.mxu0 0.0
      %1231 = vmatpush2.xpose.msra.mxu0 0.0
      %1232 = vmatprep.subr.mxu0 0.0
      %1233 = vmatpush2.xpose.msra.mxu0 0.0
      %1234 = vmatprep.subr.mxu0 0.0
      %1235 = vmatpush2.xpose.msra.mxu0 0.0
      %1236 = vmatprep.subr.mxu0 0.0
      %1237 = vmatpush2.xpose.msra.mxu0 0.0
      %1238 = vmatprep.subr.mxu0 0.0
      %1239 = vmatpush2.xpose.msra.mxu0 0.0
      %1240 = vmatprep.subr.mxu0 0.0
      %1241 = vmatpush2.xpose.msra.mxu0 0.0
      %1242 = vmatprep.subr.mxu0 0.0
      %1243 = vmatpush2.xpose.msra.mxu0 0.0
      %1244 = vmatprep.subr.mxu0 0.0
      %1245 = vmatpush2.xpose.msra.mxu0 0.0
      %1246 = vmatprep.mubr.f32.mxu0 0.0
      %1247 = vmatmul.mubr.f32.gmra.mxu0 %v1178
      %v1248 = vpop.f32.mrf.mxu0
      %v1249 = vadd.f32 %v772, %v1248
      %v1250 = vpop.f32.mrf.mxu0
      %1251 = vdwg.mxu0
      %v1252 = vsel %vm775, %v1171, -inf
      %1253 = vmax.xlane.f32.xlu0 %v1252
      %v1254 = vpop.xlane.xlu0 %1253
      %v1255 = vsel %vm775, %v1249, -inf
      %1256 = vmax.xlane.f32.xlu0 %v1255
      %v1257 = vpop.xlane.xlu0 %1256
      %v1258 = vsub.f32 %v1171, %v1254
      %v1259 = vsub.f32 %v1249, %v1257
      %v1260 = vmul.f32 %v1258, 1.442695
      %v1261 = vpow.pop %v1260
      %v1262 = vmul.f32 %v1259, 1.442695
      %v1263 = vpow.pop %v1262
      %v1264 = vsel %vm775, %v1261, 0.0
      %1265 = vadd.xlane.f32.xlu0 %v1264
      %v1266 = vpop.xlane.xlu0 %1265
      %v1267 = vsel %vm775, %v1263, 0.0
      %1268 = vadd.xlane.f32.xlu0 %v1267
      %v1269 = vpop.xlane.xlu0 %1268
      %v1270 = vrcp.pop %v1266
      %v1271 = vrcp.pop %v1269
      %v1272 = vmul.f32 %v1261, %v1270
      %v1273 = vmul.f32 %v1263, %v1271
      %1275 = vrot.lane.b32.xlu0 %v753, 120
      %v1276 = vpop.permute.xlu0 %1275
      %v1279 = vsel %vm775, %v1272, 0
      %1281 = vmatprep.subr.mxu0 0.0
      %1282 = vmatpush1.msra.mxu0 0.0
      %1283 = vmatprep.subr.mxu0 0.0
      %1284 = vmatpush1.msra.mxu0 0.0
      %1285 = vmatprep.subr.mxu0 0.0
      %1286 = vmatpush1.msra.mxu0 0.0
      %1287 = vmatprep.subr.mxu0 0.0
      %1288 = vmatpush1.msra.mxu0 0.0
      %1289 = vmatprep.subr.mxu0 0.0
      %1290 = vmatpush1.msra.mxu0 0.0
      %1291 = vmatprep.subr.mxu0 0.0
      %1292 = vmatpush1.msra.mxu0 0.0
      %1293 = vmatprep.subr.mxu0 0.0
      %1294 = vmatpush1.msra.mxu0 0.0
      %1295 = vmatprep.subr.mxu0 0.0
      %1296 = vmatpush1.msra.mxu0 0.0
      %1297 = vmatprep.subr.mxu0 0.0
      %1298 = vmatpush1.msra.mxu0 0.0
      %1299 = vmatprep.subr.mxu0 0.0
      %1300 = vmatpush1.msra.mxu0 0.0
      %1301 = vmatprep.subr.mxu0 0.0
      %1302 = vmatpush1.msra.mxu0 0.0
      %1303 = vmatprep.subr.mxu0 0.0
      %1304 = vmatpush1.msra.mxu0 0.0
      %1305 = vmatprep.subr.mxu0 0.0
      %1306 = vmatpush1.msra.mxu0 0.0
      %1307 = vmatprep.subr.mxu0 0.0
      %1308 = vmatpush1.msra.mxu0 0.0
      %1309 = vmatprep.subr.mxu0 0.0
      %1310 = vmatpush1.msra.mxu0 0.0
      %1311 = vmatprep.subr.mxu0 0.0
      %1312 = vmatpush1.msra.mxu0 %v1276
      %1313 = vmatprep.subr.mxu0 0.0
      %1314 = vmatpush2.msra.mxu0 0.0
      %1315 = vmatprep.subr.mxu0 0.0
      %1316 = vmatpush2.msra.mxu0 0.0
      %1317 = vmatprep.subr.mxu0 0.0
      %1318 = vmatpush2.msra.mxu0 0.0
      %1319 = vmatprep.subr.mxu0 0.0
      %1320 = vmatpush2.msra.mxu0 0.0
      %1321 = vmatprep.subr.mxu0 0.0
      %1322 = vmatpush2.msra.mxu0 0.0
      %1323 = vmatprep.subr.mxu0 0.0
      %1324 = vmatpush2.msra.mxu0 0.0
      %1325 = vmatprep.subr.mxu0 0.0
      %1326 = vmatpush2.msra.mxu0 0.0
      %1327 = vmatprep.subr.mxu0 0.0
      %1328 = vmatpush2.msra.mxu0 0.0
      %1329 = vmatprep.subr.mxu0 0.0
      %1330 = vmatpush2.msra.mxu0 0.0
      %1331 = vmatprep.subr.mxu0 0.0
      %1332 = vmatpush2.msra.mxu0 0.0
      %1333 = vmatprep.subr.mxu0 0.0
      %1334 = vmatpush2.msra.mxu0 0.0
      %1335 = vmatprep.subr.mxu0 0.0
      %1336 = vmatpush2.msra.mxu0 0.0
      %1337 = vmatprep.subr.mxu0 0.0
      %1338 = vmatpush2.msra.mxu0 0.0
      %1339 = vmatprep.subr.mxu0 0.0
      %1340 = vmatpush2.msra.mxu0 0.0
      %1341 = vmatprep.subr.mxu0 0.0
      %1342 = vmatpush2.msra.mxu0 0.0
      %1343 = vmatprep.subr.mxu0 0.0
      %1344 = vmatpush2.msra.mxu0 0.0
      %1345 = vmatprep.mubr.f32.mxu0 0.0
      %1346 = vmatmul.mubr.f32.gmra.mxu0 %v1279
      %v1347 = vpop.f32.mrf.mxu0
      %v1348 = vadd.f32 0.0, %v1347
      %v1349 = vpop.f32.mrf.mxu0
      %1350 = vdwg.mxu0
      %1352 = vrot.lane.b32.xlu0 %v758, 120
      %v1353 = vpop.permute.xlu0 %1352
      %v1356 = vsel %vm775, %v1273, 0
      %1358 = vmatprep.subr.mxu0 0.0
      %1359 = vmatpush1.msra.mxu0 0.0
      %1360 = vmatprep.subr.mxu0 0.0
      %1361 = vmatpush1.msra.mxu0 0.0
      %1362 = vmatprep.subr.mxu0 0.0
      %1363 = vmatpush1.msra.mxu0 0.0
      %1364 = vmatprep.subr.mxu0 0.0
      %1365 = vmatpush1.msra.mxu0 0.0
      %1366 = vmatprep.subr.mxu0 0.0
      %1367 = vmatpush1.msra.mxu0 0.0
      %1368 = vmatprep.subr.mxu0 0.0
      %1369 = vmatpush1.msra.mxu0 0.0
      %1370 = vmatprep.subr.mxu0 0.0
      %1371 = vmatpush1.msra.mxu0 0.0
      %1372 = vmatprep.subr.mxu0 0.0
      %1373 = vmatpush1.msra.mxu0 0.0
      %1374 = vmatprep.subr.mxu0 0.0
      %1375 = vmatpush1.msra.mxu0 0.0
      %1376 = vmatprep.subr.mxu0 0.0
      %1377 = vmatpush1.msra.mxu0 0.0
      %1378 = vmatprep.subr.mxu0 0.0
      %1379 = vmatpush1.msra.mxu0 0.0
      %1380 = vmatprep.subr.mxu0 0.0
      %1381 = vmatpush1.msra.mxu0 0.0
      %1382 = vmatprep.subr.mxu0 0.0
      %1383 = vmatpush1.msra.mxu0 0.0
      %1384 = vmatprep.subr.mxu0 0.0
      %1385 = vmatpush1.msra.mxu0 0.0
      %1386 = vmatprep.subr.mxu0 0.0
      %1387 = vmatpush1.msra.mxu0 0.0
      %1388 = vmatprep.subr.mxu0 0.0
      %1389 = vmatpush1.msra.mxu0 %v1353
      %1390 = vmatprep.subr.mxu0 0.0
      %1391 = vmatpush2.msra.mxu0 0.0
      %1392 = vmatprep.subr.mxu0 0.0
      %1393 = vmatpush2.msra.mxu0 0.0
      %1394 = vmatprep.subr.mxu0 0.0
      %1395 = vmatpush2.msra.mxu0 0.0
      %1396 = vmatprep.subr.mxu0 0.0
      %1397 = vmatpush2.msra.mxu0 0.0
      %1398 = vmatprep.subr.mxu0 0.0
      %1399 = vmatpush2.msra.mxu0 0.0
      %1400 = vmatprep.subr.mxu0 0.0
      %1401 = vmatpush2.msra.mxu0 0.0
      %1402 = vmatprep.subr.mxu0 0.0
      %1403 = vmatpush2.msra.mxu0 0.0
      %1404 = vmatprep.subr.mxu0 0.0
      %1405 = vmatpush2.msra.mxu0 0.0
      %1406 = vmatprep.subr.mxu0 0.0
      %1407 = vmatpush2.msra.mxu0 0.0
      %1408 = vmatprep.subr.mxu0 0.0
      %1409 = vmatpush2.msra.mxu0 0.0
      %1410 = vmatprep.subr.mxu0 0.0
      %1411 = vmatpush2.msra.mxu0 0.0
      %1412 = vmatprep.subr.mxu0 0.0
      %1413 = vmatpush2.msra.mxu0 0.0
      %1414 = vmatprep.subr.mxu0 0.0
      %1415 = vmatpush2.msra.mxu0 0.0
      %1416 = vmatprep.subr.mxu0 0.0
      %1417 = vmatpush2.msra.mxu0 0.0
      %1418 = vmatprep.subr.mxu0 0.0
      %1419 = vmatpush2.msra.mxu0 0.0
      %1420 = vmatprep.subr.mxu0 0.0
      %1421 = vmatpush2.msra.mxu0 0.0
      %1422 = vmatprep.mubr.f32.mxu0 0.0
      %1423 = vmatmul.mubr.f32.gmra.mxu0 %v1356
      %v1424 = vpop.f32.mrf.mxu0
      %v1425 = vadd.f32 0.0, %v1424
      %v1426 = vpop.f32.mrf.mxu0
      %1427 = vdwg.mxu0
      %1428 = vrot.lane.b32.xlu0 %v601, 112
      %v1429 = vpop.permute.xlu0 %1428
      %1430 = vrot.lane.b32.xlu0 %v674, 112
      %v1431 = vpop.permute.xlu0 %1430
      %v1432 = vsel %vm775, %v1429, 0
      %v1434 = vsel %vm775, %v1431, 0
      %1436 = vmatprep.subr.mxu0 0.0
      %1437 = vmatpush1.xpose.msra.mxu0 0.0
      %1438 = vmatprep.subr.mxu0 0.0
      %1439 = vmatpush1.xpose.msra.mxu0 0.0
      %1440 = vmatprep.subr.mxu0 0.0
      %1441 = vmatpush1.xpose.msra.mxu0 0.0
      %1442 = vmatprep.subr.mxu0 0.0
      %1443 = vmatpush1.xpose.msra.mxu0 0.0
      %1444 = vmatprep.subr.mxu0 0.0
      %1445 = vmatpush1.xpose.msra.mxu0 0.0
      %1446 = vmatprep.subr.mxu0 0.0
      %1447 = vmatpush1.xpose.msra.mxu0 0.0
      %1448 = vmatprep.subr.mxu0 0.0
      %1449 = vmatpush1.xpose.msra.mxu0 0.0
      %1450 = vmatprep.subr.mxu0 0.0
      %1451 = vmatpush1.xpose.msra.mxu0 0.0
      %1452 = vmatprep.subr.mxu0 0.0
      %1453 = vmatpush1.xpose.msra.mxu0 0.0
      %1454 = vmatprep.subr.mxu0 0.0
      %1455 = vmatpush1.xpose.msra.mxu0 0.0
      %1456 = vmatprep.subr.mxu0 0.0
      %1457 = vmatpush1.xpose.msra.mxu0 0.0
      %1458 = vmatprep.subr.mxu0 0.0
      %1459 = vmatpush1.xpose.msra.mxu0 0.0
      %1460 = vmatprep.subr.mxu0 0.0
      %1461 = vmatpush1.xpose.msra.mxu0 0.0
      %1462 = vmatprep.subr.mxu0 0.0
      %1463 = vmatpush1.xpose.msra.mxu0 0.0
      %1464 = vmatprep.subr.mxu0 0.0
      %1465 = vmatpush1.xpose.msra.mxu0 0.0
      %1466 = vmatprep.subr.mxu0 0.0
      %1467 = vmatpush1.xpose.msra.mxu0 %v1434
      %1468 = vmatprep.subr.mxu0 0.0
      %1469 = vmatpush2.xpose.msra.mxu0 0.0
      %1470 = vmatprep.subr.mxu0 0.0
      %1471 = vmatpush2.xpose.msra.mxu0 0.0
      %1472 = vmatprep.subr.mxu0 0.0
      %1473 = vmatpush2.xpose.msra.mxu0 0.0
      %1474 = vmatprep.subr.mxu0 0.0
      %1475 = vmatpush2.xpose.msra.mxu0 0.0
      %1476 = vmatprep.subr.mxu0 0.0
      %1477 = vmatpush2.xpose.msra.mxu0 0.0
      %1478 = vmatprep.subr.mxu0 0.0
      %1479 = vmatpush2.xpose.msra.mxu0 0.0
      %1480 = vmatprep.subr.mxu0 0.0
      %1481 = vmatpush2.xpose.msra.mxu0 0.0
      %1482 = vmatprep.subr.mxu0 0.0
      %1483 = vmatpush2.xpose.msra.mxu0 0.0
      %1484 = vmatprep.subr.mxu0 0.0
      %1485 = vmatpush2.xpose.msra.mxu0 0.0
      %1486 = vmatprep.subr.mxu0 0.0
      %1487 = vmatpush2.xpose.msra.mxu0 0.0
      %1488 = vmatprep.subr.mxu0 0.0
      %1489 = vmatpush2.xpose.msra.mxu0 0.0
      %1490 = vmatprep.subr.mxu0 0.0
      %1491 = vmatpush2.xpose.msra.mxu0 0.0
      %1492 = vmatprep.subr.mxu0 0.0
      %1493 = vmatpush2.xpose.msra.mxu0 0.0
      %1494 = vmatprep.subr.mxu0 0.0
      %1495 = vmatpush2.xpose.msra.mxu0 0.0
      %1496 = vmatprep.subr.mxu0 0.0
      %1497 = vmatpush2.xpose.msra.mxu0 0.0
      %1498 = vmatprep.subr.mxu0 0.0
      %1499 = vmatpush2.xpose.msra.mxu0 0.0
      %1500 = vmatprep.mubr.f32.mxu0 0.0
      %1501 = vmatmul.mubr.f32.gmra.mxu0 %v1432
      %v1502 = vpop.f32.mrf.mxu0
      %v1503 = vadd.f32 %v768, %v1502
      %v1504 = vpop.f32.mrf.mxu0
      %1505 = vdwg.mxu0
      %1506 = vrot.lane.b32.xlu0 %v602, 112
      %v1507 = vpop.permute.xlu0 %1506
      %1508 = vrot.lane.b32.xlu0 %v679, 112
      %v1509 = vpop.permute.xlu0 %1508
      %v1510 = vsel %vm775, %v1507, 0
      %v1512 = vsel %vm775, %v1509, 0
      %1514 = vmatprep.subr.mxu0 0.0
      %1515 = vmatpush1.xpose.msra.mxu0 0.0
      %1516 = vmatprep.subr.mxu0 0.0
      %1517 = vmatpush1.xpose.msra.mxu0 0.0
      %1518 = vmatprep.subr.mxu0 0.0
      %1519 = vmatpush1.xpose.msra.mxu0 0.0
      %1520 = vmatprep.subr.mxu0 0.0
      %1521 = vmatpush1.xpose.msra.mxu0 0.0
      %1522 = vmatprep.subr.mxu0 0.0
      %1523 = vmatpush1.xpose.msra.mxu0 0.0
      %1524 = vmatprep.subr.mxu0 0.0
      %1525 = vmatpush1.xpose.msra.mxu0 0.0
      %1526 = vmatprep.subr.mxu0 0.0
      %1527 = vmatpush1.xpose.msra.mxu0 0.0
      %1528 = vmatprep.subr.mxu0 0.0
      %1529 = vmatpush1.xpose.msra.mxu0 0.0
      %1530 = vmatprep.subr.mxu0 0.0
      %1531 = vmatpush1.xpose.msra.mxu0 0.0
      %1532 = vmatprep.subr.mxu0 0.0
      %1533 = vmatpush1.xpose.msra.mxu0 0.0
      %1534 = vmatprep.subr.mxu0 0.0
      %1535 = vmatpush1.xpose.msra.mxu0 0.0
      %1536 = vmatprep.subr.mxu0 0.0
      %1537 = vmatpush1.xpose.msra.mxu0 0.0
      %1538 = vmatprep.subr.mxu0 0.0
      %1539 = vmatpush1.xpose.msra.mxu0 0.0
      %1540 = vmatprep.subr.mxu0 0.0
      %1541 = vmatpush1.xpose.msra.mxu0 0.0
      %1542 = vmatprep.subr.mxu0 0.0
      %1543 = vmatpush1.xpose.msra.mxu0 0.0
      %1544 = vmatprep.subr.mxu0 0.0
      %1545 = vmatpush1.xpose.msra.mxu0 %v1512
      %1546 = vmatprep.subr.mxu0 0.0
      %1547 = vmatpush2.xpose.msra.mxu0 0.0
      %1548 = vmatprep.subr.mxu0 0.0
      %1549 = vmatpush2.xpose.msra.mxu0 0.0
      %1550 = vmatprep.subr.mxu0 0.0
      %1551 = vmatpush2.xpose.msra.mxu0 0.0
      %1552 = vmatprep.subr.mxu0 0.0
      %1553 = vmatpush2.xpose.msra.mxu0 0.0
      %1554 = vmatprep.subr.mxu0 0.0
      %1555 = vmatpush2.xpose.msra.mxu0 0.0
      %1556 = vmatprep.subr.mxu0 0.0
      %1557 = vmatpush2.xpose.msra.mxu0 0.0
      %1558 = vmatprep.subr.mxu0 0.0
      %1559 = vmatpush2.xpose.msra.mxu0 0.0
      %1560 = vmatprep.subr.mxu0 0.0
      %1561 = vmatpush2.xpose.msra.mxu0 0.0
      %1562 = vmatprep.subr.mxu0 0.0
      %1563 = vmatpush2.xpose.msra.mxu0 0.0
      %1564 = vmatprep.subr.mxu0 0.0
      %1565 = vmatpush2.xpose.msra.mxu0 0.0
      %1566 = vmatprep.subr.mxu0 0.0
      %1567 = vmatpush2.xpose.msra.mxu0 0.0
      %1568 = vmatprep.subr.mxu0 0.0
      %1569 = vmatpush2.xpose.msra.mxu0 0.0
      %1570 = vmatprep.subr.mxu0 0.0
      %1571 = vmatpush2.xpose.msra.mxu0 0.0
      %1572 = vmatprep.subr.mxu0 0.0
      %1573 = vmatpush2.xpose.msra.mxu0 0.0
      %1574 = vmatprep.subr.mxu0 0.0
      %1575 = vmatpush2.xpose.msra.mxu0 0.0
      %1576 = vmatprep.subr.mxu0 0.0
      %1577 = vmatpush2.xpose.msra.mxu0 0.0
      %1578 = vmatprep.mubr.f32.mxu0 0.0
      %1579 = vmatmul.mubr.f32.gmra.mxu0 %v1510
      %v1580 = vpop.f32.mrf.mxu0
      %v1581 = vadd.f32 %v772, %v1580
      %v1582 = vpop.f32.mrf.mxu0
      %1583 = vdwg.mxu0
      %v1584 = vsel %vm775, %v1503, -inf
      %1585 = vmax.xlane.f32.xlu0 %v1584
      %v1586 = vpop.xlane.xlu0 %1585
      %v1587 = vsel %vm775, %v1581, -inf
      %1588 = vmax.xlane.f32.xlu0 %v1587
      %v1589 = vpop.xlane.xlu0 %1588
      %v1590 = vsub.f32 %v1503, %v1586
      %v1591 = vsub.f32 %v1581, %v1589
      %v1592 = vmul.f32 %v1590, 1.442695
      %v1593 = vpow.pop %v1592
      %v1594 = vmul.f32 %v1591, 1.442695
      %v1595 = vpow.pop %v1594
      %v1596 = vsel %vm775, %v1593, 0.0
      %1597 = vadd.xlane.f32.xlu0 %v1596
      %v1598 = vpop.xlane.xlu0 %1597
      %v1599 = vsel %vm775, %v1595, 0.0
      %1600 = vadd.xlane.f32.xlu0 %v1599
      %v1601 = vpop.xlane.xlu0 %1600
      %v1602 = vrcp.pop %v1598
      %v1603 = vrcp.pop %v1601
      %v1604 = vmul.f32 %v1593, %v1602
      %v1605 = vmul.f32 %v1595, %v1603
      %1606 = vrot.lane.b32.xlu0 %v753, 112
      %v1607 = vpop.permute.xlu0 %1606
      %v1610 = vsel %vm775, %v1604, 0
      %1612 = vmatprep.subr.mxu0 0.0
      %1613 = vmatpush1.msra.mxu0 0.0
      %1614 = vmatprep.subr.mxu0 0.0
      %1615 = vmatpush1.msra.mxu0 0.0
      %1616 = vmatprep.subr.mxu0 0.0
      %1617 = vmatpush1.msra.mxu0 0.0
      %1618 = vmatprep.subr.mxu0 0.0
      %1619 = vmatpush1.msra.mxu0 0.0
      %1620 = vmatprep.subr.mxu0 0.0
      %1621 = vmatpush1.msra.mxu0 0.0
      %1622 = vmatprep.subr.mxu0 0.0
      %1623 = vmatpush1.msra.mxu0 0.0
      %1624 = vmatprep.subr.mxu0 0.0
      %1625 = vmatpush1.msra.mxu0 0.0
      %1626 = vmatprep.subr.mxu0 0.0
      %1627 = vmatpush1.msra.mxu0 0.0
      %1628 = vmatprep.subr.mxu0 0.0
      %1629 = vmatpush1.msra.mxu0 0.0
      %1630 = vmatprep.subr.mxu0 0.0
      %1631 = vmatpush1.msra.mxu0 0.0
      %1632 = vmatprep.subr.mxu0 0.0
      %1633 = vmatpush1.msra.mxu0 0.0
      %1634 = vmatprep.subr.mxu0 0.0
      %1635 = vmatpush1.msra.mxu0 0.0
      %1636 = vmatprep.subr.mxu0 0.0
      %1637 = vmatpush1.msra.mxu0 0.0
      %1638 = vmatprep.subr.mxu0 0.0
      %1639 = vmatpush1.msra.mxu0 0.0
      %1640 = vmatprep.subr.mxu0 0.0
      %1641 = vmatpush1.msra.mxu0 0.0
      %1642 = vmatprep.subr.mxu0 0.0
      %1643 = vmatpush1.msra.mxu0 %v1607
      %1644 = vmatprep.subr.mxu0 0.0
      %1645 = vmatpush2.msra.mxu0 0.0
      %1646 = vmatprep.subr.mxu0 0.0
      %1647 = vmatpush2.msra.mxu0 0.0
      %1648 = vmatprep.subr.mxu0 0.0
      %1649 = vmatpush2.msra.mxu0 0.0
      %1650 = vmatprep.subr.mxu0 0.0
      %1651 = vmatpush2.msra.mxu0 0.0
      %1652 = vmatprep.subr.mxu0 0.0
      %1653 = vmatpush2.msra.mxu0 0.0
      %1654 = vmatprep.subr.mxu0 0.0
      %1655 = vmatpush2.msra.mxu0 0.0
      %1656 = vmatprep.subr.mxu0 0.0
      %1657 = vmatpush2.msra.mxu0 0.0
      %1658 = vmatprep.subr.mxu0 0.0
      %1659 = vmatpush2.msra.mxu0 0.0
      %1660 = vmatprep.subr.mxu0 0.0
      %1661 = vmatpush2.msra.mxu0 0.0
      %1662 = vmatprep.subr.mxu0 0.0
      %1663 = vmatpush2.msra.mxu0 0.0
      %1664 = vmatprep.subr.mxu0 0.0
      %1665 = vmatpush2.msra.mxu0 0.0
      %1666 = vmatprep.subr.mxu0 0.0
      %1667 = vmatpush2.msra.mxu0 0.0
      %1668 = vmatprep.subr.mxu0 0.0
      %1669 = vmatpush2.msra.mxu0 0.0
      %1670 = vmatprep.subr.mxu0 0.0
      %1671 = vmatpush2.msra.mxu0 0.0
      %1672 = vmatprep.subr.mxu0 0.0
      %1673 = vmatpush2.msra.mxu0 0.0
      %1674 = vmatprep.subr.mxu0 0.0
      %1675 = vmatpush2.msra.mxu0 0.0
      %1676 = vmatprep.mubr.f32.mxu0 0.0
      %1677 = vmatmul.mubr.f32.gmra.mxu0 %v1610
      %v1678 = vpop.f32.mrf.mxu0
      %v1679 = vadd.f32 0.0, %v1678
      %v1680 = vpop.f32.mrf.mxu0
      %1681 = vdwg.mxu0
      %1682 = vrot.lane.b32.xlu0 %v758, 112
      %v1683 = vpop.permute.xlu0 %1682
      %v1686 = vsel %vm775, %v1605, 0
      %1688 = vmatprep.subr.mxu0 0.0
      %1689 = vmatpush1.msra.mxu0 0.0
      %1690 = vmatprep.subr.mxu0 0.0
      %1691 = vmatpush1.msra.mxu0 0.0
      %1692 = vmatprep.subr.mxu0 0.0
      %1693 = vmatpush1.msra.mxu0 0.0
      %1694 = vmatprep.subr.mxu0 0.0
      %1695 = vmatpush1.msra.mxu0 0.0
      %1696 = vmatprep.subr.mxu0 0.0
      %1697 = vmatpush1.msra.mxu0 0.0
      %1698 = vmatprep.subr.mxu0 0.0
      %1699 = vmatpush1.msra.mxu0 0.0
      %1700 = vmatprep.subr.mxu0 0.0
      %1701 = vmatpush1.msra.mxu0 0.0
      %1702 = vmatprep.subr.mxu0 0.0
      %1703 = vmatpush1.msra.mxu0 0.0
      %1704 = vmatprep.subr.mxu0 0.0
      %1705 = vmatpush1.msra.mxu0 0.0
      %1706 = vmatprep.subr.mxu0 0.0
      %1707 = vmatpush1.msra.mxu0 0.0
      %1708 = vmatprep.subr.mxu0 0.0
      %1709 = vmatpush1.msra.mxu0 0.0
      %1710 = vmatprep.subr.mxu0 0.0
      %1711 = vmatpush1.msra.mxu0 0.0
      %1712 = vmatprep.subr.mxu0 0.0
      %1713 = vmatpush1.msra.mxu0 0.0
      %1714 = vmatprep.subr.mxu0 0.0
      %1715 = vmatpush1.msra.mxu0 0.0
      %1716 = vmatprep.subr.mxu0 0.0
      %1717 = vmatpush1.msra.mxu0 0.0
      %1718 = vmatprep.subr.mxu0 0.0
      %1719 = vmatpush1.msra.mxu0 %v1683
      %1720 = vmatprep.subr.mxu0 0.0
      %1721 = vmatpush2.msra.mxu0 0.0
      %1722 = vmatprep.subr.mxu0 0.0
      %1723 = vmatpush2.msra.mxu0 0.0
      %1724 = vmatprep.subr.mxu0 0.0
      %1725 = vmatpush2.msra.mxu0 0.0
      %1726 = vmatprep.subr.mxu0 0.0
      %1727 = vmatpush2.msra.mxu0 0.0
      %1728 = vmatprep.subr.mxu0 0.0
      %1729 = vmatpush2.msra.mxu0 0.0
      %1730 = vmatprep.subr.mxu0 0.0
      %1731 = vmatpush2.msra.mxu0 0.0
      %1732 = vmatprep.subr.mxu0 0.0
      %1733 = vmatpush2.msra.mxu0 0.0
      %1734 = vmatprep.subr.mxu0 0.0
      %1735 = vmatpush2.msra.mxu0 0.0
      %1736 = vmatprep.subr.mxu0 0.0
      %1737 = vmatpush2.msra.mxu0 0.0
      %1738 = vmatprep.subr.mxu0 0.0
      %1739 = vmatpush2.msra.mxu0 0.0
      %1740 = vmatprep.subr.mxu0 0.0
      %1741 = vmatpush2.msra.mxu0 0.0
      %1742 = vmatprep.subr.mxu0 0.0
      %1743 = vmatpush2.msra.mxu0 0.0
      %1744 = vmatprep.subr.mxu0 0.0
      %1745 = vmatpush2.msra.mxu0 0.0
      %1746 = vmatprep.subr.mxu0 0.0
      %1747 = vmatpush2.msra.mxu0 0.0
      %1748 = vmatprep.subr.mxu0 0.0
      %1749 = vmatpush2.msra.mxu0 0.0
      %1750 = vmatprep.subr.mxu0 0.0
      %1751 = vmatpush2.msra.mxu0 0.0
      %1752 = vmatprep.mubr.f32.mxu0 0.0
      %1753 = vmatmul.mubr.f32.gmra.mxu0 %v1686
      %v1754 = vpop.f32.mrf.mxu0
      %v1755 = vadd.f32 0.0, %v1754
      %v1756 = vpop.f32.mrf.mxu0
      %1757 = vdwg.mxu0
      %1758 = vrot.lane.b32.xlu0 %v601, 104
      %v1759 = vpop.permute.xlu0 %1758
      %1760 = vrot.lane.b32.xlu0 %v674, 104
      %v1761 = vpop.permute.xlu0 %1760
      %v1762 = vsel %vm775, %v1759, 0
      %v1764 = vsel %vm775, %v1761, 0
      %1766 = vmatprep.subr.mxu0 0.0
      %1767 = vmatpush1.xpose.msra.mxu0 0.0
      %1768 = vmatprep.subr.mxu0 0.0
      %1769 = vmatpush1.xpose.msra.mxu0 0.0
      %1770 = vmatprep.subr.mxu0 0.0
      %1771 = vmatpush1.xpose.msra.mxu0 0.0
      %1772 = vmatprep.subr.mxu0 0.0
      %1773 = vmatpush1.xpose.msra.mxu0 0.0
      %1774 = vmatprep.subr.mxu0 0.0
      %1775 = vmatpush1.xpose.msra.mxu0 0.0
      %1776 = vmatprep.subr.mxu0 0.0
      %1777 = vmatpush1.xpose.msra.mxu0 0.0
      %1778 = vmatprep.subr.mxu0 0.0
      %1779 = vmatpush1.xpose.msra.mxu0 0.0
      %1780 = vmatprep.subr.mxu0 0.0
      %1781 = vmatpush1.xpose.msra.mxu0 0.0
      %1782 = vmatprep.subr.mxu0 0.0
      %1783 = vmatpush1.xpose.msra.mxu0 0.0
      %1784 = vmatprep.subr.mxu0 0.0
      %1785 = vmatpush1.xpose.msra.mxu0 0.0
      %1786 = vmatprep.subr.mxu0 0.0
      %1787 = vmatpush1.xpose.msra.mxu0 0.0
      %1788 = vmatprep.subr.mxu0 0.0
      %1789 = vmatpush1.xpose.msra.mxu0 0.0
      %1790 = vmatprep.subr.mxu0 0.0
      %1791 = vmatpush1.xpose.msra.mxu0 0.0
      %1792 = vmatprep.subr.mxu0 0.0
      %1793 = vmatpush1.xpose.msra.mxu0 0.0
      %1794 = vmatprep.subr.mxu0 0.0
      %1795 = vmatpush1.xpose.msra.mxu0 0.0
      %1796 = vmatprep.subr.mxu0 0.0
      %1797 = vmatpush1.xpose.msra.mxu0 %v1764
      %1798 = vmatprep.subr.mxu0 0.0
      %1799 = vmatpush2.xpose.msra.mxu0 0.0
      %1800 = vmatprep.subr.mxu0 0.0
      %1801 = vmatpush2.xpose.msra.mxu0 0.0
      %1802 = vmatprep.subr.mxu0 0.0
      %1803 = vmatpush2.xpose.msra.mxu0 0.0
      %1804 = vmatprep.subr.mxu0 0.0
      %1805 = vmatpush2.xpose.msra.mxu0 0.0
      %1806 = vmatprep.subr.mxu0 0.0
      %1807 = vmatpush2.xpose.msra.mxu0 0.0
      %1808 = vmatprep.subr.mxu0 0.0
      %1809 = vmatpush2.xpose.msra.mxu0 0.0
      %1810 = vmatprep.subr.mxu0 0.0
      %1811 = vmatpush2.xpose.msra.mxu0 0.0
      %1812 = vmatprep.subr.mxu0 0.0
      %1813 = vmatpush2.xpose.msra.mxu0 0.0
      %1814 = vmatprep.subr.mxu0 0.0
      %1815 = vmatpush2.xpose.msra.mxu0 0.0
      %1816 = vmatprep.subr.mxu0 0.0
      %1817 = vmatpush2.xpose.msra.mxu0 0.0
      %1818 = vmatprep.subr.mxu0 0.0
      %1819 = vmatpush2.xpose.msra.mxu0 0.0
      %1820 = vmatprep.subr.mxu0 0.0
      %1821 = vmatpush2.xpose.msra.mxu0 0.0
      %1822 = vmatprep.subr.mxu0 0.0
      %1823 = vmatpush2.xpose.msra.mxu0 0.0
      %1824 = vmatprep.subr.mxu0 0.0
      %1825 = vmatpush2.xpose.msra.mxu0 0.0
      %1826 = vmatprep.subr.mxu0 0.0
      %1827 = vmatpush2.xpose.msra.mxu0 0.0
      %1828 = vmatprep.subr.mxu0 0.0
      %1829 = vmatpush2.xpose.msra.mxu0 0.0
      %1830 = vmatprep.mubr.f32.mxu0 0.0
      %1831 = vmatmul.mubr.f32.gmra.mxu0 %v1762
      %v1832 = vpop.f32.mrf.mxu0
      %v1833 = vadd.f32 %v768, %v1832
      %v1834 = vpop.f32.mrf.mxu0
      %1835 = vdwg.mxu0
      %1836 = vrot.lane.b32.xlu0 %v602, 104
      %v1837 = vpop.permute.xlu0 %1836
      %1838 = vrot.lane.b32.xlu0 %v679, 104
      %v1839 = vpop.permute.xlu0 %1838
      %v1840 = vsel %vm775, %v1837, 0
      %v1842 = vsel %vm775, %v1839, 0
      %1844 = vmatprep.subr.mxu0 0.0
      %1845 = vmatpush1.xpose.msra.mxu0 0.0
      %1846 = vmatprep.subr.mxu0 0.0
      %1847 = vmatpush1.xpose.msra.mxu0 0.0
      %1848 = vmatprep.subr.mxu0 0.0
      %1849 = vmatpush1.xpose.msra.mxu0 0.0
      %1850 = vmatprep.subr.mxu0 0.0
      %1851 = vmatpush1.xpose.msra.mxu0 0.0
      %1852 = vmatprep.subr.mxu0 0.0
      %1853 = vmatpush1.xpose.msra.mxu0 0.0
      %1854 = vmatprep.subr.mxu0 0.0
      %1855 = vmatpush1.xpose.msra.mxu0 0.0
      %1856 = vmatprep.subr.mxu0 0.0
      %1857 = vmatpush1.xpose.msra.mxu0 0.0
      %1858 = vmatprep.subr.mxu0 0.0
      %1859 = vmatpush1.xpose.msra.mxu0 0.0
      %1860 = vmatprep.subr.mxu0 0.0
      %1861 = vmatpush1.xpose.msra.mxu0 0.0
      %1862 = vmatprep.subr.mxu0 0.0
      %1863 = vmatpush1.xpose.msra.mxu0 0.0
      %1864 = vmatprep.subr.mxu0 0.0
      %1865 = vmatpush1.xpose.msra.mxu0 0.0
      %1866 = vmatprep.subr.mxu0 0.0
      %1867 = vmatpush1.xpose.msra.mxu0 0.0
      %1868 = vmatprep.subr.mxu0 0.0
      %1869 = vmatpush1.xpose.msra.mxu0 0.0
      %1870 = vmatprep.subr.mxu0 0.0
      %1871 = vmatpush1.xpose.msra.mxu0 0.0
      %1872 = vmatprep.subr.mxu0 0.0
      %1873 = vmatpush1.xpose.msra.mxu0 0.0
      %1874 = vmatprep.subr.mxu0 0.0
      %1875 = vmatpush1.xpose.msra.mxu0 %v1842
      %1876 = vmatprep.subr.mxu0 0.0
      %1877 = vmatpush2.xpose.msra.mxu0 0.0
      %1878 = vmatprep.subr.mxu0 0.0
      %1879 = vmatpush2.xpose.msra.mxu0 0.0
      %1880 = vmatprep.subr.mxu0 0.0
      %1881 = vmatpush2.xpose.msra.mxu0 0.0
      %1882 = vmatprep.subr.mxu0 0.0
      %1883 = vmatpush2.xpose.msra.mxu0 0.0
      %1884 = vmatprep.subr.mxu0 0.0
      %1885 = vmatpush2.xpose.msra.mxu0 0.0
      %1886 = vmatprep.subr.mxu0 0.0
      %1887 = vmatpush2.xpose.msra.mxu0 0.0
      %1888 = vmatprep.subr.mxu0 0.0
      %1889 = vmatpush2.xpose.msra.mxu0 0.0
      %1890 = vmatprep.subr.mxu0 0.0
      %1891 = vmatpush2.xpose.msra.mxu0 0.0
      %1892 = vmatprep.subr.mxu0 0.0
      %1893 = vmatpush2.xpose.msra.mxu0 0.0
      %1894 = vmatprep.subr.mxu0 0.0
      %1895 = vmatpush2.xpose.msra.mxu0 0.0
      %1896 = vmatprep.subr.mxu0 0.0
      %1897 = vmatpush2.xpose.msra.mxu0 0.0
      %1898 = vmatprep.subr.mxu0 0.0
      %1899 = vmatpush2.xpose.msra.mxu0 0.0
      %1900 = vmatprep.subr.mxu0 0.0
      %1901 = vmatpush2.xpose.msra.mxu0 0.0
      %1902 = vmatprep.subr.mxu0 0.0
      %1903 = vmatpush2.xpose.msra.mxu0 0.0
      %1904 = vmatprep.subr.mxu0 0.0
      %1905 = vmatpush2.xpose.msra.mxu0 0.0
      %1906 = vmatprep.subr.mxu0 0.0
      %1907 = vmatpush2.xpose.msra.mxu0 0.0
      %1908 = vmatprep.mubr.f32.mxu0 0.0
      %1909 = vmatmul.mubr.f32.gmra.mxu0 %v1840
      %v1910 = vpop.f32.mrf.mxu0
      %v1911 = vadd.f32 %v772, %v1910
      %v1912 = vpop.f32.mrf.mxu0
      %1913 = vdwg.mxu0
      %v1914 = vsel %vm775, %v1833, -inf
      %1915 = vmax.xlane.f32.xlu0 %v1914
      %v1916 = vpop.xlane.xlu0 %1915
      %v1917 = vsel %vm775, %v1911, -inf
      %1918 = vmax.xlane.f32.xlu0 %v1917
      %v1919 = vpop.xlane.xlu0 %1918
      %v1920 = vsub.f32 %v1833, %v1916
      %v1921 = vsub.f32 %v1911, %v1919
      %v1922 = vmul.f32 %v1920, 1.442695
      %v1923 = vpow.pop %v1922
      %v1924 = vmul.f32 %v1921, 1.442695
      %v1925 = vpow.pop %v1924
      %v1926 = vsel %vm775, %v1923, 0.0
      %1927 = vadd.xlane.f32.xlu0 %v1926
      %v1928 = vpop.xlane.xlu0 %1927
      %v1929 = vsel %vm775, %v1925, 0.0
      %1930 = vadd.xlane.f32.xlu0 %v1929
      %v1931 = vpop.xlane.xlu0 %1930
      %v1932 = vrcp.pop %v1928
      %v1933 = vrcp.pop %v1931
      %v1934 = vmul.f32 %v1923, %v1932
      %v1935 = vmul.f32 %v1925, %v1933
      %1936 = vrot.lane.b32.xlu0 %v753, 104
      %v1937 = vpop.permute.xlu0 %1936
      %v1940 = vsel %vm775, %v1934, 0
      %1942 = vmatprep.subr.mxu0 0.0
      %1943 = vmatpush1.msra.mxu0 0.0
      %1944 = vmatprep.subr.mxu0 0.0
      %1945 = vmatpush1.msra.mxu0 0.0
      %1946 = vmatprep.subr.mxu0 0.0
      %1947 = vmatpush1.msra.mxu0 0.0
      %1948 = vmatprep.subr.mxu0 0.0
      %1949 = vmatpush1.msra.mxu0 0.0
      %1950 = vmatprep.subr.mxu0 0.0
      %1951 = vmatpush1.msra.mxu0 0.0
      %1952 = vmatprep.subr.mxu0 0.0
      %1953 = vmatpush1.msra.mxu0 0.0
      %1954 = vmatprep.subr.mxu0 0.0
      %1955 = vmatpush1.msra.mxu0 0.0
      %1956 = vmatprep.subr.mxu0 0.0
      %1957 = vmatpush1.msra.mxu0 0.0
      %1958 = vmatprep.subr.mxu0 0.0
      %1959 = vmatpush1.msra.mxu0 0.0
      %1960 = vmatprep.subr.mxu0 0.0
      %1961 = vmatpush1.msra.mxu0 0.0
      %1962 = vmatprep.subr.mxu0 0.0
      %1963 = vmatpush1.msra.mxu0 0.0
      %1964 = vmatprep.subr.mxu0 0.0
      %1965 = vmatpush1.msra.mxu0 0.0
      %1966 = vmatprep.subr.mxu0 0.0
      %1967 = vmatpush1.msra.mxu0 0.0
      %1968 = vmatprep.subr.mxu0 0.0
      %1969 = vmatpush1.msra.mxu0 0.0
      %1970 = vmatprep.subr.mxu0 0.0
      %1971 = vmatpush1.msra.mxu0 0.0
      %1972 = vmatprep.subr.mxu0 0.0
      %1973 = vmatpush1.msra.mxu0 %v1937
      %1974 = vmatprep.subr.mxu0 0.0
      %1975 = vmatpush2.msra.mxu0 0.0
      %1976 = vmatprep.subr.mxu0 0.0
      %1977 = vmatpush2.msra.mxu0 0.0
      %1978 = vmatprep.subr.mxu0 0.0
      %1979 = vmatpush2.msra.mxu0 0.0
      %1980 = vmatprep.subr.mxu0 0.0
      %1981 = vmatpush2.msra.mxu0 0.0
      %1982 = vmatprep.subr.mxu0 0.0
      %1983 = vmatpush2.msra.mxu0 0.0
      %1984 = vmatprep.subr.mxu0 0.0
      %1985 = vmatpush2.msra.mxu0 0.0
      %1986 = vmatprep.subr.mxu0 0.0
      %1987 = vmatpush2.msra.mxu0 0.0
      %1988 = vmatprep.subr.mxu0 0.0
      %1989 = vmatpush2.msra.mxu0 0.0
      %1990 = vmatprep.subr.mxu0 0.0
      %1991 = vmatpush2.msra.mxu0 0.0
      %1992 = vmatprep.subr.mxu0 0.0
      %1993 = vmatpush2.msra.mxu0 0.0
      %1994 = vmatprep.subr.mxu0 0.0
      %1995 = vmatpush2.msra.mxu0 0.0
      %1996 = vmatprep.subr.mxu0 0.0
      %1997 = vmatpush2.msra.mxu0 0.0
      %1998 = vmatprep.subr.mxu0 0.0
      %1999 = vmatpush2.msra.mxu0 0.0
      %2000 = vmatprep.subr.mxu0 0.0
      %2001 = vmatpush2.msra.mxu0 0.0
      %2002 = vmatprep.subr.mxu0 0.0
      %2003 = vmatpush2.msra.mxu0 0.0
      %2004 = vmatprep.subr.mxu0 0.0
      %2005 = vmatpush2.msra.mxu0 0.0
      %2006 = vmatprep.mubr.f32.mxu0 0.0
      %2007 = vmatmul.mubr.f32.gmra.mxu0 %v1940
      %v2008 = vpop.f32.mrf.mxu0
      %v2009 = vadd.f32 0.0, %v2008
      %v2010 = vpop.f32.mrf.mxu0
      %2011 = vdwg.mxu0
      %2012 = vrot.lane.b32.xlu0 %v758, 104
      %v2013 = vpop.permute.xlu0 %2012
      %v2016 = vsel %vm775, %v1935, 0
      %2018 = vmatprep.subr.mxu0 0.0
      %2019 = vmatpush1.msra.mxu0 0.0
      %2020 = vmatprep.subr.mxu0 0.0
      %2021 = vmatpush1.msra.mxu0 0.0
      %2022 = vmatprep.subr.mxu0 0.0
      %2023 = vmatpush1.msra.mxu0 0.0
      %2024 = vmatprep.subr.mxu0 0.0
      %2025 = vmatpush1.msra.mxu0 0.0
      %2026 = vmatprep.subr.mxu0 0.0
      %2027 = vmatpush1.msra.mxu0 0.0
      %2028 = vmatprep.subr.mxu0 0.0
      %2029 = vmatpush1.msra.mxu0 0.0
      %2030 = vmatprep.subr.mxu0 0.0
      %2031 = vmatpush1.msra.mxu0 0.0
      %2032 = vmatprep.subr.mxu0 0.0
      %2033 = vmatpush1.msra.mxu0 0.0
      %2034 = vmatprep.subr.mxu0 0.0
      %2035 = vmatpush1.msra.mxu0 0.0
      %2036 = vmatprep.subr.mxu0 0.0
      %2037 = vmatpush1.msra.mxu0 0.0
      %2038 = vmatprep.subr.mxu0 0.0
      %2039 = vmatpush1.msra.mxu0 0.0
      %2040 = vmatprep.subr.mxu0 0.0
      %2041 = vmatpush1.msra.mxu0 0.0
      %2042 = vmatprep.subr.mxu0 0.0
      %2043 = vmatpush1.msra.mxu0 0.0
      %2044 = vmatprep.subr.mxu0 0.0
      %2045 = vmatpush1.msra.mxu0 0.0
      %2046 = vmatprep.subr.mxu0 0.0
      %2047 = vmatpush1.msra.mxu0 0.0
      %2048 = vmatprep.subr.mxu0 0.0
      %2049 = vmatpush1.msra.mxu0 %v2013
      %2050 = vmatprep.subr.mxu0 0.0
      %2051 = vmatpush2.msra.mxu0 0.0
      %2052 = vmatprep.subr.mxu0 0.0
      %2053 = vmatpush2.msra.mxu0 0.0
      %2054 = vmatprep.subr.mxu0 0.0
      %2055 = vmatpush2.msra.mxu0 0.0
      %2056 = vmatprep.subr.mxu0 0.0
      %2057 = vmatpush2.msra.mxu0 0.0
      %2058 = vmatprep.subr.mxu0 0.0
      %2059 = vmatpush2.msra.mxu0 0.0
      %2060 = vmatprep.subr.mxu0 0.0
      %2061 = vmatpush2.msra.mxu0 0.0
      %2062 = vmatprep.subr.mxu0 0.0
      %2063 = vmatpush2.msra.mxu0 0.0
      %2064 = vmatprep.subr.mxu0 0.0
      %2065 = vmatpush2.msra.mxu0 0.0
      %2066 = vmatprep.subr.mxu0 0.0
      %2067 = vmatpush2.msra.mxu0 0.0
      %2068 = vmatprep.subr.mxu0 0.0
      %2069 = vmatpush2.msra.mxu0 0.0
      %2070 = vmatprep.subr.mxu0 0.0
      %2071 = vmatpush2.msra.mxu0 0.0
      %2072 = vmatprep.subr.mxu0 0.0
      %2073 = vmatpush2.msra.mxu0 0.0
      %2074 = vmatprep.subr.mxu0 0.0
      %2075 = vmatpush2.msra.mxu0 0.0
      %2076 = vmatprep.subr.mxu0 0.0
      %2077 = vmatpush2.msra.mxu0 0.0
      %2078 = vmatprep.subr.mxu0 0.0
      %2079 = vmatpush2.msra.mxu0 0.0
      %2080 = vmatprep.subr.mxu0 0.0
      %2081 = vmatpush2.msra.mxu0 0.0
      %2082 = vmatprep.mubr.f32.mxu0 0.0
      %2083 = vmatmul.mubr.f32.gmra.mxu0 %v2016
      %v2084 = vpop.f32.mrf.mxu0
      %v2085 = vadd.f32 0.0, %v2084
      %v2086 = vpop.f32.mrf.mxu0
      %2087 = vdwg.mxu0
      %2090 = vrot.lane.b32.xlu0 %v1348, 8
      %v2091 = vpop.permute.xlu0 %2090
      %2092 = vrot.lane.b32.xlu0 %v1425, 8
      %v2093 = vpop.permute.xlu0 %2092
      %2098 = vrot.lane.b32.xlu0 %v1679, 16
      %v2099 = vpop.permute.xlu0 %2098
      %2100 = vrot.lane.b32.xlu0 %v1755, 16
      %v2101 = vpop.permute.xlu0 %2100
      %2106 = vrot.lane.b32.xlu0 %v2009, 24
      %v2107 = vpop.permute.xlu0 %2106
      %2108 = vrot.lane.b32.xlu0 %v2085, 24
      %v2109 = vpop.permute.xlu0 %2108
      %v2112 = vsel %vm775, %v1020, %v2091
      %v2113 = vsel %vm775, %v1093, %v2093
      %vm2114 = vcmask 130048
      %v2115 = vsel %vm2114, %v2112, %v2099
      %v2116 = vsel %vm2114, %v2113, %v2101
      %vm2117 = vcmask 195584
      %v2118 = vsel %vm2117, %v2115, %v2107
      %v2119 = vsel %vm2117, %v2116, %v2109
      %v2120 = vlaneseq
      %v2121 = vshrl.u32 %v2120, 7
      %v2122 = vsub.s32 3, %v2121
      %v2123 = vrot.slane %v492, %v2122
      %v2125 = vsel %vm519, %v2118, 0
      %v2128 = vsel %vm519, %v2119, 0
      %2130 = vmatprep.subr.mxu0 0.0
      %2131 = vmatpush1.msra.mxu0 0.0
      %2132 = vmatprep.subr.mxu0 0.0
      %2133 = vmatpush1.msra.mxu0 0.0
      %2134 = vmatprep.subr.mxu0 0.0
      %2135 = vmatpush1.msra.mxu0 0.0
      %2136 = vmatprep.subr.mxu0 0.0
      %2137 = vmatpush1.msra.mxu0 0.0
      %2138 = vmatprep.subr.mxu0 0.0
      %2139 = vmatpush1.msra.mxu0 0.0
      %2140 = vmatprep.subr.mxu0 0.0
      %2141 = vmatpush1.msra.mxu0 0.0
      %2142 = vmatprep.subr.mxu0 0.0
      %2143 = vmatpush1.msra.mxu0 0.0
      %2144 = vmatprep.subr.mxu0 0.0
      %2145 = vmatpush1.msra.mxu0 0.0
      %2146 = vmatprep.subr.mxu0 0.0
      %2147 = vmatpush1.msra.mxu0 0.0
      %2148 = vmatprep.subr.mxu0 0.0
      %2149 = vmatpush1.msra.mxu0 0.0
      %2150 = vmatprep.subr.mxu0 0.0
      %2151 = vmatpush1.msra.mxu0 0.0
      %2152 = vmatprep.subr.mxu0 0.0
      %2153 = vmatpush1.msra.mxu0 0.0
      %2154 = vmatprep.subr.mxu0 0.0
      %2155 = vmatpush1.msra.mxu0 %v491
      %2156 = vmatprep.subr.mxu0 0.0
      %2157 = vmatpush1.msra.mxu0 %v490
      %2158 = vmatprep.subr.mxu0 0.0
      %2159 = vmatpush1.msra.mxu0 %v489
      %2160 = vmatprep.subr.mxu0 0.0
      %2161 = vmatpush1.msra.mxu0 %v488
      %2162 = vmatprep.subr.mxu0 0.0
      %2163 = vmatpush2.msra.mxu0 0.0
      %2164 = vmatprep.subr.mxu0 0.0
      %2165 = vmatpush2.msra.mxu0 0.0
      %2166 = vmatprep.subr.mxu0 0.0
      %2167 = vmatpush2.msra.mxu0 0.0
      %2168 = vmatprep.subr.mxu0 0.0
      %2169 = vmatpush2.msra.mxu0 0.0
      %2170 = vmatprep.subr.mxu0 0.0
      %2171 = vmatpush2.msra.mxu0 0.0
      %2172 = vmatprep.subr.mxu0 0.0
      %2173 = vmatpush2.msra.mxu0 0.0
      %2174 = vmatprep.subr.mxu0 0.0
      %2175 = vmatpush2.msra.mxu0 0.0
      %2176 = vmatprep.subr.mxu0 0.0
      %2177 = vmatpush2.msra.mxu0 0.0
      %2178 = vmatprep.subr.mxu0 0.0
      %2179 = vmatpush2.msra.mxu0 0.0
      %2180 = vmatprep.subr.mxu0 0.0
      %2181 = vmatpush2.msra.mxu0 0.0
      %2182 = vmatprep.subr.mxu0 0.0
      %2183 = vmatpush2.msra.mxu0 0.0
      %2184 = vmatprep.subr.mxu0 0.0
      %2185 = vmatpush2.msra.mxu0 0.0
      %2186 = vmatprep.subr.mxu0 0.0
      %2187 = vmatpush2.msra.mxu0 0.0
      %2188 = vmatprep.subr.mxu0 0.0
      %2189 = vmatpush2.msra.mxu0 0.0
      %2190 = vmatprep.subr.mxu0 0.0
      %2191 = vmatpush2.msra.mxu0 0.0
      %2192 = vmatprep.subr.mxu0 0.0
      %2193 = vmatpush2.msra.mxu0 0.0
      %2194 = vmatprep.mubr.f32.mxu0 0.0
      %2195 = vmatmul.mubr.f32.gmra.mxu0 %v2125
      %v2196 = vpop.f32.mrf.mxu0
      %v2197 = vadd.f32 %v2123, %v2196
      %v2198 = vpop.f32.mrf.mxu0
      %2199 = vmatprep.mubr.f32.mxu0 0.0
      %2200 = vmatmul.mubr.f32.gmra.mxu0 %v2128
      %v2201 = vpop.f32.mrf.mxu0
      %v2202 = vadd.f32 %v2123, %v2201
      %v2203 = vpop.f32.mrf.mxu0
      %2204 = vdwg.mxu0
      %v2205 = vadd.f32 %v471, %v2197
      %v2206 = vadd.f32 %v472, %v2202
      %v2207 = vsel %vm519, %v2205, 0.0
      %2208 = vadd.xlane.f32.xlu0 %v2207
      %v2209 = vpop.xlane.xlu0 %2208
      %v2210 = vsel %vm519, %v2206, 0.0
      %2211 = vadd.xlane.f32.xlu0 %v2210
      %v2212 = vpop.xlane.xlu0 %2211
      %v2213 = vrcp.pop 32.0
      %v2214 = vmul.f32 %v2209, %v2213
      %v2215 = vmul.f32 %v2212, %v2213
      %v2216 = vsub.f32 %v2205, %v2214
      %v2217 = vsub.f32 %v2206, %v2215
      %v2218 = vmul.f32 %v2216, %v2216
      %v2219 = vmul.f32 %v2217, %v2217
      %v2220 = vsel %vm519, %v2218, 0.0
      %2221 = vadd.xlane.f32.xlu0 %v2220
      %v2222 = vpop.xlane.xlu0 %2221
      %v2223 = vsel %vm519, %v2219, 0.0
      %2224 = vadd.xlane.f32.xlu0 %v2223
      %v2225 = vpop.xlane.xlu0 %2224
      %v2226 = vmul.f32 %v2222, %v2213
      %v2227 = vmul.f32 %v2225, %v2213
      %v2228 = vadd.f32 %v2226, 1e-12
      %v2229 = vadd.f32 %v2227, 1e-12
      %v2230 = vrsqrt.pop %v2228
      %v2231 = vrsqrt.pop %v2229
      %v2232 = vmul.f32 %v2216, %v2230
      %v2233 = vmul.f32 %v2217, %v2231
      %v2234 = vlaneseq
      %v2235 = vshrl.u32 %v2234, 7
      %v2236 = vsub.s32 4, %v2235
      %v2237 = vrot.slane %v492, %v2236
      %v2238 = vmul.f32 %v2232, %v2237
      %v2239 = vmul.f32 %v2233, %v2237
      %v2240 = vlaneseq
      %v2241 = vshrl.u32 %v2240, 7
      %v2242 = vsub.s32 5, %v2241
      %v2243 = vrot.slane %v492, %v2242
      %v2244 = vadd.f32 %v2238, %v2243
      %v2245 = vadd.f32 %v2239, %v2243
      %v2247 = vlaneseq
      %v2248 = vshrl.u32 %v2247, 7
      %v2249 = vsub.s32 0, %v2248
      %v2250 = vrot.slane %v498, %v2249
      %v2253 = vsel %vm519, %v2244, 0
      %v2256 = vsel %vm519, %v2245, 0
      %2258 = vmatprep.subr.mxu0 0.0
      %2259 = vmatpush1.msra.mxu0 0.0
      %2260 = vmatprep.subr.mxu0 0.0
      %2261 = vmatpush1.msra.mxu0 0.0
      %2262 = vmatprep.subr.mxu0 0.0
      %2263 = vmatpush1.msra.mxu0 0.0
      %2264 = vmatprep.subr.mxu0 0.0
      %2265 = vmatpush1.msra.mxu0 0.0
      %2266 = vmatprep.subr.mxu0 0.0
      %2267 = vmatpush1.msra.mxu0 0.0
      %2268 = vmatprep.subr.mxu0 0.0
      %2269 = vmatpush1.msra.mxu0 0.0
      %2270 = vmatprep.subr.mxu0 0.0
      %2271 = vmatpush1.msra.mxu0 0.0
      %2272 = vmatprep.subr.mxu0 0.0
      %2273 = vmatpush1.msra.mxu0 0.0
      %2274 = vmatprep.subr.mxu0 0.0
      %2275 = vmatpush1.msra.mxu0 0.0
      %2276 = vmatprep.subr.mxu0 0.0
      %2277 = vmatpush1.msra.mxu0 0.0
      %2278 = vmatprep.subr.mxu0 0.0
      %2279 = vmatpush1.msra.mxu0 0.0
      %2280 = vmatprep.subr.mxu0 0.0
      %2281 = vmatpush1.msra.mxu0 0.0
      %2282 = vmatprep.subr.mxu0 0.0
      %2283 = vmatpush1.msra.mxu0 %v497
      %2284 = vmatprep.subr.mxu0 0.0
      %2285 = vmatpush1.msra.mxu0 %v496
      %2286 = vmatprep.subr.mxu0 0.0
      %2287 = vmatpush1.msra.mxu0 %v495
      %2288 = vmatprep.subr.mxu0 0.0
      %2289 = vmatpush1.msra.mxu0 %v494
      %2290 = vmatprep.subr.mxu0 0.0
      %2291 = vmatpush2.msra.mxu0 0.0
      %2292 = vmatprep.subr.mxu0 0.0
      %2293 = vmatpush2.msra.mxu0 0.0
      %2294 = vmatprep.subr.mxu0 0.0
      %2295 = vmatpush2.msra.mxu0 0.0
      %2296 = vmatprep.subr.mxu0 0.0
      %2297 = vmatpush2.msra.mxu0 0.0
      %2298 = vmatprep.subr.mxu0 0.0
      %2299 = vmatpush2.msra.mxu0 0.0
      %2300 = vmatprep.subr.mxu0 0.0
      %2301 = vmatpush2.msra.mxu0 0.0
      %2302 = vmatprep.subr.mxu0 0.0
      %2303 = vmatpush2.msra.mxu0 0.0
      %2304 = vmatprep.subr.mxu0 0.0
      %2305 = vmatpush2.msra.mxu0 0.0
      %2306 = vmatprep.subr.mxu0 0.0
      %2307 = vmatpush2.msra.mxu0 0.0
      %2308 = vmatprep.subr.mxu0 0.0
      %2309 = vmatpush2.msra.mxu0 0.0
      %2310 = vmatprep.subr.mxu0 0.0
      %2311 = vmatpush2.msra.mxu0 0.0
      %2312 = vmatprep.subr.mxu0 0.0
      %2313 = vmatpush2.msra.mxu0 0.0
      %2314 = vmatprep.subr.mxu0 0.0
      %2315 = vmatpush2.msra.mxu0 0.0
      %2316 = vmatprep.subr.mxu0 0.0
      %2317 = vmatpush2.msra.mxu0 0.0
      %2318 = vmatprep.subr.mxu0 0.0
      %2319 = vmatpush2.msra.mxu0 0.0
      %2320 = vmatprep.subr.mxu0 0.0
      %2321 = vmatpush2.msra.mxu0 0.0
      %2322 = vmatprep.mubr.f32.mxu0 0.0
      %2323 = vmatmul.mubr.f32.gmra.mxu0 %v2253
      %v2324 = vpop.f32.mrf.mxu0
      %v2325 = vadd.f32 %v2250, %v2324
      %v2326 = vpop.f32.mrf.mxu0
      %2327 = vmatprep.mubr.f32.mxu0 0.0
      %2328 = vmatmul.mubr.f32.gmra.mxu0 %v2256
      %v2329 = vpop.f32.mrf.mxu0
      %v2330 = vadd.f32 %v2250, %v2329
      %v2331 = vpop.f32.mrf.mxu0
      %2332 = vdwg.mxu0
      %v2333 = vmul.f32 %v2325, 0.5
      %v2334 = vmul.f32 %v2330, 0.5
      %v2335 = vmul.f32 %v2325, 0.044715
      %v2336 = vmul.f32 %v2330, 0.044715
      %v2337 = vmul.f32 %v2335, %v2325
      %v2338 = vmul.f32 %v2336, %v2330
      %v2339 = vmul.f32 %v2337, %v2325
      %v2340 = vmul.f32 %v2338, %v2330
      %v2341 = vadd.f32 %v2325, %v2339
      %v2342 = vadd.f32 %v2330, %v2340
      %v2343 = vmul.f32 %v2341, 0.7978846
      %v2344 = vmul.f32 %v2342, 0.7978846
      %v2345 = vtanh.pop %v2343
      %v2346 = vtanh.pop %v2344
      %v2347 = vadd.f32 %v2345, 1.0
      %v2348 = vadd.f32 %v2346, 1.0
      %v2349 = vmul.f32 %v2333, %v2347
      %v2350 = vmul.f32 %v2334, %v2348
      %v2351 = vlaneseq
      %v2352 = vshrl.u32 %v2351, 7
      %v2353 = vsub.s32 6, %v2352
      %v2354 = vrot.slane %v492, %v2353
      %2355 = vmatprep.subr.mxu0 0.0
      %2356 = vmatpush1.msra.mxu0 %v514
      %2357 = vmatprep.subr.mxu0 0.0
      %2358 = vmatpush1.msra.mxu0 %v513
      %2359 = vmatprep.subr.mxu0 0.0
      %2360 = vmatpush1.msra.mxu0 %v512
      %2361 = vmatprep.subr.mxu0 0.0
      %2362 = vmatpush1.msra.mxu0 %v511
      %2363 = vmatprep.subr.mxu0 0.0
      %2364 = vmatpush1.msra.mxu0 %v510
      %2365 = vmatprep.subr.mxu0 0.0
      %2366 = vmatpush1.msra.mxu0 %v509
      %2367 = vmatprep.subr.mxu0 0.0
      %2368 = vmatpush1.msra.mxu0 %v508
      %2369 = vmatprep.subr.mxu0 0.0
      %2370 = vmatpush1.msra.mxu0 %v507
      %2371 = vmatprep.subr.mxu0 0.0
      %2372 = vmatpush1.msra.mxu0 %v506
      %2373 = vmatprep.subr.mxu0 0.0
      %2374 = vmatpush1.msra.mxu0 %v505
      %2375 = vmatprep.subr.mxu0 0.0
      %2376 = vmatpush1.msra.mxu0 %v504
      %2377 = vmatprep.subr.mxu0 0.0
      %2378 = vmatpush1.msra.mxu0 %v503
      %2379 = vmatprep.subr.mxu0 0.0
      %2380 = vmatpush1.msra.mxu0 %v502
      %2381 = vmatprep.subr.mxu0 0.0
      %2382 = vmatpush1.msra.mxu0 %v501
      %2383 = vmatprep.subr.mxu0 0.0
      %2384 = vmatpush1.msra.mxu0 %v500
      %2385 = vmatprep.subr.mxu0 0.0
      %2386 = vmatpush1.msra.mxu0 %v499
      %2387 = vmatprep.subr.mxu0 0.0
      %2388 = vmatpush2.msra.mxu0 0.0
      %2389 = vmatprep.subr.mxu0 0.0
      %2390 = vmatpush2.msra.mxu0 0.0
      %2391 = vmatprep.subr.mxu0 0.0
      %2392 = vmatpush2.msra.mxu0 0.0
      %2393 = vmatprep.subr.mxu0 0.0
      %2394 = vmatpush2.msra.mxu0 0.0
      %2395 = vmatprep.subr.mxu0 0.0
      %2396 = vmatpush2.msra.mxu0 0.0
      %2397 = vmatprep.subr.mxu0 0.0
      %2398 = vmatpush2.msra.mxu0 0.0
      %2399 = vmatprep.subr.mxu0 0.0
      %2400 = vmatpush2.msra.mxu0 0.0
      %2401 = vmatprep.subr.mxu0 0.0
      %2402 = vmatpush2.msra.mxu0 0.0
      %2403 = vmatprep.subr.mxu0 0.0
      %2404 = vmatpush2.msra.mxu0 0.0
      %2405 = vmatprep.subr.mxu0 0.0
      %2406 = vmatpush2.msra.mxu0 0.0
      %2407 = vmatprep.subr.mxu0 0.0
      %2408 = vmatpush2.msra.mxu0 0.0
      %2409 = vmatprep.subr.mxu0 0.0
      %2410 = vmatpush2.msra.mxu0 0.0
      %2411 = vmatprep.subr.mxu0 0.0
      %2412 = vmatpush2.msra.mxu0 0.0
      %2413 = vmatprep.subr.mxu0 0.0
      %2414 = vmatpush2.msra.mxu0 0.0
      %2415 = vmatprep.subr.mxu0 0.0
      %2416 = vmatpush2.msra.mxu0 0.0
      %2417 = vmatprep.subr.mxu0 0.0
      %2418 = vmatpush2.msra.mxu0 0.0
      %2419 = vmatprep.mubr.f32.mxu0 0.0
      %2420 = vmatmul.mubr.f32.gmra.mxu0 %v2349
      %v2421 = vpop.f32.mrf.mxu0
      %v2422 = vadd.f32 %v2354, %v2421
      %v2423 = vpop.f32.mrf.mxu0
      %2424 = vmatprep.mubr.f32.mxu0 0.0
      %2425 = vmatmul.mubr.f32.gmra.mxu0 %v2350
      %v2426 = vpop.f32.mrf.mxu0
      %v2427 = vadd.f32 %v2354, %v2426
      %v2428 = vpop.f32.mrf.mxu0
      %2429 = vdwg.mxu0
      %v2430 = vadd.f32 %v2244, %v2422
      %v2431 = vadd.f32 %v2245, %v2427
      %v2432 = vsel %vm519, %v2430, 0.0
      %2433 = vadd.xlane.f32.xlu0 %v2432
      %v2434 = vpop.xlane.xlu0 %2433
      %v2435 = vsel %vm519, %v2431, 0.0
      %2436 = vadd.xlane.f32.xlu0 %v2435
      %v2437 = vpop.xlane.xlu0 %2436
      %v2438 = vmul.f32 %v2434, %v2213
      %v2439 = vmul.f32 %v2437, %v2213
      %v2440 = vsub.f32 %v2430, %v2438
      %v2441 = vsub.f32 %v2431, %v2439
      %v2442 = vmul.f32 %v2440, %v2440
      %v2443 = vmul.f32 %v2441, %v2441
      %v2444 = vsel %vm519, %v2442, 0.0
      %2445 = vadd.xlane.f32.xlu0 %v2444
      %v2446 = vpop.xlane.xlu0 %2445
      %v2447 = vsel %vm519, %v2443, 0.0
      %2448 = vadd.xlane.f32.xlu0 %v2447
      %v2449 = vpop.xlane.xlu0 %2448
      %v2450 = vmul.f32 %v2446, %v2213
      %v2451 = vmul.f32 %v2449, %v2213
      %v2452 = vadd.f32 %v2450, 1e-12
      %v2453 = vadd.f32 %v2451, 1e-12
      %v2454 = vrsqrt.pop %v2452
      %v2455 = vrsqrt.pop %v2453
      %v2456 = vmul.f32 %v2440, %v2454
      %v2457 = vmul.f32 %v2441, %v2455
      %v2458 = vlaneseq
      %v2459 = vshrl.u32 %v2458, 7
      %v2460 = vsub.s32 7, %v2459
      %v2461 = vrot.slane %v492, %v2460
      %v2462 = vmul.f32 %v2456, %v2461
      %v2463 = vmul.f32 %v2457, %v2461
      %v2464 = vlaneseq
      %v2465 = vshrl.u32 %v2464, 7
      %v2466 = vsub.s32 0, %v2465
      %v2467 = vrot.slane %v493, %v2466
      %v2468 = vadd.f32 %v2462, %v2467
      %v2469 = vadd.f32 %v2463, %v2467
      %2470 = vst.msk [vmem:[#allocation2] sm:$0xff] %vm519, %v2468
      %2471 = vst.msk [vmem:[#allocation2 + $0x8] sm:$0xff] %vm519, %v2469
      %v2474 = vrot.slane %v2469, 7
      %vm2475 = vcmask 1041409
      %v2476 = vsel %vm2475, %v2474, %v2468
      %s2478 = smul.u32 %s23, 2
      %s2479 = scalar_lea.vmem [#allocation3], %s2478
      %vm2480 = vcmask 254976
      %2481 = vst.msk [vmem:[%s2479] sm:$0x3] %vm2480, %v2476
      %p2482 = scmp.eq.s32.totalorder %s23, 3
      // Predicated region
      $region65: #{forward.1} parent=59 // pred_check
        %p2483 = pneg %p2482
      $region66: #{forward.1} parent=59 // pred_check_branch
        %2485 = sbr.rel (%p2483) target = $region68
      $region67: #{forward.1} parent=59 // pred_region
        %s2486 = scalar_lea.vmem [#allocation3], 4
        %v2487 = vld [vmem:[%s2486] sm:$0x3]
        %s2488 = scalar_lea.vmem [#allocation3], 2
        %v2489 = vld [vmem:[%s2488] sm:$0x3]
        %v2490 = vld [vmem:[#allocation3] sm:$0x3]
        %2492 = vrot.lane.b32.xlu0 %v2487, 32
        %v2493 = vpop.permute.xlu0 %2492
        %2496 = vrot.lane.b32.xlu0 %v2489, 64
        %v2497 = vpop.permute.xlu0 %2496
        %2500 = vrot.lane.b32.xlu0 %v2490, 96
        %v2501 = vpop.permute.xlu0 %2500
        %v2503 = vsel %vm519, %v2476, %v2493
        %vm2504 = vcmask 523264
        %v2505 = vsel %vm2504, %v2503, %v2497
        %vm2506 = vcmask 785408
        %v2507 = vsel %vm2506, %v2505, %v2501
        %v2508 = vld [vmem:[%s3] sm:$0xff]
        %v2509 = vld [vmem:[%s3 + $0x8] sm:$0xff]
        %v2510 = vld [vmem:[%s3 + $0x10] sm:$0xff]
        %v2511 = vld [vmem:[%s3 + $0x18] sm:$0xff]
        %v2512 = vld [vmem:[%s3 + $0x20] sm:$0xff]
        %v2513 = vld [vmem:[%s3 + $0x28] sm:$0xff]
        %v2514 = vld [vmem:[%s3 + $0x30] sm:$0xff]
        %v2515 = vld [vmem:[%s3 + $0x38] sm:$0xff]
        %v2516 = vld [vmem:[%s3 + $0x40] sm:$0xff]
        %v2517 = vld [vmem:[%s3 + $0x48] sm:$0xff]
        %v2518 = vld [vmem:[%s3 + $0x50] sm:$0xff]
        %v2519 = vld [vmem:[%s3 + $0x58] sm:$0xff]
        %v2520 = vld [vmem:[%s3 + $0x60] sm:$0xff]
        %v2521 = vld [vmem:[%s3 + $0x68] sm:$0xff]
        %v2522 = vld [vmem:[%s3 + $0x70] sm:$0xff]
        %v2523 = vld [vmem:[%s3 + $0x78] sm:$0xff]
        %v2524 = vld [vmem:[#allocation4] sm:$0x1]
        %v2526 = vlaneseq
        %v2527 = vshrl.u32 %v2526, 7
        %v2528 = vsub.s32 0, %v2527
        %v2529 = vrot.slane %v2524, %v2528
        %2531 = vmatprep.subr.mxu0 0.0
        %2532 = vmatpush1.msra.mxu0 %v2523
        %2533 = vmatprep.subr.mxu0 0.0
        %2534 = vmatpush1.msra.mxu0 %v2522
        %2535 = vmatprep.subr.mxu0 0.0
        %2536 = vmatpush1.msra.mxu0 %v2521
        %2537 = vmatprep.subr.mxu0 0.0
        %2538 = vmatpush1.msra.mxu0 %v2520
        %2539 = vmatprep.subr.mxu0 0.0
        %2540 = vmatpush1.msra.mxu0 %v2519
        %2541 = vmatprep.subr.mxu0 0.0
        %2542 = vmatpush1.msra.mxu0 %v2518
        %2543 = vmatprep.subr.mxu0 0.0
        %2544 = vmatpush1.msra.mxu0 %v2517
        %2545 = vmatprep.subr.mxu0 0.0
        %2546 = vmatpush1.msra.mxu0 %v2516
        %2547 = vmatprep.subr.mxu0 0.0
        %2548 = vmatpush1.msra.mxu0 %v2515
        %2549 = vmatprep.subr.mxu0 0.0
        %2550 = vmatpush1.msra.mxu0 %v2514
        %2551 = vmatprep.subr.mxu0 0.0
        %2552 = vmatpush1.msra.mxu0 %v2513
        %2553 = vmatprep.subr.mxu0 0.0
        %2554 = vmatpush1.msra.mxu0 %v2512
        %2555 = vmatprep.subr.mxu0 0.0
        %2556 = vmatpush1.msra.mxu0 %v2511
        %2557 = vmatprep.subr.mxu0 0.0
        %2558 = vmatpush1.msra.mxu0 %v2510
        %2559 = vmatprep.subr.mxu0 0.0
        %2560 = vmatpush1.msra.mxu0 %v2509
        %2561 = vmatprep.subr.mxu0 0.0
        %2562 = vmatpush1.msra.mxu0 %v2508
        %2563 = vmatprep.subr.mxu0 0.0
        %2564 = vmatpush2.msra.mxu0 0.0
        %2565 = vmatprep.subr.mxu0 0.0
        %2566 = vmatpush2.msra.mxu0 0.0
        %2567 = vmatprep.subr.mxu0 0.0
        %2568 = vmatpush2.msra.mxu0 0.0
        %2569 = vmatprep.subr.mxu0 0.0
        %2570 = vmatpush2.msra.mxu0 0.0
        %2571 = vmatprep.subr.mxu0 0.0
        %2572 = vmatpush2.msra.mxu0 0.0
        %2573 = vmatprep.subr.mxu0 0.0
        %2574 = vmatpush2.msra.mxu0 0.0
        %2575 = vmatprep.subr.mxu0 0.0
        %2576 = vmatpush2.msra.mxu0 0.0
        %2577 = vmatprep.subr.mxu0 0.0
        %2578 = vmatpush2.msra.mxu0 0.0
        %2579 = vmatprep.subr.mxu0 0.0
        %2580 = vmatpush2.msra.mxu0 0.0
        %2581 = vmatprep.subr.mxu0 0.0
        %2582 = vmatpush2.msra.mxu0 0.0
        %2583 = vmatprep.subr.mxu0 0.0
        %2584 = vmatpush2.msra.mxu0 0.0
        %2585 = vmatprep.subr.mxu0 0.0
        %2586 = vmatpush2.msra.mxu0 0.0
        %2587 = vmatprep.subr.mxu0 0.0
        %2588 = vmatpush2.msra.mxu0 0.0
        %2589 = vmatprep.subr.mxu0 0.0
        %2590 = vmatpush2.msra.mxu0 0.0
        %2591 = vmatprep.subr.mxu0 0.0
        %2592 = vmatpush2.msra.mxu0 0.0
        %2593 = vmatprep.subr.mxu0 0.0
        %2594 = vmatpush2.msra.mxu0 0.0
        %2595 = vmatprep.mubr.f32.mxu0 0.0
        %2596 = vmatmul.mubr.f32.gmra.mxu0 %v2507
        %v2597 = vpop.f32.mrf.mxu0
        %v2598 = vadd.f32 %v2529, %v2597
        %v2599 = vpop.f32.mrf.mxu0
        %2600 = vdwg.mxu0
        %vm2601 = vcmask 1024
        %2602 = vst.msk [vmem:[%s10] sm:$0x3] %vm2601, %v2598
      $region68: #{forward.1} parent=59 // pred_fallthru
        _
      // Predicated region
      $region69: #{forward.1} parent=59 // pred_check
        %p2603 = pneg %p271
      $region70: #{forward.1} parent=59 // pred_check_branch
        %2605 = sbr.rel (%p2603) target = $region72
      $region71: #{forward.1} parent=59 // pred_region
        _
      $region72: #{forward.1} parent=59 // pred_fallthru
        _
      // Predicated region
      $region73: #{forward.1} parent=59 // pred_check
        %p2606 = pneg %p271
      $region74: #{forward.1} parent=59 // pred_check_branch
        %2608 = sbr.rel (%p2606) target = $region76
      $region75: #{forward.1} parent=59 // pred_region
        _
      $region76: #{forward.1} parent=59 // pred_fallthru
        _
    $region60: #{forward.1} parent=5 // pred_fallthru
      _
    %p2609 = scmp.le.s32.totalorder 2, %s18
    // Predicated region
    $region77: #{forward.1} parent=5 // pred_check
      %p2610 = pneg %p2609
    $region78: #{forward.1} parent=5 // pred_check_branch
      %2612 = sbr.rel (%p2610) target = $region80
    $region79: #{forward.1} parent=5 // pred_region
      %s2613 = ssub.s32 %s18, 2
    $region80: #{forward.1} parent=5 // pred_fallthru
      _
  $region6: #{forward.1} parent=0 // loop_footer
    %s22 = sadd.s32 1, %s18
  $region7: #{forward.1} parent=0 // loop_footer_branch
    %17 = sbr.rel target = $region3
  $region8: #{forward.1} parent=0 // loop_exit
    _

</llo_original>
